<compile_context>
chip_gen: v5e
topology: v5e:2x2
jax: 0.10.0
libtpu: 0.0.40
codegen_flags: <defaults>
</compile_context>

<pallas_src>
import functools

import jax
import jax.numpy as jnp
import numpy as np
from jax import lax
from jax.experimental import pallas as pl
from jax.experimental.pallas import tpu as pltpu

GN_GROUPS = 32
GN_EPS = 1e-5


def _vmem_budget_bytes():
    try:
        cap = int(pltpu.get_tpu_info().vmem_capacity_bytes)
    except Exception:
        cap = 64 * 1024 * 1024          # conservative default (v7x per-core VMEM)
    return min(cap * 3 // 4, 100 * 1024 * 1024)


def _exp_in_bf16():
    # bf16 exponentials only have a native EUP path (and only pay) on v6e / v7x.
    try:
        kind = jax.devices()[0].device_kind.lower()
    except Exception:
        return False
    return not any(v in kind for v in ("v2", "v3", "v4", "v5"))


def _choose_q_tile(L, C, num_heads, vmem_budget):
    """Largest query tile that (a) divides L and (b) fits the VMEM budget."""
    del num_heads  # transient model below assumes ~2 heads' score blocks live
    resident = (
        2 * L * C * 2                     # x block (bf16), double-buffered
        + 3 * L * C * 2                   # q/k/v scratch (bf16)
        + 2 * 4 * C * C * 2               # Wqkv^T + Wproj^T (bf16), assume 2 buffers
        + 2 * (6 * C + 2 * C * GN_GROUPS) * 4  # biases / gamma / beta / group tables
    )
    candidates = [t for t in (512, 256, 128, 64, 32, 16, 8) if L % t == 0]
    if not candidates:
        # TODO(synk): ragged L (no divisor >= 8) falls back to a single full tile;
        # masked q-tiling would be needed to bound VMEM for large prime-ish L.
        return L
    for t in candidates:
        per_tile = (
            12 * t * L                    # ~2 live heads of (TQ,L) f32 score + bf16 exp
            + t * C * 2                   # pv staging scratch (bf16)
            + 2 * t * C * 4               # out block (f32), double-buffered
            + t * 3 * C * 4               # (TQ,3C) f32 qkv chunk in the GN/qkv pass
            + 4 * t * C * 4               # misc f32 tile transients (x_tile, acc, ...)
        )
        if resident + per_tile <= vmem_budget:
            return t
    return candidates[-1]


def _attention_block_kernel(x_ref, gamma_ref, beta_ref, member_ref, member_t_ref,
                            wqkv_ref, bqkv_ref, wproj_ref, bproj_ref,
                            out_ref, qs_ref, ks_ref, vs_ref, pv_ref,
                            *, num_heads, q_tile, exp_in_bf16):
    # x_ref: (1, L, C) bf16 block for the current batch element (resident over q tiles).
    L = x_ref.shape[1]
    C = x_ref.shape[2]
    ch = C // num_heads
    scale = 1.0 / float(np.sqrt(np.sqrt(ch)))
    qt = pl.program_id(1)
    n_chunks = L // q_tile

    # ---- GroupNorm + qkv 1x1 conv: once per batch element, parked in bf16 scratch.
    #      Row-chunked so f32 intermediates stay bounded to (q_tile, 3C).
    @pl.when(qt == 0)
    def _compute_qkv():
        G = member_ref.shape[1]
        inv_n = 1.0 / float((C // G) * L)

        def _sum_body(i, csum):
            r0 = pl.multiple_of(i * q_tile, q_tile)
            xi = x_ref[0, pl.ds(r0, q_tile), :].astype(jnp.float32)
            return csum + jnp.sum(xi, axis=0, keepdims=True)

        ch_sum = lax.fori_loop(0, n_chunks, _sum_body,
                               jnp.zeros((1, C), jnp.float32))             # (1, C)
        mean_g = jnp.dot(ch_sum, member_ref[...],
                         preferred_element_type=jnp.float32) * inv_n       # (1, G)
        mean_c = jnp.dot(mean_g, member_t_ref[...],
                         preferred_element_type=jnp.float32)               # (1, C)

        def _var_body(i, ssum):
            r0 = pl.multiple_of(i * q_tile, q_tile)
            xc = x_ref[0, pl.ds(r0, q_tile), :].astype(jnp.float32) - mean_c
            return ssum + jnp.sum(xc * xc, axis=0, keepdims=True)

        sq_sum = lax.fori_loop(0, n_chunks, _var_body,
                               jnp.zeros((1, C), jnp.float32))             # (1, C)
        var_g = jnp.dot(sq_sum, member_ref[...],
                        preferred_element_type=jnp.float32) * inv_n        # (1, G)
        inv_c = jnp.dot(lax.rsqrt(var_g + GN_EPS), member_t_ref[...],
                        preferred_element_type=jnp.float32)                # (1, C)

        def _qkv_body(i, carry):
            r0 = pl.multiple_of(i * q_tile, q_tile)
            xi = x_ref[0, pl.ds(r0, q_tile), :].astype(jnp.float32)
            xn = ((xi - mean_c) * inv_c * gamma_ref[...] + beta_ref[...]
                  ).astype(jnp.bfloat16)                                   # (TQ, C)
            qkv = jnp.dot(xn, wqkv_ref[...],
                          preferred_element_type=jnp.float32) + bqkv_ref[...]
            qs_ref[pl.ds(r0, q_tile), :] = (qkv[:, 0:C] * scale).astype(jnp.bfloat16)
            ks_ref[pl.ds(r0, q_tile), :] = (qkv[:, C:2 * C] * scale).astype(jnp.bfloat16)
            vs_ref[pl.ds(r0, q_tile), :] = qkv[:, 2 * C:3 * C].astype(jnp.bfloat16)
            return carry

        lax.fori_loop(0, n_chunks, _qkv_body, 0)

    # ---- attention for this query tile --------------------------------------
    q0 = pl.multiple_of(qt * q_tile, q_tile)

    # TODO(synk): a lax.fori_loop over heads would bound per-head live ranges, but it
    # needs dynamic lane-offset slicing of the lane-dense (L, C) scratch, which Mosaic
    # does not lower cleanly when ch % 128 != 0; instead the per-head transient was
    # shrunk to one bf16 exp buffer (no separate f32 copy).
    for h in range(num_heads):
        lo = h * ch
        qh = qs_ref[pl.ds(q0, q_tile), lo:lo + ch]                         # (TQ, ch) bf16
        kh = ks_ref[:, lo:lo + ch]                                         # (L,  ch) bf16
        vh = vs_ref[:, lo:lo + ch]                                         # (L,  ch) bf16

        # QK^T: contract channel dims of both operands directly (no transpose).
        s = lax.dot_general(qh, kh, (((1,), (1,)), ((), ())),
                            preferred_element_type=jnp.float32)            # (TQ, L) f32
        m = jnp.max(s, axis=-1, keepdims=True)
        if exp_in_bf16:
            e = jnp.exp((s - m).astype(jnp.bfloat16))                      # bf16 EUP path
        else:
            e = jnp.exp(s - m).astype(jnp.bfloat16)                        # f32 EUP (<=v5)
        # Single exp buffer: denominator f32-accumulated from the same bf16 values.
        denom = jnp.sum(e, axis=-1, keepdims=True, dtype=jnp.float32)      # (TQ, 1)

        pv = jnp.dot(e, vh, preferred_element_type=jnp.float32)            # (TQ, ch)
        pv = pv * pl.reciprocal(denom, approx=True)                        # EUP recip
        # Stage this head at its (static) lane offset; proj becomes one full-K matmul.
        pv_ref[:, lo:lo + ch] = pv.astype(jnp.bfloat16)

    acc = jnp.dot(pv_ref[...], wproj_ref[...],
                  preferred_element_type=jnp.float32)                      # (TQ, C)
    x_tile = x_ref[0, pl.ds(q0, q_tile), :].astype(jnp.float32)
    out_ref[0] = (x_tile + acc + bproj_ref[...]).astype(out_ref.dtype)


def _build_call(B, L, C, G, TQ, num_heads, exp_in_bf16, vmem_limit,
                single_buffer_consts):
    n_q = L // TQ

    def cspec(shape):
        index_map = lambda b, t, _n=len(shape): (0,) * _n
        if single_buffer_consts:
            # Constant-index operands: no double buffering (saves ~4*C^2 bf16 bytes).
            return pl.BlockSpec(shape, index_map, pipeline_mode=pl.Buffered(1))
        return pl.BlockSpec(shape, index_map)

    # Advisory cost estimate: qkv + proj matmuls + QK^T/PV attention + exp count.
    flops = int(B * (2 * L * C * 3 * C + 2 * L * C * C + 4 * L * L * C))
    transcendentals = int(B * num_heads * L * L)
    bytes_accessed = int(B * L * C * (2 + 4) + (3 * C * C + C * C) * 2 + 8 * C * 4)

    return pl.pallas_call(
        functools.partial(_attention_block_kernel, num_heads=num_heads,
                          q_tile=TQ, exp_in_bf16=exp_in_bf16),
        out_shape=jax.ShapeDtypeStruct((B, L, C), jnp.float32),
        grid_spec=pltpu.PrefetchScalarGridSpec(
            num_scalar_prefetch=0,
            grid=(B, n_q),
            in_specs=[
                pl.BlockSpec((1, L, C), lambda b, t: (b, 0, 0)),   # x (bf16, per batch)
                cspec((1, C)),            # gamma
                cspec((1, C)),            # beta
                cspec((C, G)),            # group membership
                cspec((G, C)),            # membership^T
                cspec((C, 3 * C)),        # Wqkv^T (bf16)
                cspec((1, 3 * C)),        # bqkv
                cspec((C, C)),            # Wproj^T (bf16)
                cspec((1, C)),            # bproj
            ],
            out_specs=pl.BlockSpec((1, TQ, C), lambda b, t: (b, t, 0)),
            scratch_shapes=[
                pltpu.VMEM((L, C), jnp.bfloat16),    # q * scale
                pltpu.VMEM((L, C), jnp.bfloat16),    # k * scale
                pltpu.VMEM((L, C), jnp.bfloat16),    # v
                pltpu.VMEM((TQ, C), jnp.bfloat16),   # per-head PV staging (lane-dense)
            ],
        ),
        compiler_params=pltpu.CompilerParams(
            # Batch feeds megacore; the q-tile axis carries the qkv scratch computed
            # at t==0, so it must stay sequential ("arbitrary").
            # TODO(synk): v7x small-batch: split the q-tile range across the two
            # TensorCores (core-parallel axis + per-core or shared k/v scratch).
            dimension_semantics=("parallel", "arbitrary"),
            vmem_limit_bytes=vmem_limit,
        ),
        cost_estimate=pl.CostEstimate(
            flops=flops, transcendentals=transcendentals,
            bytes_accessed=bytes_accessed),
    )


def attention_block(x, params, num_heads):
    """x: (B, C, H, W) float32, NCHW like the PyTorch module."""
    B, C, H, W = x.shape
    L = H * W
    assert C % GN_GROUPS == 0 and C % num_heads == 0
    G = GN_GROUPS
    gs = C // G

    # NCHW -> (B, L, C) in bf16: channels on lanes; bf16 halves both the transpose
    # HBM traffic and the kernel's resident x block.
    # NOTE: ideally keep activations channels-last across the surrounding network so
    # these transposes disappear entirely (pure layout plumbing).
    x_blc = jnp.transpose(x.reshape(B, C, L).astype(jnp.bfloat16), (0, 2, 1))

    vmem_limit = _vmem_budget_bytes()
    TQ = _choose_q_tile(L, C, num_heads, vmem_limit)
    exp_bf16 = _exp_in_bf16()

    # Group-membership matrices for the cross-lane group reduction (host-built once).
    member_np = (np.arange(C)[:, None] // gs == np.arange(G)[None, :]).astype(np.float32)
    member = jnp.asarray(member_np)                                        # (C, G)
    member_t = jnp.asarray(member_np.T)                                    # (G, C)

    gamma = params["gn_gamma"].reshape(1, C).astype(jnp.float32)
    beta = params["gn_beta"].reshape(1, C).astype(jnp.float32)
    wqkv_t = params["w_qkv"].T.astype(jnp.bfloat16)                        # (C, 3C)
    bqkv = params["b_qkv"].reshape(1, 3 * C).astype(jnp.float32)
    wproj_t = params["w_proj"].T.astype(jnp.bfloat16)                      # (C, C)
    bproj = params["b_proj"].reshape(1, C).astype(jnp.float32)

    args = (x_blc, gamma, beta, member, member_t, wqkv_t, bqkv, wproj_t, bproj)

    # Preferred build first (single-buffered constants, bf16 exp where it pays);
    # degrade gracefully if this JAX/Mosaic build rejects an optional feature.
    attempts = [(True, exp_bf16), (False, exp_bf16)]
    if exp_bf16:
        attempts.append((False, False))

    out = None
    last_err = None
    for single_buf, use_bf16_exp in attempts:
        try:
            fn = _build_call(B, L, C, G, TQ, num_heads, use_bf16_exp,
                             vmem_limit, single_buf)
            out = jax.block_until_ready(fn(*args))
            break
        except Exception as e:      # noqa: BLE001 - fall back to a plainer build
            last_err = e
            out = None
    if out is None:
        raise last_err

    return jnp.transpose(out, (0, 2, 1)).reshape(B, C, H, W).astype(x.dtype)


def attention_block_reference(x, params, num_heads):
    """Pure-JAX f32 reference mirroring the PyTorch forward exactly."""
    B, C, H, W = x.shape
    L = H * W
    xr = x.reshape(B, C, L)
    gs = C // GN_GROUPS
    xg = xr.reshape(B, GN_GROUPS, gs, L)
    mean = xg.mean(axis=(2, 3), keepdims=True)
    var = xg.var(axis=(2, 3), keepdims=True)
    xn = ((xg - mean) / jnp.sqrt(var + GN_EPS)).reshape(B, C, L)
    xn = xn * params["gn_gamma"][None, :, None] + params["gn_beta"][None, :, None]
    qkv = jnp.einsum("oc,bcl->bol", params["w_qkv"], xn) + params["b_qkv"][None, :, None]
    q, k, v = jnp.split(qkv, 3, axis=1)
    ch = C // num_heads
    scale = 1.0 / np.sqrt(np.sqrt(ch))
    qh = (q * scale).reshape(B * num_heads, ch, L)
    kh = (k * scale).reshape(B * num_heads, ch, L)
    vh = v.reshape(B * num_heads, ch, L)
    w = jnp.einsum("bct,bcs->bts", qh, kh)
    w = jax.nn.softmax(w, axis=-1)
    a = jnp.einsum("bts,bcs->bct", w, vh).reshape(B, C, L)
    a = jnp.einsum("oc,bcl->bol", params["w_proj"], a) + params["b_proj"][None, :, None]
    return (xr + a).reshape(B, C, H, W)


if __name__ == "__main__":
    B, C, H, W = 2, 64, 8, 8       # GroupNorm(32, C) requires C % 32 == 0
    NUM_HEADS = 2

    key = jax.random.PRNGKey(0)
    kx, kw1, kb1, kw2, kb2, kg, kb = jax.random.split(key, 7)
    x = jax.random.normal(kx, (B, C, H, W), jnp.float32)

    params = {
        "gn_gamma": 1.0 + 0.1 * jax.random.normal(kg, (C,), jnp.float32),
        "gn_beta": 0.1 * jax.random.normal(kb, (C,), jnp.float32),
        "w_qkv": 0.05 * jax.random.normal(kw1, (3 * C, C), jnp.float32),   # Conv1d(C,3C,1), kernel dim squeezed
        "b_qkv": 0.05 * jax.random.normal(kb1, (3 * C,), jnp.float32),
        "w_proj": 0.05 * jax.random.normal(kw2, (C, C), jnp.float32),      # Conv1d(C,C,1), kernel dim squeezed
        "b_proj": 0.05 * jax.random.normal(kb2, (C,), jnp.float32),
    }

    out = attention_block(x, params, NUM_HEADS)
    out = jax.block_until_ready(out)

    ref = jax.block_until_ready(attention_block_reference(x, params, NUM_HEADS))
    # Tolerance relaxed vs the pure-f32 reference: MXU matmuls run with bf16 operands
    # (f32 accumulation) and x enters the kernel as bf16.
    np.testing.assert_allclose(np.asarray(out), np.asarray(ref), rtol=2e-2, atol=2e-2)

    print("KERNEL_OK")
</pallas_src>

<mosaic_0001>
module attributes {stable_mosaic.version = 11 : i64} {
  func.func @_attention_block_kernel(%arg0: i32, %arg1: i32, %arg2: memref<1x64x64xbf16, #tpu.memory_space<vmem>>, %arg3: memref<1x64xf32, #tpu.memory_space<vmem>>, %arg4: memref<1x64xf32, #tpu.memory_space<vmem>>, %arg5: memref<64x32xf32, #tpu.memory_space<vmem>>, %arg6: memref<32x64xf32, #tpu.memory_space<vmem>>, %arg7: memref<64x192xbf16, #tpu.memory_space<vmem>>, %arg8: memref<1x192xf32, #tpu.memory_space<vmem>>, %arg9: memref<64x64xbf16, #tpu.memory_space<vmem>>, %arg10: memref<1x64xf32, #tpu.memory_space<vmem>>, %arg11: memref<1x64x64xf32, #tpu.memory_space<vmem>>, %arg12: memref<64x64xbf16, #tpu.memory_space<vmem>>, %arg13: memref<64x64xbf16, #tpu.memory_space<vmem>>, %arg14: memref<64x64xbf16, #tpu.memory_space<vmem>>, %arg15: memref<64x64xbf16, #tpu.memory_space<vmem>>) attributes {dimension_semantics = [#tpu.dimension_semantics<parallel>, #tpu.dimension_semantics<arbitrary>], iteration_bounds = array<i64: 2, 1>, scalar_prefetch = 0 : i64, scratch_operands = 4 : i64, tpu.core_type = #tpu.core_type<tc>, window_params = [{transform_indices = @transform_0, window_bounds = array<i64: 1, 64, 64>}, {pipeline_mode = #tpu.pipeline_mode<synchronous>, transform_indices = @transform_1, window_bounds = array<i64: 1, 64>}, {pipeline_mode = #tpu.pipeline_mode<synchronous>, transform_indices = @transform_2, window_bounds = array<i64: 1, 64>}, {pipeline_mode = #tpu.pipeline_mode<synchronous>, transform_indices = @transform_3, window_bounds = array<i64: 64, 32>}, {pipeline_mode = #tpu.pipeline_mode<synchronous>, transform_indices = @transform_4, window_bounds = array<i64: 32, 64>}, {pipeline_mode = #tpu.pipeline_mode<synchronous>, transform_indices = @transform_5, window_bounds = array<i64: 64, 192>}, {pipeline_mode = #tpu.pipeline_mode<synchronous>, transform_indices = @transform_6, window_bounds = array<i64: 1, 192>}, {pipeline_mode = #tpu.pipeline_mode<synchronous>, transform_indices = @transform_7, window_bounds = array<i64: 64, 64>}, {pipeline_mode = #tpu.pipeline_mode<synchronous>, transform_indices = @transform_8, window_bounds = array<i64: 1, 64>}, {transform_indices = @transform_9, window_bounds = array<i64: 1, 64, 64>}]} {
    %c0_i32 = arith.constant 0 : i32
    %0 = arith.cmpi eq, %arg1, %c0_i32 : i32
    %1 = arith.extui %0 : i1 to i32
    %c0_i32_0 = arith.constant 0 : i32
    %2 = arith.cmpi ne, %1, %c0_i32_0 : i32
    scf.if %2 {
      %cst_32 = arith.constant 0.000000e+00 : f32
      %59 = vector.broadcast %cst_32 : f32 to vector<1x64xf32>
      %c0_i32_33 = arith.constant 0 : i32
      %c64_i32_34 = arith.constant 64 : i32
      %60 = arith.muli %c0_i32_33, %c64_i32_34 : i32
      %61 = tpu.assume_multiple %60, 64 : i32
      %c0_35 = arith.constant 0 : index
      %62 = arith.index_cast %61 : i32 to index
      %c0_36 = arith.constant 0 : index
      %63 = vector.load %arg2[%c0_35, %62, %c0_36] : memref<1x64x64xbf16, #tpu.memory_space<vmem>>, vector<1x64x64xbf16>
      %64 = vector.shape_cast %63 : vector<1x64x64xbf16> to vector<64x64xbf16>
      %65 = arith.extf %64 : vector<64x64xbf16> to vector<64x64xf32>
      %cst_37 = arith.constant dense<0.000000e+00> : vector<64xf32>
      %66 = vector.multi_reduction <add>, %65, %cst_37 [0] : vector<64x64xf32> to vector<64xf32>
      %67 = vector.shape_cast %66 : vector<64xf32> to vector<1x64xf32>
      %68 = arith.addf %59, %67 : vector<1x64xf32>
      %c1_i32 = arith.constant 1 : i32
      %c0_38 = arith.constant 0 : index
      %c0_39 = arith.constant 0 : index
      %69 = vector.load %arg5[%c0_38, %c0_39] : memref<64x32xf32, #tpu.memory_space<vmem>>, vector<64x32xf32>
      %cst_40 = arith.constant dense<0.000000e+00> : vector<1x32xf32>
      %70 = tpu.matmul %68, %69, %cst_40 {dimension_numbers = #tpu.dot_dimension_numbers<[1], [0], [0], [1], [0, 0, 1, 1], [], []>} : vector<1x64xf32>, vector<64x32xf32>, vector<1x32xf32> -> vector<1x32xf32>
      %cst_41 = arith.constant 7.812500e-03 : f32
      %71 = vector.broadcast %cst_41 : f32 to vector<1x32xf32>
      %72 = arith.mulf %70, %71 : vector<1x32xf32>
      %c0_42 = arith.constant 0 : index
      %c0_43 = arith.constant 0 : index
      %73 = vector.load %arg6[%c0_42, %c0_43] : memref<32x64xf32, #tpu.memory_space<vmem>>, vector<32x64xf32>
      %cst_44 = arith.constant dense<0.000000e+00> : vector<1x64xf32>
      %74 = tpu.matmul %72, %73, %cst_44 {dimension_numbers = #tpu.dot_dimension_numbers<[1], [0], [0], [1], [0, 0, 1, 1], [], []>} : vector<1x32xf32>, vector<32x64xf32>, vector<1x64xf32> -> vector<1x64xf32>
      %cst_45 = arith.constant 0.000000e+00 : f32
      %75 = vector.broadcast %cst_45 : f32 to vector<1x64xf32>
      %c0_i32_46 = arith.constant 0 : i32
      %c64_i32_47 = arith.constant 64 : i32
      %76 = arith.muli %c0_i32_46, %c64_i32_47 : i32
      %77 = tpu.assume_multiple %76, 64 : i32
      %c0_48 = arith.constant 0 : index
      %78 = arith.index_cast %77 : i32 to index
      %c0_49 = arith.constant 0 : index
      %79 = vector.load %arg2[%c0_48, %78, %c0_49] : memref<1x64x64xbf16, #tpu.memory_space<vmem>>, vector<1x64x64xbf16>
      %80 = vector.shape_cast %79 : vector<1x64x64xbf16> to vector<64x64xbf16>
      %81 = arith.extf %80 : vector<64x64xbf16> to vector<64x64xf32>
      %82 = vector.broadcast %74 : vector<1x64xf32> to vector<64x64xf32>
      %83 = arith.subf %81, %82 : vector<64x64xf32>
      %84 = arith.mulf %83, %83 : vector<64x64xf32>
      %cst_50 = arith.constant dense<0.000000e+00> : vector<64xf32>
      %85 = vector.multi_reduction <add>, %84, %cst_50 [0] : vector<64x64xf32> to vector<64xf32>
      %86 = vector.shape_cast %85 : vector<64xf32> to vector<1x64xf32>
      %87 = arith.addf %75, %86 : vector<1x64xf32>
      %c1_i32_51 = arith.constant 1 : i32
      %c0_52 = arith.constant 0 : index
      %c0_53 = arith.constant 0 : index
      %88 = vector.load %arg5[%c0_52, %c0_53] : memref<64x32xf32, #tpu.memory_space<vmem>>, vector<64x32xf32>
      %cst_54 = arith.constant dense<0.000000e+00> : vector<1x32xf32>
      %89 = tpu.matmul %87, %88, %cst_54 {dimension_numbers = #tpu.dot_dimension_numbers<[1], [0], [0], [1], [0, 0, 1, 1], [], []>} : vector<1x64xf32>, vector<64x32xf32>, vector<1x32xf32> -> vector<1x32xf32>
      %cst_55 = arith.constant 7.812500e-03 : f32
      %90 = vector.broadcast %cst_55 : f32 to vector<1x32xf32>
      %91 = arith.mulf %89, %90 : vector<1x32xf32>
      %cst_56 = arith.constant 9.99999974E-6 : f32
      %92 = vector.broadcast %cst_56 : f32 to vector<1x32xf32>
      %93 = arith.addf %91, %92 : vector<1x32xf32>
      %94 = math.rsqrt %93 : vector<1x32xf32>
      %c0_57 = arith.constant 0 : index
      %c0_58 = arith.constant 0 : index
      %95 = vector.load %arg6[%c0_57, %c0_58] : memref<32x64xf32, #tpu.memory_space<vmem>>, vector<32x64xf32>
      %cst_59 = arith.constant dense<0.000000e+00> : vector<1x64xf32>
      %96 = tpu.matmul %94, %95, %cst_59 {dimension_numbers = #tpu.dot_dimension_numbers<[1], [0], [0], [1], [0, 0, 1, 1], [], []>} : vector<1x32xf32>, vector<32x64xf32>, vector<1x64xf32> -> vector<1x64xf32>
      %c0_i32_60 = arith.constant 0 : i32
      %c64_i32_61 = arith.constant 64 : i32
      %97 = arith.muli %c0_i32_60, %c64_i32_61 : i32
      %98 = tpu.assume_multiple %97, 64 : i32
      %c0_62 = arith.constant 0 : index
      %99 = arith.index_cast %98 : i32 to index
      %c0_63 = arith.constant 0 : index
      %100 = vector.load %arg2[%c0_62, %99, %c0_63] : memref<1x64x64xbf16, #tpu.memory_space<vmem>>, vector<1x64x64xbf16>
      %101 = vector.shape_cast %100 : vector<1x64x64xbf16> to vector<64x64xbf16>
      %102 = arith.extf %101 : vector<64x64xbf16> to vector<64x64xf32>
      %103 = vector.broadcast %74 : vector<1x64xf32> to vector<64x64xf32>
      %104 = arith.subf %102, %103 : vector<64x64xf32>
      %105 = vector.broadcast %96 : vector<1x64xf32> to vector<64x64xf32>
      %106 = arith.mulf %104, %105 : vector<64x64xf32>
      %c0_64 = arith.constant 0 : index
      %c0_65 = arith.constant 0 : index
      %107 = vector.load %arg3[%c0_64, %c0_65] : memref<1x64xf32, #tpu.memory_space<vmem>>, vector<1x64xf32>
      %108 = vector.broadcast %107 : vector<1x64xf32> to vector<64x64xf32>
      %109 = arith.mulf %106, %108 : vector<64x64xf32>
      %c0_66 = arith.constant 0 : index
      %c0_67 = arith.constant 0 : index
      %110 = vector.load %arg4[%c0_66, %c0_67] : memref<1x64xf32, #tpu.memory_space<vmem>>, vector<1x64xf32>
      %111 = vector.broadcast %110 : vector<1x64xf32> to vector<64x64xf32>
      %112 = arith.addf %109, %111 : vector<64x64xf32>
      %113 = arith.truncf %112 : vector<64x64xf32> to vector<64x64xbf16>
      %c0_68 = arith.constant 0 : index
      %c0_69 = arith.constant 0 : index
      %114 = vector.load %arg7[%c0_68, %c0_69] : memref<64x192xbf16, #tpu.memory_space<vmem>>, vector<64x192xbf16>
      %cst_70 = arith.constant dense<0.000000e+00> : vector<64x192xf32>
      %115 = tpu.matmul %113, %114, %cst_70 {dimension_numbers = #tpu.dot_dimension_numbers<[1], [0], [0], [1], [0, 0, 1, 1], [], []>} : vector<64x64xbf16>, vector<64x192xbf16>, vector<64x192xf32> -> vector<64x192xf32>
      %c0_71 = arith.constant 0 : index
      %c0_72 = arith.constant 0 : index
      %116 = vector.load %arg8[%c0_71, %c0_72] : memref<1x192xf32, #tpu.memory_space<vmem>>, vector<1x192xf32>
      %117 = vector.broadcast %116 : vector<1x192xf32> to vector<64x192xf32>
      %118 = arith.addf %115, %117 : vector<64x192xf32>
      %119 = vector.extract_strided_slice %118 {offsets = [0, 0], sizes = [64, 64], strides = [1, 1]} : vector<64x192xf32> to vector<64x64xf32>
      %cst_73 = arith.constant 0.420448214 : f32
      %120 = vector.broadcast %cst_73 : f32 to vector<64x64xf32>
      %121 = arith.mulf %119, %120 : vector<64x64xf32>
      %122 = arith.truncf %121 : vector<64x64xf32> to vector<64x64xbf16>
      %123 = arith.index_cast %98 : i32 to index
      %c0_74 = arith.constant 0 : index
      %124 = vector.load %arg12[%123, %c0_74] : memref<64x64xbf16, #tpu.memory_space<vmem>>, vector<64x64xbf16>
      tpu.vector_store %arg12[%123, %c0_74], %122 {strides = array<i32>} : memref<64x64xbf16, #tpu.memory_space<vmem>>, vector<64x64xbf16>,
      %125 = vector.extract_strided_slice %118 {offsets = [0, 64], sizes = [64, 64], strides = [1, 1]} : vector<64x192xf32> to vector<64x64xf32>
      %cst_75 = arith.constant 0.420448214 : f32
      %126 = vector.broadcast %cst_75 : f32 to vector<64x64xf32>
      %127 = arith.mulf %125, %126 : vector<64x64xf32>
      %128 = arith.truncf %127 : vector<64x64xf32> to vector<64x64xbf16>
      %129 = arith.index_cast %98 : i32 to index
      %c0_76 = arith.constant 0 : index
      %130 = vector.load %arg13[%129, %c0_76] : memref<64x64xbf16, #tpu.memory_space<vmem>>, vector<64x64xbf16>
      tpu.vector_store %arg13[%129, %c0_76], %128 {strides = array<i32>} : memref<64x64xbf16, #tpu.memory_space<vmem>>, vector<64x64xbf16>,
      %131 = vector.extract_strided_slice %118 {offsets = [0, 128], sizes = [64, 64], strides = [1, 1]} : vector<64x192xf32> to vector<64x64xf32>
      %132 = arith.truncf %131 : vector<64x64xf32> to vector<64x64xbf16>
      %133 = arith.index_cast %98 : i32 to index
      %c0_77 = arith.constant 0 : index
      %134 = vector.load %arg14[%133, %c0_77] : memref<64x64xbf16, #tpu.memory_space<vmem>>, vector<64x64xbf16>
      tpu.vector_store %arg14[%133, %c0_77], %132 {strides = array<i32>} : memref<64x64xbf16, #tpu.memory_space<vmem>>, vector<64x64xbf16>,
      %c1_i32_78 = arith.constant 1 : i32
    } else {
    }
    %c64_i32 = arith.constant 64 : i32
    %3 = arith.muli %arg1, %c64_i32 : i32
    %4 = tpu.assume_multiple %3, 64 : i32
    %5 = arith.index_cast %4 : i32 to index
    %c0 = arith.constant 0 : index
    %6 = vector.load %arg12[%5, %c0] : memref<64x64xbf16, #tpu.memory_space<vmem>>, vector<64x32xbf16>
    %c0_1 = arith.constant 0 : index
    %c0_2 = arith.constant 0 : index
    %7 = vector.load %arg13[%c0_1, %c0_2] : memref<64x64xbf16, #tpu.memory_space<vmem>>, vector<64x32xbf16>
    %c0_3 = arith.constant 0 : index
    %c0_4 = arith.constant 0 : index
    %8 = vector.load %arg14[%c0_3, %c0_4] : memref<64x64xbf16, #tpu.memory_space<vmem>>, vector<64x32xbf16>
    %cst = arith.constant dense<0.000000e+00> : vector<64x64xf32>
    %9 = tpu.matmul %6, %7, %cst {dimension_numbers = #tpu.dot_dimension_numbers<[1], [1], [0], [0], [0, 0, 1, 0], [], []>} : vector<64x32xbf16>, vector<64x32xbf16>, vector<64x64xf32> -> vector<64x64xf32>
    %cst_5 = arith.constant dense<0xFF800000> : vector<64xf32>
    %10 = vector.multi_reduction <maximumf>, %9, %cst_5 [1] : vector<64x64xf32> to vector<64xf32>
    %11 = vector.shape_cast %10 : vector<64xf32> to vector<64x1xf32>
    %12 = vector.broadcast %11 : vector<64x1xf32> to vector<64x64xf32>
    %13 = arith.subf %9, %12 : vector<64x64xf32>
    %14 = arith.truncf %13 : vector<64x64xf32> to vector<64x64xbf16>
    %15 = math.exp %14 : vector<64x64xbf16>
    %16 = arith.extf %15 : vector<64x64xbf16> to vector<64x64xf32>
    %cst_6 = arith.constant dense<0.000000e+00> : vector<64xf32>
    %17 = vector.multi_reduction <add>, %16, %cst_6 [1] : vector<64x64xf32> to vector<64xf32>
    %18 = vector.shape_cast %17 : vector<64xf32> to vector<64x1xf32>
    %cst_7 = arith.constant dense<0.000000e+00> : vector<64x32xf32>
    %19 = tpu.matmul %15, %8, %cst_7 {dimension_numbers = #tpu.dot_dimension_numbers<[1], [0], [0], [1], [0, 0, 1, 1], [], []>} : vector<64x64xbf16>, vector<64x32xbf16>, vector<64x32xf32> -> vector<64x32xf32>
    %20 = tpu.reciprocal %18 {approx = true} : vector<64x1xf32> -> vector<64x1xf32>
    %21 = vector.broadcast %20 : vector<64x1xf32> to vector<64x32xf32>
    %22 = arith.mulf %19, %21 : vector<64x32xf32>
    %23 = arith.truncf %22 : vector<64x32xf32> to vector<64x32xbf16>
    %c0_8 = arith.constant 0 : index
    %c0_9 = arith.constant 0 : index
    %24 = vector.load %arg15[%c0_8, %c0_9] : memref<64x64xbf16, #tpu.memory_space<vmem>>, vector<64x32xbf16>
    tpu.vector_store %arg15[%c0_8, %c0_9], %23 {strides = array<i32>} : memref<64x64xbf16, #tpu.memory_space<vmem>>, vector<64x32xbf16>,
    %25 = arith.index_cast %4 : i32 to index
    %c32 = arith.constant 32 : index
    %26 = vector.load %arg12[%25, %c32] : memref<64x64xbf16, #tpu.memory_space<vmem>>, vector<64x32xbf16>
    %c0_10 = arith.constant 0 : index
    %c32_11 = arith.constant 32 : index
    %27 = vector.load %arg13[%c0_10, %c32_11] : memref<64x64xbf16, #tpu.memory_space<vmem>>, vector<64x32xbf16>
    %c0_12 = arith.constant 0 : index
    %c32_13 = arith.constant 32 : index
    %28 = vector.load %arg14[%c0_12, %c32_13] : memref<64x64xbf16, #tpu.memory_space<vmem>>, vector<64x32xbf16>
    %cst_14 = arith.constant dense<0.000000e+00> : vector<64x64xf32>
    %29 = tpu.matmul %26, %27, %cst_14 {dimension_numbers = #tpu.dot_dimension_numbers<[1], [1], [0], [0], [0, 0, 1, 0], [], []>} : vector<64x32xbf16>, vector<64x32xbf16>, vector<64x64xf32> -> vector<64x64xf32>
    %cst_15 = arith.constant dense<0xFF800000> : vector<64xf32>
    %30 = vector.multi_reduction <maximumf>, %29, %cst_15 [1] : vector<64x64xf32> to vector<64xf32>
    %31 = vector.shape_cast %30 : vector<64xf32> to vector<64x1xf32>
    %32 = vector.broadcast %31 : vector<64x1xf32> to vector<64x64xf32>
    %33 = arith.subf %29, %32 : vector<64x64xf32>
    %34 = arith.truncf %33 : vector<64x64xf32> to vector<64x64xbf16>
    %35 = math.exp %34 : vector<64x64xbf16>
    %36 = arith.extf %35 : vector<64x64xbf16> to vector<64x64xf32>
    %cst_16 = arith.constant dense<0.000000e+00> : vector<64xf32>
    %37 = vector.multi_reduction <add>, %36, %cst_16 [1] : vector<64x64xf32> to vector<64xf32>
    %38 = vector.shape_cast %37 : vector<64xf32> to vector<64x1xf32>
    %cst_17 = arith.constant dense<0.000000e+00> : vector<64x32xf32>
    %39 = tpu.matmul %35, %28, %cst_17 {dimension_numbers = #tpu.dot_dimension_numbers<[1], [0], [0], [1], [0, 0, 1, 1], [], []>} : vector<64x64xbf16>, vector<64x32xbf16>, vector<64x32xf32> -> vector<64x32xf32>
    %40 = tpu.reciprocal %38 {approx = true} : vector<64x1xf32> -> vector<64x1xf32>
    %41 = vector.broadcast %40 : vector<64x1xf32> to vector<64x32xf32>
    %42 = arith.mulf %39, %41 : vector<64x32xf32>
    %43 = arith.truncf %42 : vector<64x32xf32> to vector<64x32xbf16>
    %c0_18 = arith.constant 0 : index
    %c32_19 = arith.constant 32 : index
    %44 = vector.load %arg15[%c0_18, %c32_19] : memref<64x64xbf16, #tpu.memory_space<vmem>>, vector<64x32xbf16>
    tpu.vector_store %arg15[%c0_18, %c32_19], %43 {strides = array<i32>} : memref<64x64xbf16, #tpu.memory_space<vmem>>, vector<64x32xbf16>,
    %c0_20 = arith.constant 0 : index
    %c0_21 = arith.constant 0 : index
    %45 = vector.load %arg15[%c0_20, %c0_21] : memref<64x64xbf16, #tpu.memory_space<vmem>>, vector<64x64xbf16>
    %c0_22 = arith.constant 0 : index
    %c0_23 = arith.constant 0 : index
    %46 = vector.load %arg9[%c0_22, %c0_23] : memref<64x64xbf16, #tpu.memory_space<vmem>>, vector<64x64xbf16>
    %cst_24 = arith.constant dense<0.000000e+00> : vector<64x64xf32>
    %47 = tpu.matmul %45, %46, %cst_24 {dimension_numbers = #tpu.dot_dimension_numbers<[1], [0], [0], [1], [0, 0, 1, 1], [], []>} : vector<64x64xbf16>, vector<64x64xbf16>, vector<64x64xf32> -> vector<64x64xf32>
    %c0_25 = arith.constant 0 : index
    %48 = arith.index_cast %4 : i32 to index
    %c0_26 = arith.constant 0 : index
    %49 = vector.load %arg2[%c0_25, %48, %c0_26] : memref<1x64x64xbf16, #tpu.memory_space<vmem>>, vector<1x64x64xbf16>
    %50 = vector.shape_cast %49 : vector<1x64x64xbf16> to vector<64x64xbf16>
    %51 = arith.extf %50 : vector<64x64xbf16> to vector<64x64xf32>
    %52 = arith.addf %51, %47 : vector<64x64xf32>
    %c0_27 = arith.constant 0 : index
    %c0_28 = arith.constant 0 : index
    %53 = vector.load %arg10[%c0_27, %c0_28] : memref<1x64xf32, #tpu.memory_space<vmem>>, vector<1x64xf32>
    %54 = vector.broadcast %53 : vector<1x64xf32> to vector<64x64xf32>
    %55 = arith.addf %52, %54 : vector<64x64xf32>
    %c0_29 = arith.constant 0 : index
    %c0_30 = arith.constant 0 : index
    %c0_31 = arith.constant 0 : index
    %56 = vector.load %arg11[%c0_29, %c0_30, %c0_31] : memref<1x64x64xf32, #tpu.memory_space<vmem>>, vector<1x64x64xf32>
    %57 = vector.shape_cast %56 : vector<1x64x64xf32> to vector<64x64xf32>
    %58 = vector.shape_cast %55 : vector<64x64xf32> to vector<1x64x64xf32>
    tpu.vector_store %arg11[%c0_29, %c0_30, %c0_31], %58 {strides = array<i32>} : memref<1x64x64xf32, #tpu.memory_space<vmem>>, vector<1x64x64xf32>,
    return
  }
  func.func @transform_0(%arg0: i32, %arg1: i32) -> (i32, i32, i32) {
    %c0_i32 = arith.constant 0 : i32
    %c0_i32_0 = arith.constant 0 : i32
    %c0_i32_1 = arith.constant 0 : i32
    return %arg0, %c0_i32, %c0_i32_0 : i32, i32, i32
  }
  func.func @transform_1(%arg0: i32, %arg1: i32) -> (i32, i32) {
    %c0_i32 = arith.constant 0 : i32
    %c0_i32_0 = arith.constant 0 : i32
    %c0_i32_1 = arith.constant 0 : i32
    return %c0_i32, %c0_i32_0 : i32, i32
  }
  func.func @transform_2(%arg0: i32, %arg1: i32) -> (i32, i32) {
    %c0_i32 = arith.constant 0 : i32
    %c0_i32_0 = arith.constant 0 : i32
    %c0_i32_1 = arith.constant 0 : i32
    return %c0_i32, %c0_i32_0 : i32, i32
  }
  func.func @transform_3(%arg0: i32, %arg1: i32) -> (i32, i32) {
    %c0_i32 = arith.constant 0 : i32
    %c0_i32_0 = arith.constant 0 : i32
    %c0_i32_1 = arith.constant 0 : i32
    return %c0_i32, %c0_i32_0 : i32, i32
  }
  func.func @transform_4(%arg0: i32, %arg1: i32) -> (i32, i32) {
    %c0_i32 = arith.constant 0 : i32
    %c0_i32_0 = arith.constant 0 : i32
    %c0_i32_1 = arith.constant 0 : i32
    return %c0_i32, %c0_i32_0 : i32, i32
  }
  func.func @transform_5(%arg0: i32, %arg1: i32) -> (i32, i32) {
    %c0_i32 = arith.constant 0 : i32
    %c0_i32_0 = arith.constant 0 : i32
    %c0_i32_1 = arith.constant 0 : i32
    return %c0_i32, %c0_i32_0 : i32, i32
  }
  func.func @transform_6(%arg0: i32, %arg1: i32) -> (i32, i32) {
    %c0_i32 = arith.constant 0 : i32
    %c0_i32_0 = arith.constant 0 : i32
    %c0_i32_1 = arith.constant 0 : i32
    return %c0_i32, %c0_i32_0 : i32, i32
  }
  func.func @transform_7(%arg0: i32, %arg1: i32) -> (i32, i32) {
    %c0_i32 = arith.constant 0 : i32
    %c0_i32_0 = arith.constant 0 : i32
    %c0_i32_1 = arith.constant 0 : i32
    return %c0_i32, %c0_i32_0 : i32, i32
  }
  func.func @transform_8(%arg0: i32, %arg1: i32) -> (i32, i32) {
    %c0_i32 = arith.constant 0 : i32
    %c0_i32_0 = arith.constant 0 : i32
    %c0_i32_1 = arith.constant 0 : i32
    return %c0_i32, %c0_i32_0 : i32, i32
  }
  func.func @transform_9(%arg0: i32, %arg1: i32) -> (i32, i32, i32) {
    %c0_i32 = arith.constant 0 : i32
    %c0_i32_0 = arith.constant 0 : i32
    return %arg0, %arg1, %c0_i32 : i32, i32, i32
  }
}

module attributes {stable_mosaic.version = 11 : i64} {
  func.func @_attention_block_kernel(%arg0: i32, %arg1: i32, %arg2: memref<1x64x64xbf16, #tpu.memory_space<vmem>>, %arg3: memref<1x64xf32, #tpu.memory_space<vmem>>, %arg4: memref<1x64xf32, #tpu.memory_space<vmem>>, %arg5: memref<64x32xf32, #tpu.memory_space<vmem>>, %arg6: memref<32x64xf32, #tpu.memory_space<vmem>>, %arg7: memref<64x192xbf16, #tpu.memory_space<vmem>>, %arg8: memref<1x192xf32, #tpu.memory_space<vmem>>, %arg9: memref<64x64xbf16, #tpu.memory_space<vmem>>, %arg10: memref<1x64xf32, #tpu.memory_space<vmem>>, %arg11: memref<1x64x64xf32, #tpu.memory_space<vmem>>, %arg12: memref<64x64xbf16, #tpu.memory_space<vmem>>, %arg13: memref<64x64xbf16, #tpu.memory_space<vmem>>, %arg14: memref<64x64xbf16, #tpu.memory_space<vmem>>, %arg15: memref<64x64xbf16, #tpu.memory_space<vmem>>) attributes {dimension_semantics = [#tpu.dimension_semantics<parallel>, #tpu.dimension_semantics<arbitrary>], iteration_bounds = array<i64: 2, 1>, scalar_prefetch = 0 : i64, scratch_operands = 4 : i64, tpu.core_type = #tpu.core_type<tc>, window_params = [{transform_indices = @transform_0, window_bounds = array<i64: 1, 64, 64>}, {pipeline_mode = #tpu.pipeline_mode<synchronous>, transform_indices = @transform_1, window_bounds = array<i64: 1, 64>}, {pipeline_mode = #tpu.pipeline_mode<synchronous>, transform_indices = @transform_2, window_bounds = array<i64: 1, 64>}, {pipeline_mode = #tpu.pipeline_mode<synchronous>, transform_indices = @transform_3, window_bounds = array<i64: 64, 32>}, {pipeline_mode = #tpu.pipeline_mode<synchronous>, transform_indices = @transform_4, window_bounds = array<i64: 32, 64>}, {pipeline_mode = #tpu.pipeline_mode<synchronous>, transform_indices = @transform_5, window_bounds = array<i64: 64, 192>}, {pipeline_mode = #tpu.pipeline_mode<synchronous>, transform_indices = @transform_6, window_bounds = array<i64: 1, 192>}, {pipeline_mode = #tpu.pipeline_mode<synchronous>, transform_indices = @transform_7, window_bounds = array<i64: 64, 64>}, {pipeline_mode = #tpu.pipeline_mode<synchronous>, transform_indices = @transform_8, window_bounds = array<i64: 1, 64>}, {transform_indices = @transform_9, window_bounds = array<i64: 1, 64, 64>}]} {
    %c0_i32 = arith.constant 0 : i32
    %0 = arith.cmpi eq, %arg1, %c0_i32 : i32
    %1 = arith.extui %0 : i1 to i32
    %c0_i32_0 = arith.constant 0 : i32
    %2 = arith.cmpi ne, %1, %c0_i32_0 : i32
    scf.if %2 {
      %cst_32 = arith.constant 0.000000e+00 : f32
      %59 = vector.broadcast %cst_32 : f32 to vector<1x64xf32>
      %c0_i32_33 = arith.constant 0 : i32
      %c64_i32_34 = arith.constant 64 : i32
      %60 = arith.muli %c0_i32_33, %c64_i32_34 : i32
      %61 = tpu.assume_multiple %60, 64 : i32
      %c0_35 = arith.constant 0 : index
      %62 = arith.index_cast %61 : i32 to index
      %c0_36 = arith.constant 0 : index
      %63 = vector.load %arg2[%c0_35, %62, %c0_36] : memref<1x64x64xbf16, #tpu.memory_space<vmem>>, vector<1x64x64xbf16>
      %64 = vector.shape_cast %63 : vector<1x64x64xbf16> to vector<64x64xbf16>
      %65 = arith.extf %64 : vector<64x64xbf16> to vector<64x64xf32>
      %cst_37 = arith.constant dense<0.000000e+00> : vector<64xf32>
      %66 = vector.multi_reduction <add>, %65, %cst_37 [0] : vector<64x64xf32> to vector<64xf32>
      %67 = vector.shape_cast %66 : vector<64xf32> to vector<1x64xf32>
      %68 = arith.addf %59, %67 : vector<1x64xf32>
      %c1_i32 = arith.constant 1 : i32
      %c0_38 = arith.constant 0 : index
      %c0_39 = arith.constant 0 : index
      %69 = vector.load %arg5[%c0_38, %c0_39] : memref<64x32xf32, #tpu.memory_space<vmem>>, vector<64x32xf32>
      %cst_40 = arith.constant dense<0.000000e+00> : vector<1x32xf32>
      %70 = tpu.matmul %68, %69, %cst_40 {dimension_numbers = #tpu.dot_dimension_numbers<[1], [0], [0], [1], [0, 0, 1, 1], [], []>} : vector<1x64xf32>, vector<64x32xf32>, vector<1x32xf32> -> vector<1x32xf32>
      %cst_41 = arith.constant 7.812500e-03 : f32
      %71 = vector.broadcast %cst_41 : f32 to vector<1x32xf32>
      %72 = arith.mulf %70, %71 : vector<1x32xf32>
      %c0_42 = arith.constant 0 : index
      %c0_43 = arith.constant 0 : index
      %73 = vector.load %arg6[%c0_42, %c0_43] : memref<32x64xf32, #tpu.memory_space<vmem>>, vector<32x64xf32>
      %cst_44 = arith.constant dense<0.000000e+00> : vector<1x64xf32>
      %74 = tpu.matmul %72, %73, %cst_44 {dimension_numbers = #tpu.dot_dimension_numbers<[1], [0], [0], [1], [0, 0, 1, 1], [], []>} : vector<1x32xf32>, vector<32x64xf32>, vector<1x64xf32> -> vector<1x64xf32>
      %cst_45 = arith.constant 0.000000e+00 : f32
      %75 = vector.broadcast %cst_45 : f32 to vector<1x64xf32>
      %c0_i32_46 = arith.constant 0 : i32
      %c64_i32_47 = arith.constant 64 : i32
      %76 = arith.muli %c0_i32_46, %c64_i32_47 : i32
      %77 = tpu.assume_multiple %76, 64 : i32
      %c0_48 = arith.constant 0 : index
      %78 = arith.index_cast %77 : i32 to index
      %c0_49 = arith.constant 0 : index
      %79 = vector.load %arg2[%c0_48, %78, %c0_49] : memref<1x64x64xbf16, #tpu.memory_space<vmem>>, vector<1x64x64xbf16>
      %80 = vector.shape_cast %79 : vector<1x64x64xbf16> to vector<64x64xbf16>
      %81 = arith.extf %80 : vector<64x64xbf16> to vector<64x64xf32>
      %82 = vector.broadcast %74 : vector<1x64xf32> to vector<64x64xf32>
      %83 = arith.subf %81, %82 : vector<64x64xf32>
      %84 = arith.mulf %83, %83 : vector<64x64xf32>
      %cst_50 = arith.constant dense<0.000000e+00> : vector<64xf32>
      %85 = vector.multi_reduction <add>, %84, %cst_50 [0] : vector<64x64xf32> to vector<64xf32>
      %86 = vector.shape_cast %85 : vector<64xf32> to vector<1x64xf32>
      %87 = arith.addf %75, %86 : vector<1x64xf32>
      %c1_i32_51 = arith.constant 1 : i32
      %c0_52 = arith.constant 0 : index
      %c0_53 = arith.constant 0 : index
      %88 = vector.load %arg5[%c0_52, %c0_53] : memref<64x32xf32, #tpu.memory_space<vmem>>, vector<64x32xf32>
      %cst_54 = arith.constant dense<0.000000e+00> : vector<1x32xf32>
      %89 = tpu.matmul %87, %88, %cst_54 {dimension_numbers = #tpu.dot_dimension_numbers<[1], [0], [0], [1], [0, 0, 1, 1], [], []>} : vector<1x64xf32>, vector<64x32xf32>, vector<1x32xf32> -> vector<1x32xf32>
      %cst_55 = arith.constant 7.812500e-03 : f32
      %90 = vector.broadcast %cst_55 : f32 to vector<1x32xf32>
      %91 = arith.mulf %89, %90 : vector<1x32xf32>
      %cst_56 = arith.constant 9.99999974E-6 : f32
      %92 = vector.broadcast %cst_56 : f32 to vector<1x32xf32>
      %93 = arith.addf %91, %92 : vector<1x32xf32>
      %94 = math.rsqrt %93 : vector<1x32xf32>
      %c0_57 = arith.constant 0 : index
      %c0_58 = arith.constant 0 : index
      %95 = vector.load %arg6[%c0_57, %c0_58] : memref<32x64xf32, #tpu.memory_space<vmem>>, vector<32x64xf32>
      %cst_59 = arith.constant dense<0.000000e+00> : vector<1x64xf32>
      %96 = tpu.matmul %94, %95, %cst_59 {dimension_numbers = #tpu.dot_dimension_numbers<[1], [0], [0], [1], [0, 0, 1, 1], [], []>} : vector<1x32xf32>, vector<32x64xf32>, vector<1x64xf32> -> vector<1x64xf32>
      %c0_i32_60 = arith.constant 0 : i32
      %c64_i32_61 = arith.constant 64 : i32
      %97 = arith.muli %c0_i32_60, %c64_i32_61 : i32
      %98 = tpu.assume_multiple %97, 64 : i32
      %c0_62 = arith.constant 0 : index
      %99 = arith.index_cast %98 : i32 to index
      %c0_63 = arith.constant 0 : index
      %100 = vector.load %arg2[%c0_62, %99, %c0_63] : memref<1x64x64xbf16, #tpu.memory_space<vmem>>, vector<1x64x64xbf16>
      %101 = vector.shape_cast %100 : vector<1x64x64xbf16> to vector<64x64xbf16>
      %102 = arith.extf %101 : vector<64x64xbf16> to vector<64x64xf32>
      %103 = vector.broadcast %74 : vector<1x64xf32> to vector<64x64xf32>
      %104 = arith.subf %102, %103 : vector<64x64xf32>
      %105 = vector.broadcast %96 : vector<1x64xf32> to vector<64x64xf32>
      %106 = arith.mulf %104, %105 : vector<64x64xf32>
      %c0_64 = arith.constant 0 : index
      %c0_65 = arith.constant 0 : index
      %107 = vector.load %arg3[%c0_64, %c0_65] : memref<1x64xf32, #tpu.memory_space<vmem>>, vector<1x64xf32>
      %108 = vector.broadcast %107 : vector<1x64xf32> to vector<64x64xf32>
      %109 = arith.mulf %106, %108 : vector<64x64xf32>
      %c0_66 = arith.constant 0 : index
      %c0_67 = arith.constant 0 : index
      %110 = vector.load %arg4[%c0_66, %c0_67] : memref<1x64xf32, #tpu.memory_space<vmem>>, vector<1x64xf32>
      %111 = vector.broadcast %110 : vector<1x64xf32> to vector<64x64xf32>
      %112 = arith.addf %109, %111 : vector<64x64xf32>
      %113 = arith.truncf %112 : vector<64x64xf32> to vector<64x64xbf16>
      %c0_68 = arith.constant 0 : index
      %c0_69 = arith.constant 0 : index
      %114 = vector.load %arg7[%c0_68, %c0_69] : memref<64x192xbf16, #tpu.memory_space<vmem>>, vector<64x192xbf16>
      %cst_70 = arith.constant dense<0.000000e+00> : vector<64x192xf32>
      %115 = tpu.matmul %113, %114, %cst_70 {dimension_numbers = #tpu.dot_dimension_numbers<[1], [0], [0], [1], [0, 0, 1, 1], [], []>} : vector<64x64xbf16>, vector<64x192xbf16>, vector<64x192xf32> -> vector<64x192xf32>
      %c0_71 = arith.constant 0 : index
      %c0_72 = arith.constant 0 : index
      %116 = vector.load %arg8[%c0_71, %c0_72] : memref<1x192xf32, #tpu.memory_space<vmem>>, vector<1x192xf32>
      %117 = vector.broadcast %116 : vector<1x192xf32> to vector<64x192xf32>
      %118 = arith.addf %115, %117 : vector<64x192xf32>
      %119 = vector.extract_strided_slice %118 {offsets = [0, 0], sizes = [64, 64], strides = [1, 1]} : vector<64x192xf32> to vector<64x64xf32>
      %cst_73 = arith.constant 0.420448214 : f32
      %120 = vector.broadcast %cst_73 : f32 to vector<64x64xf32>
      %121 = arith.mulf %119, %120 : vector<64x64xf32>
      %122 = arith.truncf %121 : vector<64x64xf32> to vector<64x64xbf16>
      %123 = arith.index_cast %98 : i32 to index
      %c0_74 = arith.constant 0 : index
      %124 = vector.load %arg12[%123, %c0_74] : memref<64x64xbf16, #tpu.memory_space<vmem>>, vector<64x64xbf16>
      tpu.vector_store %arg12[%123, %c0_74], %122 {strides = array<i32>} : memref<64x64xbf16, #tpu.memory_space<vmem>>, vector<64x64xbf16>,
      %125 = vector.extract_strided_slice %118 {offsets = [0, 64], sizes = [64, 64], strides = [1, 1]} : vector<64x192xf32> to vector<64x64xf32>
      %cst_75 = arith.constant 0.420448214 : f32
      %126 = vector.broadcast %cst_75 : f32 to vector<64x64xf32>
      %127 = arith.mulf %125, %126 : vector<64x64xf32>
      %128 = arith.truncf %127 : vector<64x64xf32> to vector<64x64xbf16>
      %129 = arith.index_cast %98 : i32 to index
      %c0_76 = arith.constant 0 : index
      %130 = vector.load %arg13[%129, %c0_76] : memref<64x64xbf16, #tpu.memory_space<vmem>>, vector<64x64xbf16>
      tpu.vector_store %arg13[%129, %c0_76], %128 {strides = array<i32>} : memref<64x64xbf16, #tpu.memory_space<vmem>>, vector<64x64xbf16>,
      %131 = vector.extract_strided_slice %118 {offsets = [0, 128], sizes = [64, 64], strides = [1, 1]} : vector<64x192xf32> to vector<64x64xf32>
      %132 = arith.truncf %131 : vector<64x64xf32> to vector<64x64xbf16>
      %133 = arith.index_cast %98 : i32 to index
      %c0_77 = arith.constant 0 : index
      %134 = vector.load %arg14[%133, %c0_77] : memref<64x64xbf16, #tpu.memory_space<vmem>>, vector<64x64xbf16>
      tpu.vector_store %arg14[%133, %c0_77], %132 {strides = array<i32>} : memref<64x64xbf16, #tpu.memory_space<vmem>>, vector<64x64xbf16>,
      %c1_i32_78 = arith.constant 1 : i32
    } else {
    }
    %c64_i32 = arith.constant 64 : i32
    %3 = arith.muli %arg1, %c64_i32 : i32
    %4 = tpu.assume_multiple %3, 64 : i32
    %5 = arith.index_cast %4 : i32 to index
    %c0 = arith.constant 0 : index
    %6 = vector.load %arg12[%5, %c0] : memref<64x64xbf16, #tpu.memory_space<vmem>>, vector<64x32xbf16>
    %c0_1 = arith.constant 0 : index
    %c0_2 = arith.constant 0 : index
    %7 = vector.load %arg13[%c0_1, %c0_2] : memref<64x64xbf16, #tpu.memory_space<vmem>>, vector<64x32xbf16>
    %c0_3 = arith.constant 0 : index
    %c0_4 = arith.constant 0 : index
    %8 = vector.load %arg14[%c0_3, %c0_4] : memref<64x64xbf16, #tpu.memory_space<vmem>>, vector<64x32xbf16>
    %cst = arith.constant dense<0.000000e+00> : vector<64x64xf32>
    %9 = tpu.matmul %6, %7, %cst {dimension_numbers = #tpu.dot_dimension_numbers<[1], [1], [0], [0], [0, 0, 1, 0], [], []>} : vector<64x32xbf16>, vector<64x32xbf16>, vector<64x64xf32> -> vector<64x64xf32>
    %cst_5 = arith.constant dense<0xFF800000> : vector<64xf32>
    %10 = vector.multi_reduction <maximumf>, %9, %cst_5 [1] : vector<64x64xf32> to vector<64xf32>
    %11 = vector.shape_cast %10 : vector<64xf32> to vector<64x1xf32>
    %12 = vector.broadcast %11 : vector<64x1xf32> to vector<64x64xf32>
    %13 = arith.subf %9, %12 : vector<64x64xf32>
    %14 = arith.truncf %13 : vector<64x64xf32> to vector<64x64xbf16>
    %15 = math.exp %14 : vector<64x64xbf16>
    %16 = arith.extf %15 : vector<64x64xbf16> to vector<64x64xf32>
    %cst_6 = arith.constant dense<0.000000e+00> : vector<64xf32>
    %17 = vector.multi_reduction <add>, %16, %cst_6 [1] : vector<64x64xf32> to vector<64xf32>
    %18 = vector.shape_cast %17 : vector<64xf32> to vector<64x1xf32>
    %cst_7 = arith.constant dense<0.000000e+00> : vector<64x32xf32>
    %19 = tpu.matmul %15, %8, %cst_7 {dimension_numbers = #tpu.dot_dimension_numbers<[1], [0], [0], [1], [0, 0, 1, 1], [], []>} : vector<64x64xbf16>, vector<64x32xbf16>, vector<64x32xf32> -> vector<64x32xf32>
    %20 = tpu.reciprocal %18 {approx = true} : vector<64x1xf32> -> vector<64x1xf32>
    %21 = vector.broadcast %20 : vector<64x1xf32> to vector<64x32xf32>
    %22 = arith.mulf %19, %21 : vector<64x32xf32>
    %23 = arith.truncf %22 : vector<64x32xf32> to vector<64x32xbf16>
    %c0_8 = arith.constant 0 : index
    %c0_9 = arith.constant 0 : index
    %24 = vector.load %arg15[%c0_8, %c0_9] : memref<64x64xbf16, #tpu.memory_space<vmem>>, vector<64x32xbf16>
    tpu.vector_store %arg15[%c0_8, %c0_9], %23 {strides = array<i32>} : memref<64x64xbf16, #tpu.memory_space<vmem>>, vector<64x32xbf16>,
    %25 = arith.index_cast %4 : i32 to index
    %c32 = arith.constant 32 : index
    %26 = vector.load %arg12[%25, %c32] : memref<64x64xbf16, #tpu.memory_space<vmem>>, vector<64x32xbf16>
    %c0_10 = arith.constant 0 : index
    %c32_11 = arith.constant 32 : index
    %27 = vector.load %arg13[%c0_10, %c32_11] : memref<64x64xbf16, #tpu.memory_space<vmem>>, vector<64x32xbf16>
    %c0_12 = arith.constant 0 : index
    %c32_13 = arith.constant 32 : index
    %28 = vector.load %arg14[%c0_12, %c32_13] : memref<64x64xbf16, #tpu.memory_space<vmem>>, vector<64x32xbf16>
    %cst_14 = arith.constant dense<0.000000e+00> : vector<64x64xf32>
    %29 = tpu.matmul %26, %27, %cst_14 {dimension_numbers = #tpu.dot_dimension_numbers<[1], [1], [0], [0], [0, 0, 1, 0], [], []>} : vector<64x32xbf16>, vector<64x32xbf16>, vector<64x64xf32> -> vector<64x64xf32>
    %cst_15 = arith.constant dense<0xFF800000> : vector<64xf32>
    %30 = vector.multi_reduction <maximumf>, %29, %cst_15 [1] : vector<64x64xf32> to vector<64xf32>
    %31 = vector.shape_cast %30 : vector<64xf32> to vector<64x1xf32>
    %32 = vector.broadcast %31 : vector<64x1xf32> to vector<64x64xf32>
    %33 = arith.subf %29, %32 : vector<64x64xf32>
    %34 = arith.truncf %33 : vector<64x64xf32> to vector<64x64xbf16>
    %35 = math.exp %34 : vector<64x64xbf16>
    %36 = arith.extf %35 : vector<64x64xbf16> to vector<64x64xf32>
    %cst_16 = arith.constant dense<0.000000e+00> : vector<64xf32>
    %37 = vector.multi_reduction <add>, %36, %cst_16 [1] : vector<64x64xf32> to vector<64xf32>
    %38 = vector.shape_cast %37 : vector<64xf32> to vector<64x1xf32>
    %cst_17 = arith.constant dense<0.000000e+00> : vector<64x32xf32>
    %39 = tpu.matmul %35, %28, %cst_17 {dimension_numbers = #tpu.dot_dimension_numbers<[1], [0], [0], [1], [0, 0, 1, 1], [], []>} : vector<64x64xbf16>, vector<64x32xbf16>, vector<64x32xf32> -> vector<64x32xf32>
    %40 = tpu.reciprocal %38 {approx = true} : vector<64x1xf32> -> vector<64x1xf32>
    %41 = vector.broadcast %40 : vector<64x1xf32> to vector<64x32xf32>
    %42 = arith.mulf %39, %41 : vector<64x32xf32>
    %43 = arith.truncf %42 : vector<64x32xf32> to vector<64x32xbf16>
    %c0_18 = arith.constant 0 : index
    %c32_19 = arith.constant 32 : index
    %44 = vector.load %arg15[%c0_18, %c32_19] : memref<64x64xbf16, #tpu.memory_space<vmem>>, vector<64x32xbf16>
    tpu.vector_store %arg15[%c0_18, %c32_19], %43 {strides = array<i32>} : memref<64x64xbf16, #tpu.memory_space<vmem>>, vector<64x32xbf16>,
    %c0_20 = arith.constant 0 : index
    %c0_21 = arith.constant 0 : index
    %45 = vector.load %arg15[%c0_20, %c0_21] : memref<64x64xbf16, #tpu.memory_space<vmem>>, vector<64x64xbf16>
    %c0_22 = arith.constant 0 : index
    %c0_23 = arith.constant 0 : index
    %46 = vector.load %arg9[%c0_22, %c0_23] : memref<64x64xbf16, #tpu.memory_space<vmem>>, vector<64x64xbf16>
    %cst_24 = arith.constant dense<0.000000e+00> : vector<64x64xf32>
    %47 = tpu.matmul %45, %46, %cst_24 {dimension_numbers = #tpu.dot_dimension_numbers<[1], [0], [0], [1], [0, 0, 1, 1], [], []>} : vector<64x64xbf16>, vector<64x64xbf16>, vector<64x64xf32> -> vector<64x64xf32>
    %c0_25 = arith.constant 0 : index
    %48 = arith.index_cast %4 : i32 to index
    %c0_26 = arith.constant 0 : index
    %49 = vector.load %arg2[%c0_25, %48, %c0_26] : memref<1x64x64xbf16, #tpu.memory_space<vmem>>, vector<1x64x64xbf16>
    %50 = vector.shape_cast %49 : vector<1x64x64xbf16> to vector<64x64xbf16>
    %51 = arith.extf %50 : vector<64x64xbf16> to vector<64x64xf32>
    %52 = arith.addf %51, %47 : vector<64x64xf32>
    %c0_27 = arith.constant 0 : index
    %c0_28 = arith.constant 0 : index
    %53 = vector.load %arg10[%c0_27, %c0_28] : memref<1x64xf32, #tpu.memory_space<vmem>>, vector<1x64xf32>
    %54 = vector.broadcast %53 : vector<1x64xf32> to vector<64x64xf32>
    %55 = arith.addf %52, %54 : vector<64x64xf32>
    %c0_29 = arith.constant 0 : index
    %c0_30 = arith.constant 0 : index
    %c0_31 = arith.constant 0 : index
    %56 = vector.load %arg11[%c0_29, %c0_30, %c0_31] : memref<1x64x64xf32, #tpu.memory_space<vmem>>, vector<1x64x64xf32>
    %57 = vector.shape_cast %56 : vector<1x64x64xf32> to vector<64x64xf32>
    %58 = vector.shape_cast %55 : vector<64x64xf32> to vector<1x64x64xf32>
    tpu.vector_store %arg11[%c0_29, %c0_30, %c0_31], %58 {strides = array<i32>} : memref<1x64x64xf32, #tpu.memory_space<vmem>>, vector<1x64x64xf32>,
    return
  }
  func.func @transform_0(%arg0: i32, %arg1: i32) -> (i32, i32, i32) {
    %c0_i32 = arith.constant 0 : i32
    %c0_i32_0 = arith.constant 0 : i32
    %c0_i32_1 = arith.constant 0 : i32
    return %arg0, %c0_i32, %c0_i32_0 : i32, i32, i32
  }
  func.func @transform_1(%arg0: i32, %arg1: i32) -> (i32, i32) {
    %c0_i32 = arith.constant 0 : i32
    %c0_i32_0 = arith.constant 0 : i32
    %c0_i32_1 = arith.constant 0 : i32
    return %c0_i32, %c0_i32_0 : i32, i32
  }
  func.func @transform_2(%arg0: i32, %arg1: i32) -> (i32, i32) {
    %c0_i32 = arith.constant 0 : i32
    %c0_i32_0 = arith.constant 0 : i32
    %c0_i32_1 = arith.constant 0 : i32
    return %c0_i32, %c0_i32_0 : i32, i32
  }
  func.func @transform_3(%arg0: i32, %arg1: i32) -> (i32, i32) {
    %c0_i32 = arith.constant 0 : i32
    %c0_i32_0 = arith.constant 0 : i32
    %c0_i32_1 = arith.constant 0 : i32
    return %c0_i32, %c0_i32_0 : i32, i32
  }
  func.func @transform_4(%arg0: i32, %arg1: i32) -> (i32, i32) {
    %c0_i32 = arith.constant 0 : i32
    %c0_i32_0 = arith.constant 0 : i32
    %c0_i32_1 = arith.constant 0 : i32
    return %c0_i32, %c0_i32_0 : i32, i32
  }
  func.func @transform_5(%arg0: i32, %arg1: i32) -> (i32, i32) {
    %c0_i32 = arith.constant 0 : i32
    %c0_i32_0 = arith.constant 0 : i32
    %c0_i32_1 = arith.constant 0 : i32
    return %c0_i32, %c0_i32_0 : i32, i32
  }
  func.func @transform_6(%arg0: i32, %arg1: i32) -> (i32, i32) {
    %c0_i32 = arith.constant 0 : i32
    %c0_i32_0 = arith.constant 0 : i32
    %c0_i32_1 = arith.constant 0 : i32
    return %c0_i32, %c0_i32_0 : i32, i32
  }
  func.func @transform_7(%arg0: i32, %arg1: i32) -> (i32, i32) {
    %c0_i32 = arith.constant 0 : i32
    %c0_i32_0 = arith.constant 0 : i32
    %c0_i32_1 = arith.constant 0 : i32
    return %c0_i32, %c0_i32_0 : i32, i32
  }
  func.func @transform_8(%arg0: i32, %arg1: i32) -> (i32, i32) {
    %c0_i32 = arith.constant 0 : i32
    %c0_i32_0 = arith.constant 0 : i32
    %c0_i32_1 = arith.constant 0 : i32
    return %c0_i32, %c0_i32_0 : i32, i32
  }
  func.func @transform_9(%arg0: i32, %arg1: i32) -> (i32, i32, i32) {
    %c0_i32 = arith.constant 0 : i32
    %c0_i32_0 = arith.constant 0 : i32
    return %arg0, %arg1, %c0_i32 : i32, i32, i32
  }
}

module attributes {stable_mosaic.version = 11 : i64} {
  func.func @_attention_block_kernel(%arg0: i32, %arg1: i32, %arg2: memref<1x64x64xbf16, #tpu.memory_space<vmem>>, %arg3: memref<1x64xf32, #tpu.memory_space<vmem>>, %arg4: memref<1x64xf32, #tpu.memory_space<vmem>>, %arg5: memref<64x32xf32, #tpu.memory_space<vmem>>, %arg6: memref<32x64xf32, #tpu.memory_space<vmem>>, %arg7: memref<64x192xbf16, #tpu.memory_space<vmem>>, %arg8: memref<1x192xf32, #tpu.memory_space<vmem>>, %arg9: memref<64x64xbf16, #tpu.memory_space<vmem>>, %arg10: memref<1x64xf32, #tpu.memory_space<vmem>>, %arg11: memref<1x64x64xf32, #tpu.memory_space<vmem>>, %arg12: memref<64x64xbf16, #tpu.memory_space<vmem>>, %arg13: memref<64x64xbf16, #tpu.memory_space<vmem>>, %arg14: memref<64x64xbf16, #tpu.memory_space<vmem>>, %arg15: memref<64x64xbf16, #tpu.memory_space<vmem>>) attributes {dimension_semantics = [#tpu.dimension_semantics<parallel>, #tpu.dimension_semantics<arbitrary>], iteration_bounds = array<i64: 2, 1>, scalar_prefetch = 0 : i64, scratch_operands = 4 : i64, tpu.core_type = #tpu.core_type<tc>, window_params = [{transform_indices = @transform_0, window_bounds = array<i64: 1, 64, 64>}, {pipeline_mode = #tpu.pipeline_mode<synchronous>, transform_indices = @transform_1, window_bounds = array<i64: 1, 64>}, {pipeline_mode = #tpu.pipeline_mode<synchronous>, transform_indices = @transform_2, window_bounds = array<i64: 1, 64>}, {pipeline_mode = #tpu.pipeline_mode<synchronous>, transform_indices = @transform_3, window_bounds = array<i64: 64, 32>}, {pipeline_mode = #tpu.pipeline_mode<synchronous>, transform_indices = @transform_4, window_bounds = array<i64: 32, 64>}, {pipeline_mode = #tpu.pipeline_mode<synchronous>, transform_indices = @transform_5, window_bounds = array<i64: 64, 192>}, {pipeline_mode = #tpu.pipeline_mode<synchronous>, transform_indices = @transform_6, window_bounds = array<i64: 1, 192>}, {pipeline_mode = #tpu.pipeline_mode<synchronous>, transform_indices = @transform_7, window_bounds = array<i64: 64, 64>}, {pipeline_mode = #tpu.pipeline_mode<synchronous>, transform_indices = @transform_8, window_bounds = array<i64: 1, 64>}, {transform_indices = @transform_9, window_bounds = array<i64: 1, 64, 64>}]} {
    %c0_i32 = arith.constant 0 : i32
    %0 = arith.cmpi eq, %arg1, %c0_i32 : i32
    %1 = arith.extui %0 : i1 to i32
    %c0_i32_0 = arith.constant 0 : i32
    %2 = arith.cmpi ne, %1, %c0_i32_0 : i32
    scf.if %2 {
      %cst_32 = arith.constant 0.000000e+00 : f32
      %59 = vector.broadcast %cst_32 : f32 to vector<1x64xf32>
      %c0_i32_33 = arith.constant 0 : i32
      %c64_i32_34 = arith.constant 64 : i32
      %60 = arith.muli %c0_i32_33, %c64_i32_34 : i32
      %61 = tpu.assume_multiple %60, 64 : i32
      %c0_35 = arith.constant 0 : index
      %62 = arith.index_cast %61 : i32 to index
      %c0_36 = arith.constant 0 : index
      %63 = vector.load %arg2[%c0_35, %62, %c0_36] : memref<1x64x64xbf16, #tpu.memory_space<vmem>>, vector<1x64x64xbf16>
      %64 = vector.shape_cast %63 : vector<1x64x64xbf16> to vector<64x64xbf16>
      %65 = arith.extf %64 : vector<64x64xbf16> to vector<64x64xf32>
      %cst_37 = arith.constant dense<0.000000e+00> : vector<64xf32>
      %66 = vector.multi_reduction <add>, %65, %cst_37 [0] : vector<64x64xf32> to vector<64xf32>
      %67 = vector.shape_cast %66 : vector<64xf32> to vector<1x64xf32>
      %68 = arith.addf %59, %67 : vector<1x64xf32>
      %c1_i32 = arith.constant 1 : i32
      %c0_38 = arith.constant 0 : index
      %c0_39 = arith.constant 0 : index
      %69 = vector.load %arg5[%c0_38, %c0_39] : memref<64x32xf32, #tpu.memory_space<vmem>>, vector<64x32xf32>
      %cst_40 = arith.constant dense<0.000000e+00> : vector<1x32xf32>
      %70 = tpu.matmul %68, %69, %cst_40 {dimension_numbers = #tpu.dot_dimension_numbers<[1], [0], [0], [1], [0, 0, 1, 1], [], []>} : vector<1x64xf32>, vector<64x32xf32>, vector<1x32xf32> -> vector<1x32xf32>
      %cst_41 = arith.constant 7.812500e-03 : f32
      %71 = vector.broadcast %cst_41 : f32 to vector<1x32xf32>
      %72 = arith.mulf %70, %71 : vector<1x32xf32>
      %c0_42 = arith.constant 0 : index
      %c0_43 = arith.constant 0 : index
      %73 = vector.load %arg6[%c0_42, %c0_43] : memref<32x64xf32, #tpu.memory_space<vmem>>, vector<32x64xf32>
      %cst_44 = arith.constant dense<0.000000e+00> : vector<1x64xf32>
      %74 = tpu.matmul %72, %73, %cst_44 {dimension_numbers = #tpu.dot_dimension_numbers<[1], [0], [0], [1], [0, 0, 1, 1], [], []>} : vector<1x32xf32>, vector<32x64xf32>, vector<1x64xf32> -> vector<1x64xf32>
      %cst_45 = arith.constant 0.000000e+00 : f32
      %75 = vector.broadcast %cst_45 : f32 to vector<1x64xf32>
      %c0_i32_46 = arith.constant 0 : i32
      %c64_i32_47 = arith.constant 64 : i32
      %76 = arith.muli %c0_i32_46, %c64_i32_47 : i32
      %77 = tpu.assume_multiple %76, 64 : i32
      %c0_48 = arith.constant 0 : index
      %78 = arith.index_cast %77 : i32 to index
      %c0_49 = arith.constant 0 : index
      %79 = vector.load %arg2[%c0_48, %78, %c0_49] : memref<1x64x64xbf16, #tpu.memory_space<vmem>>, vector<1x64x64xbf16>
      %80 = vector.shape_cast %79 : vector<1x64x64xbf16> to vector<64x64xbf16>
      %81 = arith.extf %80 : vector<64x64xbf16> to vector<64x64xf32>
      %82 = vector.broadcast %74 : vector<1x64xf32> to vector<64x64xf32>
      %83 = arith.subf %81, %82 : vector<64x64xf32>
      %84 = arith.mulf %83, %83 : vector<64x64xf32>
      %cst_50 = arith.constant dense<0.000000e+00> : vector<64xf32>
      %85 = vector.multi_reduction <add>, %84, %cst_50 [0] : vector<64x64xf32> to vector<64xf32>
      %86 = vector.shape_cast %85 : vector<64xf32> to vector<1x64xf32>
      %87 = arith.addf %75, %86 : vector<1x64xf32>
      %c1_i32_51 = arith.constant 1 : i32
      %c0_52 = arith.constant 0 : index
      %c0_53 = arith.constant 0 : index
      %88 = vector.load %arg5[%c0_52, %c0_53] : memref<64x32xf32, #tpu.memory_space<vmem>>, vector<64x32xf32>
      %cst_54 = arith.constant dense<0.000000e+00> : vector<1x32xf32>
      %89 = tpu.matmul %87, %88, %cst_54 {dimension_numbers = #tpu.dot_dimension_numbers<[1], [0], [0], [1], [0, 0, 1, 1], [], []>} : vector<1x64xf32>, vector<64x32xf32>, vector<1x32xf32> -> vector<1x32xf32>
      %cst_55 = arith.constant 7.812500e-03 : f32
      %90 = vector.broadcast %cst_55 : f32 to vector<1x32xf32>
      %91 = arith.mulf %89, %90 : vector<1x32xf32>
      %cst_56 = arith.constant 9.99999974E-6 : f32
      %92 = vector.broadcast %cst_56 : f32 to vector<1x32xf32>
      %93 = arith.addf %91, %92 : vector<1x32xf32>
      %94 = math.rsqrt %93 : vector<1x32xf32>
      %c0_57 = arith.constant 0 : index
      %c0_58 = arith.constant 0 : index
      %95 = vector.load %arg6[%c0_57, %c0_58] : memref<32x64xf32, #tpu.memory_space<vmem>>, vector<32x64xf32>
      %cst_59 = arith.constant dense<0.000000e+00> : vector<1x64xf32>
      %96 = tpu.matmul %94, %95, %cst_59 {dimension_numbers = #tpu.dot_dimension_numbers<[1], [0], [0], [1], [0, 0, 1, 1], [], []>} : vector<1x32xf32>, vector<32x64xf32>, vector<1x64xf32> -> vector<1x64xf32>
      %c0_i32_60 = arith.constant 0 : i32
      %c64_i32_61 = arith.constant 64 : i32
      %97 = arith.muli %c0_i32_60, %c64_i32_61 : i32
      %98 = tpu.assume_multiple %97, 64 : i32
      %c0_62 = arith.constant 0 : index
      %99 = arith.index_cast %98 : i32 to index
      %c0_63 = arith.constant 0 : index
      %100 = vector.load %arg2[%c0_62, %99, %c0_63] : memref<1x64x64xbf16, #tpu.memory_space<vmem>>, vector<1x64x64xbf16>
      %101 = vector.shape_cast %100 : vector<1x64x64xbf16> to vector<64x64xbf16>
      %102 = arith.extf %101 : vector<64x64xbf16> to vector<64x64xf32>
      %103 = vector.broadcast %74 : vector<1x64xf32> to vector<64x64xf32>
      %104 = arith.subf %102, %103 : vector<64x64xf32>
      %105 = vector.broadcast %96 : vector<1x64xf32> to vector<64x64xf32>
      %106 = arith.mulf %104, %105 : vector<64x64xf32>
      %c0_64 = arith.constant 0 : index
      %c0_65 = arith.constant 0 : index
      %107 = vector.load %arg3[%c0_64, %c0_65] : memref<1x64xf32, #tpu.memory_space<vmem>>, vector<1x64xf32>
      %108 = vector.broadcast %107 : vector<1x64xf32> to vector<64x64xf32>
      %109 = arith.mulf %106, %108 : vector<64x64xf32>
      %c0_66 = arith.constant 0 : index
      %c0_67 = arith.constant 0 : index
      %110 = vector.load %arg4[%c0_66, %c0_67] : memref<1x64xf32, #tpu.memory_space<vmem>>, vector<1x64xf32>
      %111 = vector.broadcast %110 : vector<1x64xf32> to vector<64x64xf32>
      %112 = arith.addf %109, %111 : vector<64x64xf32>
      %113 = arith.truncf %112 : vector<64x64xf32> to vector<64x64xbf16>
      %c0_68 = arith.constant 0 : index
      %c0_69 = arith.constant 0 : index
      %114 = vector.load %arg7[%c0_68, %c0_69] : memref<64x192xbf16, #tpu.memory_space<vmem>>, vector<64x192xbf16>
      %cst_70 = arith.constant dense<0.000000e+00> : vector<64x192xf32>
      %115 = tpu.matmul %113, %114, %cst_70 {dimension_numbers = #tpu.dot_dimension_numbers<[1], [0], [0], [1], [0, 0, 1, 1], [], []>} : vector<64x64xbf16>, vector<64x192xbf16>, vector<64x192xf32> -> vector<64x192xf32>
      %c0_71 = arith.constant 0 : index
      %c0_72 = arith.constant 0 : index
      %116 = vector.load %arg8[%c0_71, %c0_72] : memref<1x192xf32, #tpu.memory_space<vmem>>, vector<1x192xf32>
      %117 = vector.broadcast %116 : vector<1x192xf32> to vector<64x192xf32>
      %118 = arith.addf %115, %117 : vector<64x192xf32>
      %119 = vector.extract_strided_slice %118 {offsets = [0, 0], sizes = [64, 64], strides = [1, 1]} : vector<64x192xf32> to vector<64x64xf32>
      %cst_73 = arith.constant 0.420448214 : f32
      %120 = vector.broadcast %cst_73 : f32 to vector<64x64xf32>
      %121 = arith.mulf %119, %120 : vector<64x64xf32>
      %122 = arith.truncf %121 : vector<64x64xf32> to vector<64x64xbf16>
      %123 = arith.index_cast %98 : i32 to index
      %c0_74 = arith.constant 0 : index
      %124 = vector.load %arg12[%123, %c0_74] : memref<64x64xbf16, #tpu.memory_space<vmem>>, vector<64x64xbf16>
      tpu.vector_store %arg12[%123, %c0_74], %122 {strides = array<i32>} : memref<64x64xbf16, #tpu.memory_space<vmem>>, vector<64x64xbf16>,
      %125 = vector.extract_strided_slice %118 {offsets = [0, 64], sizes = [64, 64], strides = [1, 1]} : vector<64x192xf32> to vector<64x64xf32>
      %cst_75 = arith.constant 0.420448214 : f32
      %126 = vector.broadcast %cst_75 : f32 to vector<64x64xf32>
      %127 = arith.mulf %125, %126 : vector<64x64xf32>
      %128 = arith.truncf %127 : vector<64x64xf32> to vector<64x64xbf16>
      %129 = arith.index_cast %98 : i32 to index
      %c0_76 = arith.constant 0 : index
      %130 = vector.load %arg13[%129, %c0_76] : memref<64x64xbf16, #tpu.memory_space<vmem>>, vector<64x64xbf16>
      tpu.vector_store %arg13[%129, %c0_76], %128 {strides = array<i32>} : memref<64x64xbf16, #tpu.memory_space<vmem>>, vector<64x64xbf16>,
      %131 = vector.extract_strided_slice %118 {offsets = [0, 128], sizes = [64, 64], strides = [1, 1]} : vector<64x192xf32> to vector<64x64xf32>
      %132 = arith.truncf %131 : vector<64x64xf32> to vector<64x64xbf16>
      %133 = arith.index_cast %98 : i32 to index
      %c0_77 = arith.constant 0 : index
      %134 = vector.load %arg14[%133, %c0_77] : memref<64x64xbf16, #tpu.memory_space<vmem>>, vector<64x64xbf16>
      tpu.vector_store %arg14[%133, %c0_77], %132 {strides = array<i32>} : memref<64x64xbf16, #tpu.memory_space<vmem>>, vector<64x64xbf16>,
      %c1_i32_78 = arith.constant 1 : i32
    } else {
    }
    %c64_i32 = arith.constant 64 : i32
    %3 = arith.muli %arg1, %c64_i32 : i32
    %4 = tpu.assume_multiple %3, 64 : i32
    %5 = arith.index_cast %4 : i32 to index
    %c0 = arith.constant 0 : index
    %6 = vector.load %arg12[%5, %c0] : memref<64x64xbf16, #tpu.memory_space<vmem>>, vector<64x32xbf16>
    %c0_1 = arith.constant 0 : index
    %c0_2 = arith.constant 0 : index
    %7 = vector.load %arg13[%c0_1, %c0_2] : memref<64x64xbf16, #tpu.memory_space<vmem>>, vector<64x32xbf16>
    %c0_3 = arith.constant 0 : index
    %c0_4 = arith.constant 0 : index
    %8 = vector.load %arg14[%c0_3, %c0_4] : memref<64x64xbf16, #tpu.memory_space<vmem>>, vector<64x32xbf16>
    %cst = arith.constant dense<0.000000e+00> : vector<64x64xf32>
    %9 = tpu.matmul %6, %7, %cst {dimension_numbers = #tpu.dot_dimension_numbers<[1], [1], [0], [0], [0, 0, 1, 0], [], []>} : vector<64x32xbf16>, vector<64x32xbf16>, vector<64x64xf32> -> vector<64x64xf32>
    %cst_5 = arith.constant dense<0xFF800000> : vector<64xf32>
    %10 = vector.multi_reduction <maximumf>, %9, %cst_5 [1] : vector<64x64xf32> to vector<64xf32>
    %11 = vector.shape_cast %10 : vector<64xf32> to vector<64x1xf32>
    %12 = vector.broadcast %11 : vector<64x1xf32> to vector<64x64xf32>
    %13 = arith.subf %9, %12 : vector<64x64xf32>
    %14 = math.exp %13 : vector<64x64xf32>
    %15 = arith.truncf %14 : vector<64x64xf32> to vector<64x64xbf16>
    %16 = arith.extf %15 : vector<64x64xbf16> to vector<64x64xf32>
    %cst_6 = arith.constant dense<0.000000e+00> : vector<64xf32>
    %17 = vector.multi_reduction <add>, %16, %cst_6 [1] : vector<64x64xf32> to vector<64xf32>
    %18 = vector.shape_cast %17 : vector<64xf32> to vector<64x1xf32>
    %cst_7 = arith.constant dense<0.000000e+00> : vector<64x32xf32>
    %19 = tpu.matmul %15, %8, %cst_7 {dimension_numbers = #tpu.dot_dimension_numbers<[1], [0], [0], [1], [0, 0, 1, 1], [], []>} : vector<64x64xbf16>, vector<64x32xbf16>, vector<64x32xf32> -> vector<64x32xf32>
    %20 = tpu.reciprocal %18 {approx = true} : vector<64x1xf32> -> vector<64x1xf32>
    %21 = vector.broadcast %20 : vector<64x1xf32> to vector<64x32xf32>
    %22 = arith.mulf %19, %21 : vector<64x32xf32>
    %23 = arith.truncf %22 : vector<64x32xf32> to vector<64x32xbf16>
    %c0_8 = arith.constant 0 : index
    %c0_9 = arith.constant 0 : index
    %24 = vector.load %arg15[%c0_8, %c0_9] : memref<64x64xbf16, #tpu.memory_space<vmem>>, vector<64x32xbf16>
    tpu.vector_store %arg15[%c0_8, %c0_9], %23 {strides = array<i32>} : memref<64x64xbf16, #tpu.memory_space<vmem>>, vector<64x32xbf16>,
    %25 = arith.index_cast %4 : i32 to index
    %c32 = arith.constant 32 : index
    %26 = vector.load %arg12[%25, %c32] : memref<64x64xbf16, #tpu.memory_space<vmem>>, vector<64x32xbf16>
    %c0_10 = arith.constant 0 : index
    %c32_11 = arith.constant 32 : index
    %27 = vector.load %arg13[%c0_10, %c32_11] : memref<64x64xbf16, #tpu.memory_space<vmem>>, vector<64x32xbf16>
    %c0_12 = arith.constant 0 : index
    %c32_13 = arith.constant 32 : index
    %28 = vector.load %arg14[%c0_12, %c32_13] : memref<64x64xbf16, #tpu.memory_space<vmem>>, vector<64x32xbf16>
    %cst_14 = arith.constant dense<0.000000e+00> : vector<64x64xf32>
    %29 = tpu.matmul %26, %27, %cst_14 {dimension_numbers = #tpu.dot_dimension_numbers<[1], [1], [0], [0], [0, 0, 1, 0], [], []>} : vector<64x32xbf16>, vector<64x32xbf16>, vector<64x64xf32> -> vector<64x64xf32>
    %cst_15 = arith.constant dense<0xFF800000> : vector<64xf32>
    %30 = vector.multi_reduction <maximumf>, %29, %cst_15 [1] : vector<64x64xf32> to vector<64xf32>
    %31 = vector.shape_cast %30 : vector<64xf32> to vector<64x1xf32>
    %32 = vector.broadcast %31 : vector<64x1xf32> to vector<64x64xf32>
    %33 = arith.subf %29, %32 : vector<64x64xf32>
    %34 = math.exp %33 : vector<64x64xf32>
    %35 = arith.truncf %34 : vector<64x64xf32> to vector<64x64xbf16>
    %36 = arith.extf %35 : vector<64x64xbf16> to vector<64x64xf32>
    %cst_16 = arith.constant dense<0.000000e+00> : vector<64xf32>
    %37 = vector.multi_reduction <add>, %36, %cst_16 [1] : vector<64x64xf32> to vector<64xf32>
    %38 = vector.shape_cast %37 : vector<64xf32> to vector<64x1xf32>
    %cst_17 = arith.constant dense<0.000000e+00> : vector<64x32xf32>
    %39 = tpu.matmul %35, %28, %cst_17 {dimension_numbers = #tpu.dot_dimension_numbers<[1], [0], [0], [1], [0, 0, 1, 1], [], []>} : vector<64x64xbf16>, vector<64x32xbf16>, vector<64x32xf32> -> vector<64x32xf32>
    %40 = tpu.reciprocal %38 {approx = true} : vector<64x1xf32> -> vector<64x1xf32>
    %41 = vector.broadcast %40 : vector<64x1xf32> to vector<64x32xf32>
    %42 = arith.mulf %39, %41 : vector<64x32xf32>
    %43 = arith.truncf %42 : vector<64x32xf32> to vector<64x32xbf16>
    %c0_18 = arith.constant 0 : index
    %c32_19 = arith.constant 32 : index
    %44 = vector.load %arg15[%c0_18, %c32_19] : memref<64x64xbf16, #tpu.memory_space<vmem>>, vector<64x32xbf16>
    tpu.vector_store %arg15[%c0_18, %c32_19], %43 {strides = array<i32>} : memref<64x64xbf16, #tpu.memory_space<vmem>>, vector<64x32xbf16>,
    %c0_20 = arith.constant 0 : index
    %c0_21 = arith.constant 0 : index
    %45 = vector.load %arg15[%c0_20, %c0_21] : memref<64x64xbf16, #tpu.memory_space<vmem>>, vector<64x64xbf16>
    %c0_22 = arith.constant 0 : index
    %c0_23 = arith.constant 0 : index
    %46 = vector.load %arg9[%c0_22, %c0_23] : memref<64x64xbf16, #tpu.memory_space<vmem>>, vector<64x64xbf16>
    %cst_24 = arith.constant dense<0.000000e+00> : vector<64x64xf32>
    %47 = tpu.matmul %45, %46, %cst_24 {dimension_numbers = #tpu.dot_dimension_numbers<[1], [0], [0], [1], [0, 0, 1, 1], [], []>} : vector<64x64xbf16>, vector<64x64xbf16>, vector<64x64xf32> -> vector<64x64xf32>
    %c0_25 = arith.constant 0 : index
    %48 = arith.index_cast %4 : i32 to index
    %c0_26 = arith.constant 0 : index
    %49 = vector.load %arg2[%c0_25, %48, %c0_26] : memref<1x64x64xbf16, #tpu.memory_space<vmem>>, vector<1x64x64xbf16>
    %50 = vector.shape_cast %49 : vector<1x64x64xbf16> to vector<64x64xbf16>
    %51 = arith.extf %50 : vector<64x64xbf16> to vector<64x64xf32>
    %52 = arith.addf %51, %47 : vector<64x64xf32>
    %c0_27 = arith.constant 0 : index
    %c0_28 = arith.constant 0 : index
    %53 = vector.load %arg10[%c0_27, %c0_28] : memref<1x64xf32, #tpu.memory_space<vmem>>, vector<1x64xf32>
    %54 = vector.broadcast %53 : vector<1x64xf32> to vector<64x64xf32>
    %55 = arith.addf %52, %54 : vector<64x64xf32>
    %c0_29 = arith.constant 0 : index
    %c0_30 = arith.constant 0 : index
    %c0_31 = arith.constant 0 : index
    %56 = vector.load %arg11[%c0_29, %c0_30, %c0_31] : memref<1x64x64xf32, #tpu.memory_space<vmem>>, vector<1x64x64xf32>
    %57 = vector.shape_cast %56 : vector<1x64x64xf32> to vector<64x64xf32>
    %58 = vector.shape_cast %55 : vector<64x64xf32> to vector<1x64x64xf32>
    tpu.vector_store %arg11[%c0_29, %c0_30, %c0_31], %58 {strides = array<i32>} : memref<1x64x64xf32, #tpu.memory_space<vmem>>, vector<1x64x64xf32>,
    return
  }
  func.func @transform_0(%arg0: i32, %arg1: i32) -> (i32, i32, i32) {
    %c0_i32 = arith.constant 0 : i32
    %c0_i32_0 = arith.constant 0 : i32
    %c0_i32_1 = arith.constant 0 : i32
    return %arg0, %c0_i32, %c0_i32_0 : i32, i32, i32
  }
  func.func @transform_1(%arg0: i32, %arg1: i32) -> (i32, i32) {
    %c0_i32 = arith.constant 0 : i32
    %c0_i32_0 = arith.constant 0 : i32
    %c0_i32_1 = arith.constant 0 : i32
    return %c0_i32, %c0_i32_0 : i32, i32
  }
  func.func @transform_2(%arg0: i32, %arg1: i32) -> (i32, i32) {
    %c0_i32 = arith.constant 0 : i32
    %c0_i32_0 = arith.constant 0 : i32
    %c0_i32_1 = arith.constant 0 : i32
    return %c0_i32, %c0_i32_0 : i32, i32
  }
  func.func @transform_3(%arg0: i32, %arg1: i32) -> (i32, i32) {
    %c0_i32 = arith.constant 0 : i32
    %c0_i32_0 = arith.constant 0 : i32
    %c0_i32_1 = arith.constant 0 : i32
    return %c0_i32, %c0_i32_0 : i32, i32
  }
  func.func @transform_4(%arg0: i32, %arg1: i32) -> (i32, i32) {
    %c0_i32 = arith.constant 0 : i32
    %c0_i32_0 = arith.constant 0 : i32
    %c0_i32_1 = arith.constant 0 : i32
    return %c0_i32, %c0_i32_0 : i32, i32
  }
  func.func @transform_5(%arg0: i32, %arg1: i32) -> (i32, i32) {
    %c0_i32 = arith.constant 0 : i32
    %c0_i32_0 = arith.constant 0 : i32
    %c0_i32_1 = arith.constant 0 : i32
    return %c0_i32, %c0_i32_0 : i32, i32
  }
  func.func @transform_6(%arg0: i32, %arg1: i32) -> (i32, i32) {
    %c0_i32 = arith.constant 0 : i32
    %c0_i32_0 = arith.constant 0 : i32
    %c0_i32_1 = arith.constant 0 : i32
    return %c0_i32, %c0_i32_0 : i32, i32
  }
  func.func @transform_7(%arg0: i32, %arg1: i32) -> (i32, i32) {
    %c0_i32 = arith.constant 0 : i32
    %c0_i32_0 = arith.constant 0 : i32
    %c0_i32_1 = arith.constant 0 : i32
    return %c0_i32, %c0_i32_0 : i32, i32
  }
  func.func @transform_8(%arg0: i32, %arg1: i32) -> (i32, i32) {
    %c0_i32 = arith.constant 0 : i32
    %c0_i32_0 = arith.constant 0 : i32
    %c0_i32_1 = arith.constant 0 : i32
    return %c0_i32, %c0_i32_0 : i32, i32
  }
  func.func @transform_9(%arg0: i32, %arg1: i32) -> (i32, i32, i32) {
    %c0_i32 = arith.constant 0 : i32
    %c0_i32_0 = arith.constant 0 : i32
    return %arg0, %arg1, %c0_i32 : i32, i32, i32
  }
}

</mosaic_0001>

<llo_original>
// kernel: tpu_custom_call.1
$region0: #{tpu_custom_call.1}
  #allocation0 [shape = 'u32[]', space=smem, size = 0x4, offset = 0x4, fixed_abs, tag = 'smem constant byte address 0x4 - core index']
  #allocation1 [shape = 'u32[72,128]{1,0:T(1,128)}', space=vmem, size = 0x9000, scoped, tag = 'internal scratch']
  #allocation2 [shape = 'bf16[64,64]{1,0:T(8,128)(2,1)}', space=vmem, size = 0x4000, scoped, tag = 'scratch operand']
  #allocation3 [shape = 'bf16[64,64]{1,0:T(8,128)(2,1)}', space=vmem, size = 0x4000, scoped, tag = 'scratch operand']
  #allocation4 [shape = 'bf16[64,64]{1,0:T(8,128)(2,1)}', space=vmem, size = 0x4000, scoped, tag = 'scratch operand']
  #allocation5 [shape = 'bf16[64,64]{1,0:T(8,128)(2,1)}', space=vmem, size = 0x4000, scoped, tag = 'scratch operand']
  %s0 = inlined_call_operand.vmem [shape: bf16[2,64,64], index: 0, kind: input, shape index: {}]
  %s1 = inlined_call_operand.hbm [shape: f32[1,64], index: 1, kind: input, shape index: {}]
  %s2 = inlined_call_operand.vmem [shape: f32[1,64], index: 2, kind: input, shape index: {}]
  %s3 = inlined_call_operand.vmem [shape: f32[64,32], index: 3, kind: input, shape index: {}]
  %s4 = inlined_call_operand.vmem [shape: f32[32,64], index: 4, kind: input, shape index: {}]
  %s5 = inlined_call_operand.hbm [shape: bf16[64,192], index: 5, kind: input, shape index: {}]
  %s6 = inlined_call_operand.vmem [shape: f32[1,192], index: 6, kind: input, shape index: {}]
  %s7 = inlined_call_operand.hbm [shape: bf16[64,64], index: 7, kind: input, shape index: {}]
  %s8 = inlined_call_operand.vmem [shape: f32[1,64], index: 8, kind: input, shape index: {}]
  %s9 = inlined_call_operand.hbm [shape: f32[2,64,64], index: 9, kind: output, shape index: {}]
  %s10 = sld [smem:[#allocation0]]
  $region85: #{tpu_custom_call.1} parent=0
    _
  %s12 = ssub.s32 1, %s10
  %s13 = scalar_select 0, %s12, %s10
  $region1: #{tpu_custom_call.1} parent=0
    #allocation6 [shape = 'u8[512]{0}', space=vmem, size = 0x400, scoped, tag = 'input window, operand 1, single buffered']
    #allocation7 [shape = 's32[2]{0}', space=sflag, size = 0x8, scoped, tag = 'scoped memory for tpu_custom_call.1']
    #allocation8 [shape = 's32[2]{0}', space=sflag, size = 0x8, scoped, tag = 'scoped memory for tpu_custom_call.1']
    #allocation9 [shape = 'u8[32768]{0}', space=vmem, size = 0x8000, scoped, tag = 'input window, operand 5, single buffered']
    #allocation10 [shape = 's32[1]{0}', space=sflag, size = 0x4, scoped, tag = 'scoped memory for tpu_custom_call.1']
    #allocation11 [shape = 'u8[16384]{0}', space=vmem, size = 0x4000, scoped, tag = 'input window, operand 7, single buffered']
    #allocation12 [shape = 'u8[65536]{0}', space=vmem, size = 0x10000, scoped, tag = 'output window, operand 0']
    %14 = vsyncpa [#allocation7], 0
    %15 = vsyncpa [#allocation10], 0
    %16 = vsyncpa [#allocation8], 0
    %s17 = scalar_lea.sflag [#allocation8], 1
    %18 = vsyncpa %s17, 0
    loop: start=0, step=1, limit=4
    $region2: #{tpu_custom_call.1} parent=1 // loop_pre_header
      _
    $region3: #{tpu_custom_call.1} parent=1 // loop_header
      %s20 = sphi 0, %s24
      %p21 = scmp.ge.s32.totalorder %s20, 4
      %s27 = sphi 0, %s39
      %s28 = sphi 0, %s35
      %s29 = sphi 0, %s27
      %s30 = sphi 0, %s28
      %s31 = sphi 0, %s29
      %s32 = sphi 0, %s30
      %s42 = sphi 0, %s44
      %s45 = sphi 0, %s42
      %s46 = sphi 0, %s45
      %s62 = sphi 0, %s46
      %s66 = sphi 0, %s66
      %s68 = sphi 0, %s66
      %s69 = sphi 0, %s68
      %s83 = sphi 0, %s69
      %s87 = sphi 0, %s87
      %s89 = sphi 0, %s87
      %s90 = sphi 0, %s89
      %s104 = sphi 0, %s90
      %s108 = sphi 0, %s108
      %s110 = sphi 0, %s108
      %s111 = sphi 0, %s110
      %s125 = sphi 0, %s111
      %s129 = sphi 0, %s129
      %s131 = sphi 0, %s129
      %s132 = sphi 0, %s131
      %s146 = sphi 0, %s132
      %s150 = sphi 0, %s150
      %s152 = sphi 0, %s150
      %s153 = sphi 0, %s152
      %s167 = sphi 0, %s153
      %s171 = sphi 0, %s171
      %s173 = sphi 0, %s171
      %s174 = sphi 0, %s173
      %s188 = sphi 0, %s174
      %s192 = sphi 0, %s192
      %s194 = sphi 0, %s192
      %s195 = sphi 0, %s194
      %s209 = sphi 0, %s195
      %s213 = sphi 0, %s213
      %s215 = sphi 0, %s213
      %s216 = sphi 0, %s215
      %s230 = sphi 0, %s216
      %s238 = sphi 0, %s240
      %s241 = sphi 0, %s238
      %s242 = sphi 0, %s241
      %s258 = sphi 0, %s242
    $region4: #{tpu_custom_call.1} parent=1 // loop_header_branch
      %23 = sbr.rel (%p21) target = $region8
    $region5: #{tpu_custom_call.1} parent=1 // loop_body
      %s25 = ssub.s32 %s20, 1
      %s26 = ssub.s32 %s20, 2
      %s33 = sadd.s32 1, %s28
      %p34 = scmp.ge.s32.totalorder %s33, 1
      %s35 = scalar_select %p34, 0, %s33
      %s36 = sadd.s32 1, %s27
      %s37 = scalar_select %p34, %s36, %s27
      %p38 = scmp.ge.s32.totalorder %s37, 2
      %s39 = scalar_select %p38, 0, %s37
      %s40 = ssub.s32 %s27, %s39
      %p41 = scmp.eq.s32.totalorder %s40, 0
      %s43 = sadd.s32 %s42, 1
      %s44 = scalar_select %p41, %s42, %s43
      %p47 = pneg %p41
      %p48 = scmp.eq.s32.totalorder %s20, 1
      %p49 = por %p47, %p48
      %p50 = scmp.ne.s32.totalorder %s42, %s45
      %p51 = scmp.eq.s32.totalorder %s20, 0
      %p52 = por %p50, %p51
      %p53 = scmp.ne.s32.totalorder %s42, %s45
      %p54 = scmp.eq.s32.totalorder %s25, 1
      %p55 = por %p53, %p54
      %p56 = scmp.ne.s32.totalorder %s45, %s46
      %p57 = scmp.eq.s32.totalorder %s25, 0
      %p58 = por %p56, %p57
      %p59 = scmp.ne.s32.totalorder %s45, %s46
      %p60 = scmp.eq.s32.totalorder %s26, 1
      %p61 = por %p59, %p60
      %p63 = scmp.ne.s32.totalorder %s46, %s62
      %p64 = scmp.eq.s32.totalorder %s26, 0
      %p65 = por %p63, %p64
      %s67 = sadd.s32 %s66, 1
      %p70 = scmp.eq.s32.totalorder %s20, 1
      %p71 = scmp.ne.s32.totalorder %s66, %s68
      %p72 = scmp.eq.s32.totalorder %s20, 0
      %p73 = por %p71, %p72
      %p74 = scmp.ne.s32.totalorder %s66, %s68
      %p75 = scmp.eq.s32.totalorder %s25, 1
      %p76 = por %p74, %p75
      %p77 = scmp.ne.s32.totalorder %s68, %s69
      %p78 = scmp.eq.s32.totalorder %s25, 0
      %p79 = por %p77, %p78
      %p80 = scmp.ne.s32.totalorder %s68, %s69
      %p81 = scmp.eq.s32.totalorder %s26, 1
      %p82 = por %p80, %p81
      %p84 = scmp.ne.s32.totalorder %s69, %s83
      %p85 = scmp.eq.s32.totalorder %s26, 0
      %p86 = por %p84, %p85
      %s88 = sadd.s32 %s87, 1
      %p91 = scmp.eq.s32.totalorder %s20, 1
      %p92 = scmp.ne.s32.totalorder %s87, %s89
      %p93 = scmp.eq.s32.totalorder %s20, 0
      %p94 = por %p92, %p93
      %p95 = scmp.ne.s32.totalorder %s87, %s89
      %p96 = scmp.eq.s32.totalorder %s25, 1
      %p97 = por %p95, %p96
      %p98 = scmp.ne.s32.totalorder %s89, %s90
      %p99 = scmp.eq.s32.totalorder %s25, 0
      %p100 = por %p98, %p99
      %p101 = scmp.ne.s32.totalorder %s89, %s90
      %p102 = scmp.eq.s32.totalorder %s26, 1
      %p103 = por %p101, %p102
      %p105 = scmp.ne.s32.totalorder %s90, %s104
      %p106 = scmp.eq.s32.totalorder %s26, 0
      %p107 = por %p105, %p106
      %s109 = sadd.s32 %s108, 1
      %p112 = scmp.eq.s32.totalorder %s20, 1
      %p113 = scmp.ne.s32.totalorder %s108, %s110
      %p114 = scmp.eq.s32.totalorder %s20, 0
      %p115 = por %p113, %p114
      %p116 = scmp.ne.s32.totalorder %s108, %s110
      %p117 = scmp.eq.s32.totalorder %s25, 1
      %p118 = por %p116, %p117
      %p119 = scmp.ne.s32.totalorder %s110, %s111
      %p120 = scmp.eq.s32.totalorder %s25, 0
      %p121 = por %p119, %p120
      %p122 = scmp.ne.s32.totalorder %s110, %s111
      %p123 = scmp.eq.s32.totalorder %s26, 1
      %p124 = por %p122, %p123
      %p126 = scmp.ne.s32.totalorder %s111, %s125
      %p127 = scmp.eq.s32.totalorder %s26, 0
      %p128 = por %p126, %p127
      %s130 = sadd.s32 %s129, 1
      %p133 = scmp.eq.s32.totalorder %s20, 1
      %p134 = scmp.ne.s32.totalorder %s129, %s131
      %p135 = scmp.eq.s32.totalorder %s20, 0
      %p136 = por %p134, %p135
      %p137 = scmp.ne.s32.totalorder %s129, %s131
      %p138 = scmp.eq.s32.totalorder %s25, 1
      %p139 = por %p137, %p138
      %p140 = scmp.ne.s32.totalorder %s131, %s132
      %p141 = scmp.eq.s32.totalorder %s25, 0
      %p142 = por %p140, %p141
      %p143 = scmp.ne.s32.totalorder %s131, %s132
      %p144 = scmp.eq.s32.totalorder %s26, 1
      %p145 = por %p143, %p144
      %p147 = scmp.ne.s32.totalorder %s132, %s146
      %p148 = scmp.eq.s32.totalorder %s26, 0
      %p149 = por %p147, %p148
      %s151 = sadd.s32 %s150, 1
      %p154 = scmp.eq.s32.totalorder %s20, 1
      %p155 = scmp.ne.s32.totalorder %s150, %s152
      %p156 = scmp.eq.s32.totalorder %s20, 0
      %p157 = por %p155, %p156
      %p158 = scmp.ne.s32.totalorder %s150, %s152
      %p159 = scmp.eq.s32.totalorder %s25, 1
      %p160 = por %p158, %p159
      %p161 = scmp.ne.s32.totalorder %s152, %s153
      %p162 = scmp.eq.s32.totalorder %s25, 0
      %p163 = por %p161, %p162
      %p164 = scmp.ne.s32.totalorder %s152, %s153
      %p165 = scmp.eq.s32.totalorder %s26, 1
      %p166 = por %p164, %p165
      %p168 = scmp.ne.s32.totalorder %s153, %s167
      %p169 = scmp.eq.s32.totalorder %s26, 0
      %p170 = por %p168, %p169
      %s172 = sadd.s32 %s171, 1
      %p175 = scmp.eq.s32.totalorder %s20, 1
      %p176 = scmp.ne.s32.totalorder %s171, %s173
      %p177 = scmp.eq.s32.totalorder %s20, 0
      %p178 = por %p176, %p177
      %p179 = scmp.ne.s32.totalorder %s171, %s173
      %p180 = scmp.eq.s32.totalorder %s25, 1
      %p181 = por %p179, %p180
      %p182 = scmp.ne.s32.totalorder %s173, %s174
      %p183 = scmp.eq.s32.totalorder %s25, 0
      %p184 = por %p182, %p183
      %p185 = scmp.ne.s32.totalorder %s173, %s174
      %p186 = scmp.eq.s32.totalorder %s26, 1
      %p187 = por %p185, %p186
      %p189 = scmp.ne.s32.totalorder %s174, %s188
      %p190 = scmp.eq.s32.totalorder %s26, 0
      %p191 = por %p189, %p190
      %s193 = sadd.s32 %s192, 1
      %p196 = scmp.eq.s32.totalorder %s20, 1
      %p197 = scmp.ne.s32.totalorder %s192, %s194
      %p198 = scmp.eq.s32.totalorder %s20, 0
      %p199 = por %p197, %p198
      %p200 = scmp.ne.s32.totalorder %s192, %s194
      %p201 = scmp.eq.s32.totalorder %s25, 1
      %p202 = por %p200, %p201
      %p203 = scmp.ne.s32.totalorder %s194, %s195
      %p204 = scmp.eq.s32.totalorder %s25, 0
      %p205 = por %p203, %p204
      %p206 = scmp.ne.s32.totalorder %s194, %s195
      %p207 = scmp.eq.s32.totalorder %s26, 1
      %p208 = por %p206, %p207
      %p210 = scmp.ne.s32.totalorder %s195, %s209
      %p211 = scmp.eq.s32.totalorder %s26, 0
      %p212 = por %p210, %p211
      %s214 = sadd.s32 %s213, 1
      %p217 = scmp.eq.s32.totalorder %s20, 1
      %p218 = scmp.ne.s32.totalorder %s213, %s215
      %p219 = scmp.eq.s32.totalorder %s20, 0
      %p220 = por %p218, %p219
      %p221 = scmp.ne.s32.totalorder %s213, %s215
      %p222 = scmp.eq.s32.totalorder %s25, 1
      %p223 = por %p221, %p222
      %p224 = scmp.ne.s32.totalorder %s215, %s216
      %p225 = scmp.eq.s32.totalorder %s25, 0
      %p226 = por %p224, %p225
      %p227 = scmp.ne.s32.totalorder %s215, %s216
      %p228 = scmp.eq.s32.totalorder %s26, 1
      %p229 = por %p227, %p228
      %p231 = scmp.ne.s32.totalorder %s216, %s230
      %p232 = scmp.eq.s32.totalorder %s26, 0
      %p233 = por %p231, %p232
      %s234 = ssub.s32 %s27, %s39
      %s235 = ssub.s32 %s28, %s35
      %s236 = sor.u32 %s234, %s235
      %p237 = scmp.eq.s32.totalorder %s236, 0
      %s239 = sadd.s32 %s238, 1
      %s240 = scalar_select %p237, %s238, %s239
      %p243 = pneg %p237
      %p244 = scmp.eq.s32.totalorder %s20, 1
      %p245 = por %p243, %p244
      %p246 = scmp.ne.s32.totalorder %s238, %s241
      %p247 = scmp.eq.s32.totalorder %s20, 0
      %p248 = por %p246, %p247
      %p249 = scmp.ne.s32.totalorder %s238, %s241
      %p250 = scmp.eq.s32.totalorder %s25, 1
      %p251 = por %p249, %p250
      %p252 = scmp.ne.s32.totalorder %s241, %s242
      %p253 = scmp.eq.s32.totalorder %s25, 0
      %p254 = por %p252, %p253
      %p255 = scmp.ne.s32.totalorder %s241, %s242
      %p256 = scmp.eq.s32.totalorder %s26, 1
      %p257 = por %p255, %p256
      %p259 = scmp.ne.s32.totalorder %s242, %s258
      %p260 = scmp.eq.s32.totalorder %s26, 0
      %p261 = por %p259, %p260
      %p262 = scmp.le.s32.totalorder 1, %s20
      %p263 = scmp.lt.s32.totalorder %s20, 3
      %p264 = pnand %p262, %p263
      %p265 = pneg %p264
      // Predicated region
      $region9: #{tpu_custom_call.1} parent=5 // pred_check
        _
      $region10: #{tpu_custom_call.1} parent=5 // pred_check_branch
        %267 = sbr.rel (%p264) target = $region12
      $region11: #{tpu_custom_call.1} parent=5 // pred_region
        %s268 = ssub.s32 %s20, 1
        // Predicated region
        $region13: #{tpu_custom_call.1} parent=11 // pred_check
          %p269 = pneg %p79
        $region14: #{tpu_custom_call.1} parent=11 // pred_check_branch
          %271 = sbr.rel (%p269) target = $region16
        $region15: #{tpu_custom_call.1} parent=11 // pred_region
          %273 = vsyncadd [#allocation7], 0
          %s275 = sshll.u32 %s1, 4
          %s276 = int_to_ptr.hbm [resolvable:$true] %s275
          %s277 = sshll.u32 [#allocation6], 4
          %s278 = int_to_ptr.vmem [resolvable:$true] %s277
          %280 = dma.hbm_to_vmem [thread:$0]  %s276, 16, %s278, [#allocation7]
        $region16: #{tpu_custom_call.1} parent=11 // pred_fallthru
          _
        // Predicated region
        $region17: #{tpu_custom_call.1} parent=11 // pred_check
          %p281 = pneg %p100
        $region18: #{tpu_custom_call.1} parent=11 // pred_check_branch
          %283 = sbr.rel (%p281) target = $region20
        $region19: #{tpu_custom_call.1} parent=11 // pred_region
          _
        $region20: #{tpu_custom_call.1} parent=11 // pred_fallthru
          _
        // Predicated region
        $region21: #{tpu_custom_call.1} parent=11 // pred_check
          %p284 = pneg %p121
        $region22: #{tpu_custom_call.1} parent=11 // pred_check_branch
          %286 = sbr.rel (%p284) target = $region24
        $region23: #{tpu_custom_call.1} parent=11 // pred_region
          _
        $region24: #{tpu_custom_call.1} parent=11 // pred_fallthru
          _
        // Predicated region
        $region25: #{tpu_custom_call.1} parent=11 // pred_check
          %p287 = pneg %p142
        $region26: #{tpu_custom_call.1} parent=11 // pred_check_branch
          %289 = sbr.rel (%p287) target = $region28
        $region27: #{tpu_custom_call.1} parent=11 // pred_region
          _
        $region28: #{tpu_custom_call.1} parent=11 // pred_fallthru
          _
        // Predicated region
        $region29: #{tpu_custom_call.1} parent=11 // pred_check
          %p290 = pneg %p163
        $region30: #{tpu_custom_call.1} parent=11 // pred_check_branch
          %292 = sbr.rel (%p290) target = $region32
        $region31: #{tpu_custom_call.1} parent=11 // pred_region
          %294 = vsyncadd [#allocation10], 0
          %s295 = sshll.u32 %s5, 4
          %s296 = int_to_ptr.hbm [resolvable:$true] %s295
          %s297 = sshll.u32 [#allocation9], 4
          %s298 = int_to_ptr.vmem [resolvable:$true] %s297
          %303 = dma.hbm_to_vmem [thread:$0]  %s296, 1024, %s298, [#allocation10], 128, 128, 8
        $region32: #{tpu_custom_call.1} parent=11 // pred_fallthru
          _
        // Predicated region
        $region33: #{tpu_custom_call.1} parent=11 // pred_check
          %p304 = pneg %p184
        $region34: #{tpu_custom_call.1} parent=11 // pred_check_branch
          %306 = sbr.rel (%p304) target = $region36
        $region35: #{tpu_custom_call.1} parent=11 // pred_region
          _
        $region36: #{tpu_custom_call.1} parent=11 // pred_fallthru
          _
        // Predicated region
        $region37: #{tpu_custom_call.1} parent=11 // pred_check
          %p307 = pneg %p205
        $region38: #{tpu_custom_call.1} parent=11 // pred_check_branch
          %309 = sbr.rel (%p307) target = $region40
        $region39: #{tpu_custom_call.1} parent=11 // pred_region
          %311 = vsyncadd [#allocation10], 0
          %s312 = sshll.u32 %s7, 4
          %s313 = int_to_ptr.hbm [resolvable:$true] %s312
          %s314 = sshll.u32 [#allocation11], 4
          %s315 = int_to_ptr.vmem [resolvable:$true] %s314
          %320 = dma.hbm_to_vmem [thread:$0]  %s313, 512, %s315, [#allocation10], 64, 64, 4
        $region40: #{tpu_custom_call.1} parent=11 // pred_fallthru
          _
        // Predicated region
        $region41: #{tpu_custom_call.1} parent=11 // pred_check
          %p321 = pneg %p226
        $region42: #{tpu_custom_call.1} parent=11 // pred_check_branch
          %323 = sbr.rel (%p321) target = $region44
        $region43: #{tpu_custom_call.1} parent=11 // pred_region
          _
        $region44: #{tpu_custom_call.1} parent=11 // pred_fallthru
          _
      $region12: #{tpu_custom_call.1} parent=5 // pred_fallthru
        _
      %p324 = scmp.lt.s32.totalorder %s20, 2
      // Predicated region
      $region45: #{tpu_custom_call.1} parent=5 // pred_check
        %p325 = pneg %p324
      $region46: #{tpu_custom_call.1} parent=5 // pred_check_branch
        %327 = sbr.rel (%p325) target = $region48
      $region47: #{tpu_custom_call.1} parent=5 // pred_region
        // Predicated region
        $region49: #{tpu_custom_call.1} parent=47 // pred_check
          %p328 = pneg %p52
        $region50: #{tpu_custom_call.1} parent=47 // pred_check_branch
          %330 = sbr.rel (%p328) target = $region52
        $region51: #{tpu_custom_call.1} parent=47 // pred_region
          %p331 = scmp.lt.s32.totalorder %s27, 1
          %s332 = scalar_select %p331, %s27, 1
          %s333 = smul.addr %s332, 8
          %s334 = smul.addr %s333, 4
          %s335 = scalar_lea.vmem %s0, %s334
        $region52: #{tpu_custom_call.1} parent=47 // pred_fallthru
          _
      $region48: #{tpu_custom_call.1} parent=5 // pred_fallthru
        _
      %p336 = scmp.le.s32.totalorder 1, %s20
      %p337 = scmp.lt.s32.totalorder %s20, 3
      %p338 = pnand %p336, %p337
      %p339 = pneg %p338
      // Predicated region
      $region53: #{tpu_custom_call.1} parent=5 // pred_check
        _
      $region54: #{tpu_custom_call.1} parent=5 // pred_check_branch
        %341 = sbr.rel (%p338) target = $region56
      $region55: #{tpu_custom_call.1} parent=5 // pred_region
        %s342 = ssub.s32 %s20, 1
        // Predicated region
        $region57: #{tpu_custom_call.1} parent=55 // pred_check
          %p343 = pneg %p79
        $region58: #{tpu_custom_call.1} parent=55 // pred_check_branch
          %345 = sbr.rel (%p343) target = $region60
        $region59: #{tpu_custom_call.1} parent=55 // pred_region
          %347 = dma.done [#allocation7], 16
        $region60: #{tpu_custom_call.1} parent=55 // pred_fallthru
          _
        // Predicated region
        $region61: #{tpu_custom_call.1} parent=55 // pred_check
          %p348 = pneg %p163
        $region62: #{tpu_custom_call.1} parent=55 // pred_check_branch
          %350 = sbr.rel (%p348) target = $region64
        $region63: #{tpu_custom_call.1} parent=55 // pred_region
          %352 = dma.done [#allocation10], 1024
        $region64: #{tpu_custom_call.1} parent=55 // pred_fallthru
          _
        // Predicated region
        $region65: #{tpu_custom_call.1} parent=55 // pred_check
          %p353 = pneg %p205
        $region66: #{tpu_custom_call.1} parent=55 // pred_check_branch
          %355 = sbr.rel (%p353) target = $region68
        $region67: #{tpu_custom_call.1} parent=55 // pred_region
          %357 = dma.done [#allocation10], 512
        $region68: #{tpu_custom_call.1} parent=55 // pred_fallthru
          _
        %p358 = scmp.lt.s32.totalorder %s29, 1
        %s359 = scalar_select %p358, %s29, 1
        %s360 = smul.addr %s359, 8
        %s361 = smul.addr %s360, 4
        %s362 = scalar_lea.vmem %s0, %s361
        %p363 = pneg %p58
        %p364 = pneg %p55
        %p365 = pneg %p79
        %p366 = pneg %p76
        %p367 = pneg %p100
        %p368 = pneg %p97
        %p369 = pneg %p121
        %p370 = pneg %p118
        %p371 = pneg %p142
        %p372 = pneg %p139
        %p373 = pneg %p163
        %p374 = pneg %p160
        %p375 = pneg %p184
        %p376 = pneg %p181
        %p377 = pneg %p205
        %p378 = pneg %p202
        %p379 = pneg %p226
        %p380 = pneg %p223
        %p381 = pneg %p254
        %p382 = pneg %p251
        %s383 = sand.u32 %s241, 1
        %s384 = scalar_lea.sflag [#allocation8], %s383
        %s385 = sand.u32 %s241, 1
        %s386 = smul.addr %s385, 64
        %s387 = scalar_lea.vmem [#allocation12], %s386
        %p388 = scmp.lt.s32.totalorder %s29, 1
        %s389 = scalar_select %p388, %s29, 1
        %s390 = smul.addr %s389, 8
        %s391 = smul.addr %s390, 4
        %s392 = scalar_lea.vmem %s0, %s391
        %s393 = smul.u32 8, %s30
        %p395 = scmp.eq.s32.totalorder %s30, 0
        // Predicated region
        $region69: #{tpu_custom_call.1} parent=55 // pred_check
          %p396 = pneg %p395
        $region70: #{tpu_custom_call.1} parent=55 // pred_check_branch
          %398 = sbr.rel (%p396) target = $region72
        $region71: #{tpu_custom_call.1} parent=55 // pred_region
          %v399 = vld [vmem:[%s392] sm:$0xf]
          %v400 = vld [vmem:[%s392 + $0x4] sm:$0xf]
          %v401 = vld [vmem:[%s392 + $0x8] sm:$0xf]
          %v402 = vld [vmem:[%s392 + $0xc] sm:$0xf]
          %v403 = vld [vmem:[%s392 + $0x10] sm:$0xf]
          %v404 = vld [vmem:[%s392 + $0x14] sm:$0xf]
          %v405 = vld [vmem:[%s392 + $0x18] sm:$0xf]
          %v406 = vld [vmem:[%s392 + $0x1c] sm:$0xf]
          %v407 = vunpack.c.l.bf16 %v399
          %v408 = vunpack.c.l.bf16 %v400
          %v409 = vunpack.c.l.bf16 %v401
          %v410 = vunpack.c.l.bf16 %v402
          %v411 = vunpack.c.l.bf16 %v403
          %v412 = vunpack.c.l.bf16 %v404
          %v413 = vunpack.c.l.bf16 %v405
          %v414 = vunpack.c.l.bf16 %v406
          %vm415 = vcmask 523264
          %v416 = vsel %vm415, %v407, 0.0
          %v417 = vsel %vm415, %v408, 0.0
          %v418 = vadd.f32 %v416, %v417
          %v419 = vsel %vm415, %v409, 0.0
          %v420 = vadd.f32 %v418, %v419
          %v421 = vsel %vm415, %v410, 0.0
          %v422 = vadd.f32 %v420, %v421
          %v423 = vsel %vm415, %v411, 0.0
          %v424 = vadd.f32 %v422, %v423
          %v425 = vsel %vm415, %v412, 0.0
          %v426 = vadd.f32 %v424, %v425
          %v427 = vsel %vm415, %v413, 0.0
          %v428 = vadd.f32 %v426, %v427
          %v429 = vsel %vm415, %v414, 0.0
          %v430 = vadd.f32 %v428, %v429
          %v431 = vrot.slane %v430, 4
          %v432 = vadd.f32 %v430, %v431
          %v433 = vrot.slane %v432, 2
          %v434 = vadd.f32 %v432, %v433
          %v435 = vrot.slane %v434, 1
          %v436 = vadd.f32 %v434, %v435
          %v437 = vadd.f32 %v436, 0.0
          %v438 = vld [vmem:[%s3] sm:$0xff]
          %v439 = vld [vmem:[%s3 + $0x8] sm:$0xff]
          %v440 = vld [vmem:[%s3 + $0x10] sm:$0xff]
          %v441 = vld [vmem:[%s3 + $0x18] sm:$0xff]
          %v442 = vld [vmem:[%s3 + $0x20] sm:$0xff]
          %v443 = vld [vmem:[%s3 + $0x28] sm:$0xff]
          %v444 = vld [vmem:[%s3 + $0x30] sm:$0xff]
          %v445 = vld [vmem:[%s3 + $0x38] sm:$0xff]
          %v447 = vsel %vm415, %v437, 0
          %449 = vmatpush.msra.mxu0 0.0
          %450 = vmatpush.msra.mxu0 0.0
          %451 = vmatpush.msra.mxu0 0.0
          %452 = vmatpush.msra.mxu0 0.0
          %453 = vmatpush.msra.mxu0 0.0
          %454 = vmatpush.msra.mxu0 0.0
          %455 = vmatpush.msra.mxu0 0.0
          %456 = vmatpush.msra.mxu0 0.0
          %457 = vmatpush.msra.mxu0 %v445
          %458 = vmatpush.msra.mxu0 %v444
          %459 = vmatpush.msra.mxu0 %v443
          %460 = vmatpush.msra.mxu0 %v442
          %461 = vmatpush.msra.mxu0 %v441
          %462 = vmatpush.msra.mxu0 %v440
          %463 = vmatpush.msra.mxu0 %v439
          %464 = vmatpush.msra.mxu0 %v438
          %465 = vmatmul.f32.gmra.mxu0 %v447
          %v466 = vpop.f32.mrf.mxu0
          %v467 = vadd.f32 0.0, %v466
          %468 = vdwg.mxu0
          %v469 = vmul.f32 %v467, 0.0078125
          %v470 = vld [vmem:[%s4] sm:$0xff]
          %v471 = vld [vmem:[%s4 + $0x8] sm:$0xff]
          %v472 = vld [vmem:[%s4 + $0x10] sm:$0xff]
          %v473 = vld [vmem:[%s4 + $0x18] sm:$0xff]
          %vm474 = vcmask 261120
          %v476 = vsel %vm474, %v469, 0
          %478 = vmatpush.msra.mxu0 0.0
          %479 = vmatpush.msra.mxu0 0.0
          %480 = vmatpush.msra.mxu0 0.0
          %481 = vmatpush.msra.mxu0 0.0
          %482 = vmatpush.msra.mxu0 0.0
          %483 = vmatpush.msra.mxu0 0.0
          %484 = vmatpush.msra.mxu0 0.0
          %485 = vmatpush.msra.mxu0 0.0
          %486 = vmatpush.msra.mxu0 0.0
          %487 = vmatpush.msra.mxu0 0.0
          %488 = vmatpush.msra.mxu0 0.0
          %489 = vmatpush.msra.mxu0 0.0
          %490 = vmatpush.msra.mxu0 %v473
          %491 = vmatpush.msra.mxu0 %v472
          %492 = vmatpush.msra.mxu0 %v471
          %493 = vmatpush.msra.mxu0 %v470
          %494 = vmatmul.f32.gmra.mxu0 %v476
          %v495 = vpop.f32.mrf.mxu0
          %v496 = vadd.f32 0.0, %v495
          %497 = vdwg.mxu0
          %v498 = vperm.slane %v496, 0
          %v499 = vsub.f32 %v407, %v498
          %v500 = vsub.f32 %v408, %v498
          %v501 = vsub.f32 %v409, %v498
          %v502 = vsub.f32 %v410, %v498
          %v503 = vsub.f32 %v411, %v498
          %v504 = vsub.f32 %v412, %v498
          %v505 = vsub.f32 %v413, %v498
          %v506 = vsub.f32 %v414, %v498
          %v507 = vmul.f32 %v499, %v499
          %v508 = vmul.f32 %v500, %v500
          %v509 = vmul.f32 %v501, %v501
          %v510 = vmul.f32 %v502, %v502
          %v511 = vmul.f32 %v503, %v503
          %v512 = vmul.f32 %v504, %v504
          %v513 = vmul.f32 %v505, %v505
          %v514 = vmul.f32 %v506, %v506
          %v515 = vsel %vm415, %v507, 0.0
          %v516 = vsel %vm415, %v508, 0.0
          %v517 = vadd.f32 %v515, %v516
          %v518 = vsel %vm415, %v509, 0.0
          %v519 = vadd.f32 %v517, %v518
          %v520 = vsel %vm415, %v510, 0.0
          %v521 = vadd.f32 %v519, %v520
          %v522 = vsel %vm415, %v511, 0.0
          %v523 = vadd.f32 %v521, %v522
          %v524 = vsel %vm415, %v512, 0.0
          %v525 = vadd.f32 %v523, %v524
          %v526 = vsel %vm415, %v513, 0.0
          %v527 = vadd.f32 %v525, %v526
          %v528 = vsel %vm415, %v514, 0.0
          %v529 = vadd.f32 %v527, %v528
          %v530 = vrot.slane %v529, 4
          %v531 = vadd.f32 %v529, %v530
          %v532 = vrot.slane %v531, 2
          %v533 = vadd.f32 %v531, %v532
          %v534 = vrot.slane %v533, 1
          %v535 = vadd.f32 %v533, %v534
          %v536 = vadd.f32 %v535, 0.0
          %v538 = vsel %vm415, %v536, 0
          %540 = vmatpush.msra.mxu0 0.0
          %541 = vmatpush.msra.mxu0 0.0
          %542 = vmatpush.msra.mxu0 0.0
          %543 = vmatpush.msra.mxu0 0.0
          %544 = vmatpush.msra.mxu0 0.0
          %545 = vmatpush.msra.mxu0 0.0
          %546 = vmatpush.msra.mxu0 0.0
          %547 = vmatpush.msra.mxu0 0.0
          %548 = vmatpush.msra.mxu0 %v445
          %549 = vmatpush.msra.mxu0 %v444
          %550 = vmatpush.msra.mxu0 %v443
          %551 = vmatpush.msra.mxu0 %v442
          %552 = vmatpush.msra.mxu0 %v441
          %553 = vmatpush.msra.mxu0 %v440
          %554 = vmatpush.msra.mxu0 %v439
          %555 = vmatpush.msra.mxu0 %v438
          %556 = vmatmul.f32.gmra.mxu0 %v538
          %v557 = vpop.f32.mrf.mxu0
          %v558 = vadd.f32 0.0, %v557
          %559 = vdwg.mxu0
          %v560 = vmul.f32 %v558, 0.0078125
          %v561 = vadd.f32 %v560, 1e-05
          %v562 = vrsqrt.pop %v561
          %v563 = vmul.f32 %v562, %v561
          %v564 = vmul.f32 %v563, %v562
          %v565 = vmul.f32 0.5, %v564
          %v566 = vsub.f32 1.5, %v565
          %v567 = vmul.f32 %v562, %v566
          %vm568 = vweird.f32 %v561
          %vm569 = vweird.f32 %v562
          %vm570 = vmor %vm568, %vm569
          %v571 = vsel %vm570, %v562, %v567
          %v573 = vsel %vm474, %v571, 0
          %575 = vmatpush.msra.mxu0 0.0
          %576 = vmatpush.msra.mxu0 0.0
          %577 = vmatpush.msra.mxu0 0.0
          %578 = vmatpush.msra.mxu0 0.0
          %579 = vmatpush.msra.mxu0 0.0
          %580 = vmatpush.msra.mxu0 0.0
          %581 = vmatpush.msra.mxu0 0.0
          %582 = vmatpush.msra.mxu0 0.0
          %583 = vmatpush.msra.mxu0 0.0
          %584 = vmatpush.msra.mxu0 0.0
          %585 = vmatpush.msra.mxu0 0.0
          %586 = vmatpush.msra.mxu0 0.0
          %587 = vmatpush.msra.mxu0 %v473
          %588 = vmatpush.msra.mxu0 %v472
          %589 = vmatpush.msra.mxu0 %v471
          %590 = vmatpush.msra.mxu0 %v470
          %591 = vmatmul.f32.gmra.mxu0 %v573
          %v592 = vpop.f32.mrf.mxu0
          %v593 = vadd.f32 0.0, %v592
          %594 = vdwg.mxu0
          %v595 = vperm.slane %v593, 0
          %v596 = vmul.f32 %v499, %v595
          %v597 = vmul.f32 %v500, %v595
          %v598 = vmul.f32 %v501, %v595
          %v599 = vmul.f32 %v502, %v595
          %v600 = vmul.f32 %v503, %v595
          %v601 = vmul.f32 %v504, %v595
          %v602 = vmul.f32 %v505, %v595
          %v603 = vmul.f32 %v506, %v595
          %v604 = vld [vmem:[#allocation6] sm:$0x1]
          %v606 = vperm.slane %v604, 0
          %v608 = vmul.f32 %v596, %v606
          %v609 = vmul.f32 %v597, %v606
          %v610 = vmul.f32 %v598, %v606
          %v611 = vmul.f32 %v599, %v606
          %v612 = vmul.f32 %v600, %v606
          %v613 = vmul.f32 %v601, %v606
          %v614 = vmul.f32 %v602, %v606
          %v615 = vmul.f32 %v603, %v606
          %v616 = vld [vmem:[%s2] sm:$0x1]
          %v618 = vperm.slane %v616, 0
          %v620 = vadd.f32 %v608, %v618
          %v621 = vadd.f32 %v609, %v618
          %v622 = vadd.f32 %v610, %v618
          %v623 = vadd.f32 %v611, %v618
          %v624 = vadd.f32 %v612, %v618
          %v625 = vadd.f32 %v613, %v618
          %v626 = vadd.f32 %v614, %v618
          %v627 = vadd.f32 %v615, %v618
          %v628 = vpack.c.bf16 %v621, %v620
          %v629 = vpack.c.bf16 %v623, %v622
          %v630 = vpack.c.bf16 %v625, %v624
          %v631 = vpack.c.bf16 %v627, %v626
          %v632 = vld [vmem:[#allocation9] sm:$0xff]
          %v633 = vld [vmem:[#allocation9 + $0x8] sm:$0xff]
          %v634 = vld [vmem:[#allocation9 + $0x10] sm:$0xff]
          %v635 = vld [vmem:[#allocation9 + $0x18] sm:$0xff]
          %v636 = vld [vmem:[#allocation9 + $0x20] sm:$0xff]
          %v637 = vld [vmem:[#allocation9 + $0x28] sm:$0xff]
          %v638 = vld [vmem:[#allocation9 + $0x30] sm:$0xff]
          %v639 = vld [vmem:[#allocation9 + $0x38] sm:$0xff]
          %v640 = vld [vmem:[%s6] sm:$0x3]
          %v642 = vperm.slane %v640, 0
          %v643 = vperm.slane %v640, 1
          %v654 = vunpack.c.l.b16 %v632
          %v655 = vunpack.c.h.b16 %v632
          %v656 = vunpack.c.l.b16 %v633
          %v657 = vunpack.c.h.b16 %v633
          %v658 = vunpack.c.l.b16 %v634
          %v659 = vunpack.c.h.b16 %v634
          %v660 = vunpack.c.l.b16 %v635
          %v661 = vunpack.c.h.b16 %v635
          %v662 = vunpack.c.l.b16 %v636
          %v663 = vunpack.c.h.b16 %v636
          %v664 = vunpack.c.l.b16 %v637
          %v665 = vunpack.c.h.b16 %v637
          %v666 = vunpack.c.l.b16 %v638
          %v667 = vunpack.c.h.b16 %v638
          %v668 = vunpack.c.l.b16 %v639
          %v669 = vunpack.c.h.b16 %v639
          %v670 = vpack.c.b16 %v656, %v654
          %v671 = vpack.c.b16 %v657, %v655
          %v672 = vpack.c.b16 %v660, %v658
          %v673 = vpack.c.b16 %v661, %v659
          %v674 = vpack.c.b16 %v664, %v662
          %v675 = vpack.c.b16 %v665, %v663
          %v676 = vpack.c.b16 %v668, %v666
          %v677 = vpack.c.b16 %v669, %v667
          %v687 = vsel %vm415, %v628, 0
          %v690 = vsel %vm415, %v629, 0
          %v693 = vsel %vm415, %v630, 0
          %v696 = vsel %vm415, %v631, 0
          %698 = vmatpush.bf16.msra.mxu0 0
          %699 = vmatpush.bf16.msra.mxu0 0
          %700 = vmatpush.bf16.msra.mxu0 0
          %701 = vmatpush.bf16.msra.mxu0 0
          %702 = vmatpush.bf16.msra.mxu0 %v676
          %703 = vmatpush.bf16.msra.mxu0 %v674
          %704 = vmatpush.bf16.msra.mxu0 %v672
          %705 = vmatpush.bf16.msra.mxu0 %v670
          %706 = vmatmul.bf16.gmra.mxu0 %v687
          %v707 = vpop.f32.mrf.mxu0
          %v708 = vadd.f32 %v642, %v707
          %v709 = vpop.f32.mrf.mxu0
          %v710 = vadd.f32 %v642, %v709
          %711 = vmatmul.bf16.gmra.mxu0 %v690
          %v712 = vpop.f32.mrf.mxu0
          %v713 = vadd.f32 %v642, %v712
          %v714 = vpop.f32.mrf.mxu0
          %v715 = vadd.f32 %v642, %v714
          %716 = vmatmul.bf16.gmra.mxu0 %v693
          %v717 = vpop.f32.mrf.mxu0
          %v718 = vadd.f32 %v642, %v717
          %v719 = vpop.f32.mrf.mxu0
          %v720 = vadd.f32 %v642, %v719
          %721 = vmatmul.bf16.gmra.mxu0 %v696
          %v722 = vpop.f32.mrf.mxu0
          %v723 = vadd.f32 %v642, %v722
          %v724 = vpop.f32.mrf.mxu0
          %v725 = vadd.f32 %v642, %v724
          %726 = vdwg.mxu0
          %727 = vmatpush.bf16.msra.mxu0 0
          %728 = vmatpush.bf16.msra.mxu0 0
          %729 = vmatpush.bf16.msra.mxu0 0
          %730 = vmatpush.bf16.msra.mxu0 0
          %731 = vmatpush.bf16.msra.mxu0 %v677
          %732 = vmatpush.bf16.msra.mxu0 %v675
          %733 = vmatpush.bf16.msra.mxu0 %v673
          %734 = vmatpush.bf16.msra.mxu0 %v671
          %735 = vmatmul.bf16.gmra.mxu0 %v687
          %v736 = vpop.f32.mrf.mxu0
          %v737 = vadd.f32 %v643, %v736
          %v738 = vpop.f32.mrf.mxu0
          %v739 = vadd.f32 %v643, %v738
          %740 = vmatmul.bf16.gmra.mxu0 %v690
          %v741 = vpop.f32.mrf.mxu0
          %v742 = vadd.f32 %v643, %v741
          %v743 = vpop.f32.mrf.mxu0
          %v744 = vadd.f32 %v643, %v743
          %745 = vmatmul.bf16.gmra.mxu0 %v693
          %v746 = vpop.f32.mrf.mxu0
          %v747 = vadd.f32 %v643, %v746
          %v748 = vpop.f32.mrf.mxu0
          %v749 = vadd.f32 %v643, %v748
          %750 = vmatmul.bf16.gmra.mxu0 %v696
          %v751 = vpop.f32.mrf.mxu0
          %v752 = vadd.f32 %v643, %v751
          %v753 = vpop.f32.mrf.mxu0
          %v754 = vadd.f32 %v643, %v753
          %755 = vdwg.mxu0
          %v756 = vmul.f32 %v708, 0.4204482
          %v757 = vmul.f32 %v710, 0.4204482
          %v758 = vmul.f32 %v713, 0.4204482
          %v759 = vmul.f32 %v715, 0.4204482
          %v760 = vmul.f32 %v718, 0.4204482
          %v761 = vmul.f32 %v720, 0.4204482
          %v762 = vmul.f32 %v723, 0.4204482
          %v763 = vmul.f32 %v725, 0.4204482
          %v764 = vpack.c.bf16 %v756, %v756
          %v765 = vpack.c.bf16 %v757, %v757
          %v766 = vpack.c.bf16 %v758, %v758
          %v767 = vpack.c.bf16 %v759, %v759
          %v768 = vpack.c.bf16 %v760, %v760
          %v769 = vpack.c.bf16 %v761, %v761
          %v770 = vpack.c.bf16 %v762, %v762
          %v771 = vpack.c.bf16 %v763, %v763
          %vm772 = vcmask 519168
          %773 = vst.msk [vmem:[#allocation2] sm:$0xf] %vm772, %v764
          %774 = vst.msk [vmem:[#allocation2 + $0x4] sm:$0xf] %vm772, %v765
          %775 = vst.msk [vmem:[#allocation2 + $0x8] sm:$0xf] %vm772, %v766
          %776 = vst.msk [vmem:[#allocation2 + $0xc] sm:$0xf] %vm772, %v767
          %777 = vst.msk [vmem:[#allocation2 + $0x10] sm:$0xf] %vm772, %v768
          %778 = vst.msk [vmem:[#allocation2 + $0x14] sm:$0xf] %vm772, %v769
          %779 = vst.msk [vmem:[#allocation2 + $0x18] sm:$0xf] %vm772, %v770
          %780 = vst.msk [vmem:[#allocation2 + $0x1c] sm:$0xf] %vm772, %v771
          %789 = vrot.lane.b32.xlu0 %v764, 64
          %v790 = vpop.permute.xlu0 %789
          %791 = vrot.lane.b32.xlu0 %v765, 64
          %v792 = vpop.permute.xlu0 %791
          %793 = vrot.lane.b32.xlu0 %v766, 64
          %v794 = vpop.permute.xlu0 %793
          %795 = vrot.lane.b32.xlu0 %v767, 64
          %v796 = vpop.permute.xlu0 %795
          %797 = vrot.lane.b32.xlu0 %v768, 64
          %v798 = vpop.permute.xlu0 %797
          %799 = vrot.lane.b32.xlu0 %v769, 64
          %v800 = vpop.permute.xlu0 %799
          %801 = vrot.lane.b32.xlu0 %v770, 64
          %v802 = vpop.permute.xlu0 %801
          %803 = vrot.lane.b32.xlu0 %v771, 64
          %v804 = vpop.permute.xlu0 %803
          %813 = vst.msk [vmem:[#allocation3] sm:$0xf] %vm772, %v790
          %814 = vst.msk [vmem:[#allocation3 + $0x4] sm:$0xf] %vm772, %v792
          %815 = vst.msk [vmem:[#allocation3 + $0x8] sm:$0xf] %vm772, %v794
          %816 = vst.msk [vmem:[#allocation3 + $0xc] sm:$0xf] %vm772, %v796
          %817 = vst.msk [vmem:[#allocation3 + $0x10] sm:$0xf] %vm772, %v798
          %818 = vst.msk [vmem:[#allocation3 + $0x14] sm:$0xf] %vm772, %v800
          %819 = vst.msk [vmem:[#allocation3 + $0x18] sm:$0xf] %vm772, %v802
          %820 = vst.msk [vmem:[#allocation3 + $0x1c] sm:$0xf] %vm772, %v804
          %v821 = vpack.c.bf16 %v737, %v737
          %v822 = vpack.c.bf16 %v739, %v739
          %v823 = vpack.c.bf16 %v742, %v742
          %v824 = vpack.c.bf16 %v744, %v744
          %v825 = vpack.c.bf16 %v747, %v747
          %v826 = vpack.c.bf16 %v749, %v749
          %v827 = vpack.c.bf16 %v752, %v752
          %v828 = vpack.c.bf16 %v754, %v754
          %829 = vst.msk [vmem:[#allocation4] sm:$0xf] %vm772, %v821
          %830 = vst.msk [vmem:[#allocation4 + $0x4] sm:$0xf] %vm772, %v822
          %831 = vst.msk [vmem:[#allocation4 + $0x8] sm:$0xf] %vm772, %v823
          %832 = vst.msk [vmem:[#allocation4 + $0xc] sm:$0xf] %vm772, %v824
          %833 = vst.msk [vmem:[#allocation4 + $0x10] sm:$0xf] %vm772, %v825
          %834 = vst.msk [vmem:[#allocation4 + $0x14] sm:$0xf] %vm772, %v826
          %835 = vst.msk [vmem:[#allocation4 + $0x18] sm:$0xf] %vm772, %v827
          %836 = vst.msk [vmem:[#allocation4 + $0x1c] sm:$0xf] %vm772, %v828
        $region72: #{tpu_custom_call.1} parent=55 // pred_fallthru
          _
        %s837 = smul.u32 %s30, 64
        %s838 = sshra.s32 %s837, 3
        %s839 = sand.u32 %s837, 7
        %s840 = smul.addr %s838, 4
        %s841 = scalar_lea.vmem [#allocation2], %s840
        %v842 = vld [vmem:[%s841] sm:$0xf]
        %v843 = vld [vmem:[%s841 + $0x4] sm:$0xf]
        %v844 = vld [vmem:[%s841 + $0x8] sm:$0xf]
        %v845 = vld [vmem:[%s841 + $0xc] sm:$0xf]
        %v846 = vld [vmem:[%s841 + $0x10] sm:$0xf]
        %v847 = vld [vmem:[%s841 + $0x14] sm:$0xf]
        %v848 = vld [vmem:[%s841 + $0x18] sm:$0xf]
        %v849 = vld [vmem:[%s841 + $0x1c] sm:$0xf]
        %v850 = vld [vmem:[#allocation3] sm:$0xf]
        %v851 = vld [vmem:[#allocation3 + $0x4] sm:$0xf]
        %v852 = vld [vmem:[#allocation3 + $0x8] sm:$0xf]
        %v853 = vld [vmem:[#allocation3 + $0xc] sm:$0xf]
        %v854 = vld [vmem:[#allocation3 + $0x10] sm:$0xf]
        %v855 = vld [vmem:[#allocation3 + $0x14] sm:$0xf]
        %v856 = vld [vmem:[#allocation3 + $0x18] sm:$0xf]
        %v857 = vld [vmem:[#allocation3 + $0x1c] sm:$0xf]
        %v858 = vld [vmem:[#allocation4] sm:$0xf]
        %v859 = vld [vmem:[#allocation4 + $0x4] sm:$0xf]
        %v860 = vld [vmem:[#allocation4 + $0x8] sm:$0xf]
        %v861 = vld [vmem:[#allocation4 + $0xc] sm:$0xf]
        %v862 = vld [vmem:[#allocation4 + $0x10] sm:$0xf]
        %v863 = vld [vmem:[#allocation4 + $0x14] sm:$0xf]
        %v864 = vld [vmem:[#allocation4 + $0x18] sm:$0xf]
        %v865 = vld [vmem:[#allocation4 + $0x1c] sm:$0xf]
        %v874 = vunpack.c.l.b16 %v842
        %v875 = vunpack.c.l.b16 %v843
        %v876 = vunpack.c.l.b16 %v844
        %v877 = vunpack.c.l.b16 %v845
        %v878 = vunpack.c.l.b16 %v846
        %v879 = vunpack.c.l.b16 %v847
        %v880 = vunpack.c.l.b16 %v848
        %v881 = vunpack.c.l.b16 %v849
        %v882 = vpack.c.b16 %v875, %v874
        %v883 = vpack.c.b16 %v877, %v876
        %v884 = vpack.c.b16 %v879, %v878
        %v885 = vpack.c.b16 %v881, %v880
        %v894 = vunpack.c.l.b16 %v850
        %v895 = vunpack.c.l.b16 %v851
        %v896 = vunpack.c.l.b16 %v852
        %v897 = vunpack.c.l.b16 %v853
        %v898 = vunpack.c.l.b16 %v854
        %v899 = vunpack.c.l.b16 %v855
        %v900 = vunpack.c.l.b16 %v856
        %v901 = vunpack.c.l.b16 %v857
        %v902 = vpack.c.b16 %v895, %v894
        %v903 = vpack.c.b16 %v897, %v896
        %v904 = vpack.c.b16 %v899, %v898
        %v905 = vpack.c.b16 %v901, %v900
        %vm906 = vcmask 261120
        %v908 = vsel %vm906, %v882, 0
        %v911 = vsel %vm906, %v883, 0
        %v914 = vsel %vm906, %v884, 0
        %v917 = vsel %vm906, %v885, 0
        %v920 = vsel %vm906, %v902, 0
        %v923 = vsel %vm906, %v903, 0
        %v926 = vsel %vm906, %v904, 0
        %v929 = vsel %vm906, %v905, 0
        %931 = vmatpush.bf16.xpose.msra.mxu0 0
        %932 = vmatpush.bf16.xpose.msra.mxu0 0
        %933 = vmatpush.bf16.xpose.msra.mxu0 0
        %934 = vmatpush.bf16.xpose.msra.mxu0 0
        %935 = vmatpush.bf16.xpose.msra.mxu0 %v929
        %936 = vmatpush.bf16.xpose.msra.mxu0 %v926
        %937 = vmatpush.bf16.xpose.msra.mxu0 %v923
        %938 = vmatpush.bf16.xpose.msra.mxu0 %v920
        %939 = vmatmul.bf16.gmra.mxu0 %v908
        %v940 = vpop.f32.mrf.mxu0
        %v941 = vadd.f32 0.0, %v940
        %v942 = vpop.f32.mrf.mxu0
        %v943 = vadd.f32 0.0, %v942
        %944 = vmatmul.bf16.gmra.mxu0 %v911
        %v945 = vpop.f32.mrf.mxu0
        %v946 = vadd.f32 0.0, %v945
        %v947 = vpop.f32.mrf.mxu0
        %v948 = vadd.f32 0.0, %v947
        %949 = vmatmul.bf16.gmra.mxu0 %v914
        %v950 = vpop.f32.mrf.mxu0
        %v951 = vadd.f32 0.0, %v950
        %v952 = vpop.f32.mrf.mxu0
        %v953 = vadd.f32 0.0, %v952
        %954 = vmatmul.bf16.gmra.mxu0 %v917
        %v955 = vpop.f32.mrf.mxu0
        %v956 = vadd.f32 0.0, %v955
        %v957 = vpop.f32.mrf.mxu0
        %v958 = vadd.f32 0.0, %v957
        %959 = vdwg.mxu0
        %vm960 = vcmask 523264
        %v961 = vsel %vm960, %v941, -inf
        %962 = vmax.xlane.f32.xlu0 %v961
        %v963 = vpop.xlane.xlu0 %962
        %v964 = vsel %vm960, %v943, -inf
        %965 = vmax.xlane.f32.xlu0 %v964
        %v966 = vpop.xlane.xlu0 %965
        %v967 = vsel %vm960, %v946, -inf
        %968 = vmax.xlane.f32.xlu0 %v967
        %v969 = vpop.xlane.xlu0 %968
        %v970 = vsel %vm960, %v948, -inf
        %971 = vmax.xlane.f32.xlu0 %v970
        %v972 = vpop.xlane.xlu0 %971
        %v973 = vsel %vm960, %v951, -inf
        %974 = vmax.xlane.f32.xlu0 %v973
        %v975 = vpop.xlane.xlu0 %974
        %v976 = vsel %vm960, %v953, -inf
        %977 = vmax.xlane.f32.xlu0 %v976
        %v978 = vpop.xlane.xlu0 %977
        %v979 = vsel %vm960, %v956, -inf
        %980 = vmax.xlane.f32.xlu0 %v979
        %v981 = vpop.xlane.xlu0 %980
        %v982 = vsel %vm960, %v958, -inf
        %983 = vmax.xlane.f32.xlu0 %v982
        %v984 = vpop.xlane.xlu0 %983
        %v985 = vsub.f32 %v941, %v963
        %v986 = vsub.f32 %v943, %v966
        %v987 = vsub.f32 %v946, %v969
        %v988 = vsub.f32 %v948, %v972
        %v989 = vsub.f32 %v951, %v975
        %v990 = vsub.f32 %v953, %v978
        %v991 = vsub.f32 %v956, %v981
        %v992 = vsub.f32 %v958, %v984
        %v993 = vpack.c.bf16 %v986, %v985
        %v994 = vpack.c.bf16 %v988, %v987
        %v995 = vpack.c.bf16 %v990, %v989
        %v996 = vpack.c.bf16 %v992, %v991
        %v997 = vunpack.c.l.bf16 %v993
        %v998 = vunpack.c.h.bf16 %v993
        %v999 = vunpack.c.l.bf16 %v994
        %v1000 = vunpack.c.h.bf16 %v994
        %v1001 = vunpack.c.l.bf16 %v995
        %v1002 = vunpack.c.h.bf16 %v995
        %v1003 = vunpack.c.l.bf16 %v996
        %v1004 = vunpack.c.h.bf16 %v996
        %v1005 = vmul.f32 %v997, 1.442695
        %v1006 = vpow.pop %v1005
        %v1007 = vmul.f32 %v998, 1.442695
        %v1008 = vpow.pop %v1007
        %v1009 = vmul.f32 %v999, 1.442695
        %v1010 = vpow.pop %v1009
        %v1011 = vmul.f32 %v1000, 1.442695
        %v1012 = vpow.pop %v1011
        %v1013 = vmul.f32 %v1001, 1.442695
        %v1014 = vpow.pop %v1013
        %v1015 = vmul.f32 %v1002, 1.442695
        %v1016 = vpow.pop %v1015
        %v1017 = vmul.f32 %v1003, 1.442695
        %v1018 = vpow.pop %v1017
        %v1019 = vmul.f32 %v1004, 1.442695
        %v1020 = vpow.pop %v1019
        %v1021 = vpack.c.bf16 %v1008, %v1006
        %v1022 = vpack.c.bf16 %v1012, %v1010
        %v1023 = vpack.c.bf16 %v1016, %v1014
        %v1024 = vpack.c.bf16 %v1020, %v1018
        %v1025 = vunpack.c.l.bf16 %v1021
        %v1026 = vunpack.c.h.bf16 %v1021
        %v1027 = vunpack.c.l.bf16 %v1022
        %v1028 = vunpack.c.h.bf16 %v1022
        %v1029 = vunpack.c.l.bf16 %v1023
        %v1030 = vunpack.c.h.bf16 %v1023
        %v1031 = vunpack.c.l.bf16 %v1024
        %v1032 = vunpack.c.h.bf16 %v1024
        %v1033 = vsel %vm960, %v1025, 0.0
        %1034 = vadd.xlane.f32.xlu0 %v1033
        %v1035 = vpop.xlane.xlu0 %1034
        %v1036 = vsel %vm960, %v1026, 0.0
        %1037 = vadd.xlane.f32.xlu0 %v1036
        %v1038 = vpop.xlane.xlu0 %1037
        %v1039 = vsel %vm960, %v1027, 0.0
        %1040 = vadd.xlane.f32.xlu0 %v1039
        %v1041 = vpop.xlane.xlu0 %1040
        %v1042 = vsel %vm960, %v1028, 0.0
        %1043 = vadd.xlane.f32.xlu0 %v1042
        %v1044 = vpop.xlane.xlu0 %1043
        %v1045 = vsel %vm960, %v1029, 0.0
        %1046 = vadd.xlane.f32.xlu0 %v1045
        %v1047 = vpop.xlane.xlu0 %1046
        %v1048 = vsel %vm960, %v1030, 0.0
        %1049 = vadd.xlane.f32.xlu0 %v1048
        %v1050 = vpop.xlane.xlu0 %1049
        %v1051 = vsel %vm960, %v1031, 0.0
        %1052 = vadd.xlane.f32.xlu0 %v1051
        %v1053 = vpop.xlane.xlu0 %1052
        %v1054 = vsel %vm960, %v1032, 0.0
        %1055 = vadd.xlane.f32.xlu0 %v1054
        %v1056 = vpop.xlane.xlu0 %1055
        %v1065 = vunpack.c.l.b16 %v858
        %v1066 = vunpack.c.l.b16 %v859
        %v1067 = vunpack.c.l.b16 %v860
        %v1068 = vunpack.c.l.b16 %v861
        %v1069 = vunpack.c.l.b16 %v862
        %v1070 = vunpack.c.l.b16 %v863
        %v1071 = vunpack.c.l.b16 %v864
        %v1072 = vunpack.c.l.b16 %v865
        %v1073 = vpack.c.b16 %v1066, %v1065
        %v1074 = vpack.c.b16 %v1068, %v1067
        %v1075 = vpack.c.b16 %v1070, %v1069
        %v1076 = vpack.c.b16 %v1072, %v1071
        %v1082 = vsel %vm960, %v1021, 0
        %v1085 = vsel %vm960, %v1022, 0
        %v1088 = vsel %vm960, %v1023, 0
        %v1091 = vsel %vm960, %v1024, 0
        %1093 = vmatpush.bf16.msra.mxu0 0
        %1094 = vmatpush.bf16.msra.mxu0 0
        %1095 = vmatpush.bf16.msra.mxu0 0
        %1096 = vmatpush.bf16.msra.mxu0 0
        %1097 = vmatpush.bf16.msra.mxu0 %v1076
        %1098 = vmatpush.bf16.msra.mxu0 %v1075
        %1099 = vmatpush.bf16.msra.mxu0 %v1074
        %1100 = vmatpush.bf16.msra.mxu0 %v1073
        %1101 = vmatmul.bf16.gmra.mxu0 %v1082
        %v1102 = vpop.f32.mrf.mxu0
        %v1103 = vadd.f32 0.0, %v1102
        %v1104 = vpop.f32.mrf.mxu0
        %v1105 = vadd.f32 0.0, %v1104
        %1106 = vmatmul.bf16.gmra.mxu0 %v1085
        %v1107 = vpop.f32.mrf.mxu0
        %v1108 = vadd.f32 0.0, %v1107
        %v1109 = vpop.f32.mrf.mxu0
        %v1110 = vadd.f32 0.0, %v1109
        %1111 = vmatmul.bf16.gmra.mxu0 %v1088
        %v1112 = vpop.f32.mrf.mxu0
        %v1113 = vadd.f32 0.0, %v1112
        %v1114 = vpop.f32.mrf.mxu0
        %v1115 = vadd.f32 0.0, %v1114
        %1116 = vmatmul.bf16.gmra.mxu0 %v1091
        %v1117 = vpop.f32.mrf.mxu0
        %v1118 = vadd.f32 0.0, %v1117
        %v1119 = vpop.f32.mrf.mxu0
        %v1120 = vadd.f32 0.0, %v1119
        %1121 = vdwg.mxu0
        %v1122 = vrcp.pop %v1035
        %v1123 = vrcp.pop %v1038
        %v1124 = vrcp.pop %v1041
        %v1125 = vrcp.pop %v1044
        %v1126 = vrcp.pop %v1047
        %v1127 = vrcp.pop %v1050
        %v1128 = vrcp.pop %v1053
        %v1129 = vrcp.pop %v1056
        %v1130 = vmul.f32 %v1103, %v1122
        %v1131 = vmul.f32 %v1105, %v1123
        %v1132 = vmul.f32 %v1108, %v1124
        %v1133 = vmul.f32 %v1110, %v1125
        %v1134 = vmul.f32 %v1113, %v1126
        %v1135 = vmul.f32 %v1115, %v1127
        %v1136 = vmul.f32 %v1118, %v1128
        %v1137 = vmul.f32 %v1120, %v1129
        %v1138 = vpack.c.bf16 %v1130, %v1130
        %v1139 = vpack.c.bf16 %v1131, %v1131
        %v1140 = vpack.c.bf16 %v1132, %v1132
        %v1141 = vpack.c.bf16 %v1133, %v1133
        %v1142 = vpack.c.bf16 %v1134, %v1134
        %v1143 = vpack.c.bf16 %v1135, %v1135
        %v1144 = vpack.c.bf16 %v1136, %v1136
        %v1145 = vpack.c.bf16 %v1137, %v1137
        %vm1146 = vcmask 257024
        %1147 = vst.msk [vmem:[#allocation5] sm:$0xf] %vm1146, %v1138
        %1148 = vst.msk [vmem:[#allocation5 + $0x4] sm:$0xf] %vm1146, %v1139
        %1149 = vst.msk [vmem:[#allocation5 + $0x8] sm:$0xf] %vm1146, %v1140
        %1150 = vst.msk [vmem:[#allocation5 + $0xc] sm:$0xf] %vm1146, %v1141
        %1151 = vst.msk [vmem:[#allocation5 + $0x10] sm:$0xf] %vm1146, %v1142
        %1152 = vst.msk [vmem:[#allocation5 + $0x14] sm:$0xf] %vm1146, %v1143
        %1153 = vst.msk [vmem:[#allocation5 + $0x18] sm:$0xf] %vm1146, %v1144
        %1154 = vst.msk [vmem:[#allocation5 + $0x1c] sm:$0xf] %vm1146, %v1145
        %v1155 = vld [vmem:[%s841] sm:$0xf]
        %v1156 = vld [vmem:[%s841 + $0x4] sm:$0xf]
        %v1157 = vld [vmem:[%s841 + $0x8] sm:$0xf]
        %v1158 = vld [vmem:[%s841 + $0xc] sm:$0xf]
        %v1159 = vld [vmem:[%s841 + $0x10] sm:$0xf]
        %v1160 = vld [vmem:[%s841 + $0x14] sm:$0xf]
        %v1161 = vld [vmem:[%s841 + $0x18] sm:$0xf]
        %v1162 = vld [vmem:[%s841 + $0x1c] sm:$0xf]
        %v1163 = vld [vmem:[#allocation3] sm:$0xf]
        %v1164 = vld [vmem:[#allocation3 + $0x4] sm:$0xf]
        %v1165 = vld [vmem:[#allocation3 + $0x8] sm:$0xf]
        %v1166 = vld [vmem:[#allocation3 + $0xc] sm:$0xf]
        %v1167 = vld [vmem:[#allocation3 + $0x10] sm:$0xf]
        %v1168 = vld [vmem:[#allocation3 + $0x14] sm:$0xf]
        %v1169 = vld [vmem:[#allocation3 + $0x18] sm:$0xf]
        %v1170 = vld [vmem:[#allocation3 + $0x1c] sm:$0xf]
        %v1171 = vld [vmem:[#allocation4] sm:$0xf]
        %v1172 = vld [vmem:[#allocation4 + $0x4] sm:$0xf]
        %v1173 = vld [vmem:[#allocation4 + $0x8] sm:$0xf]
        %v1174 = vld [vmem:[#allocation4 + $0xc] sm:$0xf]
        %v1175 = vld [vmem:[#allocation4 + $0x10] sm:$0xf]
        %v1176 = vld [vmem:[#allocation4 + $0x14] sm:$0xf]
        %v1177 = vld [vmem:[#allocation4 + $0x18] sm:$0xf]
        %v1178 = vld [vmem:[#allocation4 + $0x1c] sm:$0xf]
        %v1187 = vunpack.c.l.b16 %v1155
        %v1188 = vunpack.c.l.b16 %v1156
        %v1189 = vunpack.c.l.b16 %v1157
        %v1190 = vunpack.c.l.b16 %v1158
        %v1191 = vunpack.c.l.b16 %v1159
        %v1192 = vunpack.c.l.b16 %v1160
        %v1193 = vunpack.c.l.b16 %v1161
        %v1194 = vunpack.c.l.b16 %v1162
        %v1195 = vpack.c.b16 %v1188, %v1187
        %v1196 = vpack.c.b16 %v1190, %v1189
        %v1197 = vpack.c.b16 %v1192, %v1191
        %v1198 = vpack.c.b16 %v1194, %v1193
        %1199 = vrot.lane.b32.xlu0 %v1195, 96
        %v1200 = vpop.permute.xlu0 %1199
        %1201 = vrot.lane.b32.xlu0 %v1196, 96
        %v1202 = vpop.permute.xlu0 %1201
        %1203 = vrot.lane.b32.xlu0 %v1197, 96
        %v1204 = vpop.permute.xlu0 %1203
        %1205 = vrot.lane.b32.xlu0 %v1198, 96
        %v1206 = vpop.permute.xlu0 %1205
        %v1215 = vunpack.c.l.b16 %v1163
        %v1216 = vunpack.c.l.b16 %v1164
        %v1217 = vunpack.c.l.b16 %v1165
        %v1218 = vunpack.c.l.b16 %v1166
        %v1219 = vunpack.c.l.b16 %v1167
        %v1220 = vunpack.c.l.b16 %v1168
        %v1221 = vunpack.c.l.b16 %v1169
        %v1222 = vunpack.c.l.b16 %v1170
        %v1223 = vpack.c.b16 %v1216, %v1215
        %v1224 = vpack.c.b16 %v1218, %v1217
        %v1225 = vpack.c.b16 %v1220, %v1219
        %v1226 = vpack.c.b16 %v1222, %v1221
        %1227 = vrot.lane.b32.xlu0 %v1223, 96
        %v1228 = vpop.permute.xlu0 %1227
        %1229 = vrot.lane.b32.xlu0 %v1224, 96
        %v1230 = vpop.permute.xlu0 %1229
        %1231 = vrot.lane.b32.xlu0 %v1225, 96
        %v1232 = vpop.permute.xlu0 %1231
        %1233 = vrot.lane.b32.xlu0 %v1226, 96
        %v1234 = vpop.permute.xlu0 %1233
        %v1236 = vsel %vm906, %v1200, 0
        %v1239 = vsel %vm906, %v1202, 0
        %v1242 = vsel %vm906, %v1204, 0
        %v1245 = vsel %vm906, %v1206, 0
        %v1248 = vsel %vm906, %v1228, 0
        %v1251 = vsel %vm906, %v1230, 0
        %v1254 = vsel %vm906, %v1232, 0
        %v1257 = vsel %vm906, %v1234, 0
        %1259 = vmatpush.bf16.xpose.msra.mxu0 0
        %1260 = vmatpush.bf16.xpose.msra.mxu0 0
        %1261 = vmatpush.bf16.xpose.msra.mxu0 0
        %1262 = vmatpush.bf16.xpose.msra.mxu0 0
        %1263 = vmatpush.bf16.xpose.msra.mxu0 %v1257
        %1264 = vmatpush.bf16.xpose.msra.mxu0 %v1254
        %1265 = vmatpush.bf16.xpose.msra.mxu0 %v1251
        %1266 = vmatpush.bf16.xpose.msra.mxu0 %v1248
        %1267 = vmatmul.bf16.gmra.mxu0 %v1236
        %v1268 = vpop.f32.mrf.mxu0
        %v1269 = vadd.f32 0.0, %v1268
        %v1270 = vpop.f32.mrf.mxu0
        %v1271 = vadd.f32 0.0, %v1270
        %1272 = vmatmul.bf16.gmra.mxu0 %v1239
        %v1273 = vpop.f32.mrf.mxu0
        %v1274 = vadd.f32 0.0, %v1273
        %v1275 = vpop.f32.mrf.mxu0
        %v1276 = vadd.f32 0.0, %v1275
        %1277 = vmatmul.bf16.gmra.mxu0 %v1242
        %v1278 = vpop.f32.mrf.mxu0
        %v1279 = vadd.f32 0.0, %v1278
        %v1280 = vpop.f32.mrf.mxu0
        %v1281 = vadd.f32 0.0, %v1280
        %1282 = vmatmul.bf16.gmra.mxu0 %v1245
        %v1283 = vpop.f32.mrf.mxu0
        %v1284 = vadd.f32 0.0, %v1283
        %v1285 = vpop.f32.mrf.mxu0
        %v1286 = vadd.f32 0.0, %v1285
        %1287 = vdwg.mxu0
        %v1288 = vsel %vm960, %v1269, -inf
        %1289 = vmax.xlane.f32.xlu0 %v1288
        %v1290 = vpop.xlane.xlu0 %1289
        %v1291 = vsel %vm960, %v1271, -inf
        %1292 = vmax.xlane.f32.xlu0 %v1291
        %v1293 = vpop.xlane.xlu0 %1292
        %v1294 = vsel %vm960, %v1274, -inf
        %1295 = vmax.xlane.f32.xlu0 %v1294
        %v1296 = vpop.xlane.xlu0 %1295
        %v1297 = vsel %vm960, %v1276, -inf
        %1298 = vmax.xlane.f32.xlu0 %v1297
        %v1299 = vpop.xlane.xlu0 %1298
        %v1300 = vsel %vm960, %v1279, -inf
        %1301 = vmax.xlane.f32.xlu0 %v1300
        %v1302 = vpop.xlane.xlu0 %1301
        %v1303 = vsel %vm960, %v1281, -inf
        %1304 = vmax.xlane.f32.xlu0 %v1303
        %v1305 = vpop.xlane.xlu0 %1304
        %v1306 = vsel %vm960, %v1284, -inf
        %1307 = vmax.xlane.f32.xlu0 %v1306
        %v1308 = vpop.xlane.xlu0 %1307
        %v1309 = vsel %vm960, %v1286, -inf
        %1310 = vmax.xlane.f32.xlu0 %v1309
        %v1311 = vpop.xlane.xlu0 %1310
        %v1312 = vsub.f32 %v1269, %v1290
        %v1313 = vsub.f32 %v1271, %v1293
        %v1314 = vsub.f32 %v1274, %v1296
        %v1315 = vsub.f32 %v1276, %v1299
        %v1316 = vsub.f32 %v1279, %v1302
        %v1317 = vsub.f32 %v1281, %v1305
        %v1318 = vsub.f32 %v1284, %v1308
        %v1319 = vsub.f32 %v1286, %v1311
        %v1320 = vpack.c.bf16 %v1313, %v1312
        %v1321 = vpack.c.bf16 %v1315, %v1314
        %v1322 = vpack.c.bf16 %v1317, %v1316
        %v1323 = vpack.c.bf16 %v1319, %v1318
        %v1324 = vunpack.c.l.bf16 %v1320
        %v1325 = vunpack.c.h.bf16 %v1320
        %v1326 = vunpack.c.l.bf16 %v1321
        %v1327 = vunpack.c.h.bf16 %v1321
        %v1328 = vunpack.c.l.bf16 %v1322
        %v1329 = vunpack.c.h.bf16 %v1322
        %v1330 = vunpack.c.l.bf16 %v1323
        %v1331 = vunpack.c.h.bf16 %v1323
        %v1332 = vmul.f32 %v1324, 1.442695
        %v1333 = vpow.pop %v1332
        %v1334 = vmul.f32 %v1325, 1.442695
        %v1335 = vpow.pop %v1334
        %v1336 = vmul.f32 %v1326, 1.442695
        %v1337 = vpow.pop %v1336
        %v1338 = vmul.f32 %v1327, 1.442695
        %v1339 = vpow.pop %v1338
        %v1340 = vmul.f32 %v1328, 1.442695
        %v1341 = vpow.pop %v1340
        %v1342 = vmul.f32 %v1329, 1.442695
        %v1343 = vpow.pop %v1342
        %v1344 = vmul.f32 %v1330, 1.442695
        %v1345 = vpow.pop %v1344
        %v1346 = vmul.f32 %v1331, 1.442695
        %v1347 = vpow.pop %v1346
        %v1348 = vpack.c.bf16 %v1335, %v1333
        %v1349 = vpack.c.bf16 %v1339, %v1337
        %v1350 = vpack.c.bf16 %v1343, %v1341
        %v1351 = vpack.c.bf16 %v1347, %v1345
        %v1352 = vunpack.c.l.bf16 %v1348
        %v1353 = vunpack.c.h.bf16 %v1348
        %v1354 = vunpack.c.l.bf16 %v1349
        %v1355 = vunpack.c.h.bf16 %v1349
        %v1356 = vunpack.c.l.bf16 %v1350
        %v1357 = vunpack.c.h.bf16 %v1350
        %v1358 = vunpack.c.l.bf16 %v1351
        %v1359 = vunpack.c.h.bf16 %v1351
        %v1360 = vsel %vm960, %v1352, 0.0
        %1361 = vadd.xlane.f32.xlu0 %v1360
        %v1362 = vpop.xlane.xlu0 %1361
        %v1363 = vsel %vm960, %v1353, 0.0
        %1364 = vadd.xlane.f32.xlu0 %v1363
        %v1365 = vpop.xlane.xlu0 %1364
        %v1366 = vsel %vm960, %v1354, 0.0
        %1367 = vadd.xlane.f32.xlu0 %v1366
        %v1368 = vpop.xlane.xlu0 %1367
        %v1369 = vsel %vm960, %v1355, 0.0
        %1370 = vadd.xlane.f32.xlu0 %v1369
        %v1371 = vpop.xlane.xlu0 %1370
        %v1372 = vsel %vm960, %v1356, 0.0
        %1373 = vadd.xlane.f32.xlu0 %v1372
        %v1374 = vpop.xlane.xlu0 %1373
        %v1375 = vsel %vm960, %v1357, 0.0
        %1376 = vadd.xlane.f32.xlu0 %v1375
        %v1377 = vpop.xlane.xlu0 %1376
        %v1378 = vsel %vm960, %v1358, 0.0
        %1379 = vadd.xlane.f32.xlu0 %v1378
        %v1380 = vpop.xlane.xlu0 %1379
        %v1381 = vsel %vm960, %v1359, 0.0
        %1382 = vadd.xlane.f32.xlu0 %v1381
        %v1383 = vpop.xlane.xlu0 %1382
        %v1392 = vunpack.c.l.b16 %v1171
        %v1393 = vunpack.c.l.b16 %v1172
        %v1394 = vunpack.c.l.b16 %v1173
        %v1395 = vunpack.c.l.b16 %v1174
        %v1396 = vunpack.c.l.b16 %v1175
        %v1397 = vunpack.c.l.b16 %v1176
        %v1398 = vunpack.c.l.b16 %v1177
        %v1399 = vunpack.c.l.b16 %v1178
        %v1400 = vpack.c.b16 %v1393, %v1392
        %v1401 = vpack.c.b16 %v1395, %v1394
        %v1402 = vpack.c.b16 %v1397, %v1396
        %v1403 = vpack.c.b16 %v1399, %v1398
        %1404 = vrot.lane.b32.xlu0 %v1400, 96
        %v1405 = vpop.permute.xlu0 %1404
        %1406 = vrot.lane.b32.xlu0 %v1401, 96
        %v1407 = vpop.permute.xlu0 %1406
        %1408 = vrot.lane.b32.xlu0 %v1402, 96
        %v1409 = vpop.permute.xlu0 %1408
        %1410 = vrot.lane.b32.xlu0 %v1403, 96
        %v1411 = vpop.permute.xlu0 %1410
        %v1417 = vsel %vm960, %v1348, 0
        %v1420 = vsel %vm960, %v1349, 0
        %v1423 = vsel %vm960, %v1350, 0
        %v1426 = vsel %vm960, %v1351, 0
        %1428 = vmatpush.bf16.msra.mxu0 0
        %1429 = vmatpush.bf16.msra.mxu0 0
        %1430 = vmatpush.bf16.msra.mxu0 0
        %1431 = vmatpush.bf16.msra.mxu0 0
        %1432 = vmatpush.bf16.msra.mxu0 %v1411
        %1433 = vmatpush.bf16.msra.mxu0 %v1409
        %1434 = vmatpush.bf16.msra.mxu0 %v1407
        %1435 = vmatpush.bf16.msra.mxu0 %v1405
        %1436 = vmatmul.bf16.gmra.mxu0 %v1417
        %v1437 = vpop.f32.mrf.mxu0
        %v1438 = vadd.f32 0.0, %v1437
        %v1439 = vpop.f32.mrf.mxu0
        %v1440 = vadd.f32 0.0, %v1439
        %1441 = vmatmul.bf16.gmra.mxu0 %v1420
        %v1442 = vpop.f32.mrf.mxu0
        %v1443 = vadd.f32 0.0, %v1442
        %v1444 = vpop.f32.mrf.mxu0
        %v1445 = vadd.f32 0.0, %v1444
        %1446 = vmatmul.bf16.gmra.mxu0 %v1423
        %v1447 = vpop.f32.mrf.mxu0
        %v1448 = vadd.f32 0.0, %v1447
        %v1449 = vpop.f32.mrf.mxu0
        %v1450 = vadd.f32 0.0, %v1449
        %1451 = vmatmul.bf16.gmra.mxu0 %v1426
        %v1452 = vpop.f32.mrf.mxu0
        %v1453 = vadd.f32 0.0, %v1452
        %v1454 = vpop.f32.mrf.mxu0
        %v1455 = vadd.f32 0.0, %v1454
        %1456 = vdwg.mxu0
        %v1457 = vrcp.pop %v1362
        %v1458 = vrcp.pop %v1365
        %v1459 = vrcp.pop %v1368
        %v1460 = vrcp.pop %v1371
        %v1461 = vrcp.pop %v1374
        %v1462 = vrcp.pop %v1377
        %v1463 = vrcp.pop %v1380
        %v1464 = vrcp.pop %v1383
        %v1465 = vmul.f32 %v1438, %v1457
        %v1466 = vmul.f32 %v1440, %v1458
        %v1467 = vmul.f32 %v1443, %v1459
        %v1468 = vmul.f32 %v1445, %v1460
        %v1469 = vmul.f32 %v1448, %v1461
        %v1470 = vmul.f32 %v1450, %v1462
        %v1471 = vmul.f32 %v1453, %v1463
        %v1472 = vmul.f32 %v1455, %v1464
        %v1473 = vpack.c.bf16 %v1465, %v1465
        %v1474 = vpack.c.bf16 %v1466, %v1466
        %v1475 = vpack.c.bf16 %v1467, %v1467
        %v1476 = vpack.c.bf16 %v1468, %v1468
        %v1477 = vpack.c.bf16 %v1469, %v1469
        %v1478 = vpack.c.bf16 %v1470, %v1470
        %v1479 = vpack.c.bf16 %v1471, %v1471
        %v1480 = vpack.c.bf16 %v1472, %v1472
        %1489 = vrot.lane.b32.xlu0 %v1473, 32
        %v1490 = vpop.permute.xlu0 %1489
        %1491 = vrot.lane.b32.xlu0 %v1474, 32
        %v1492 = vpop.permute.xlu0 %1491
        %1493 = vrot.lane.b32.xlu0 %v1475, 32
        %v1494 = vpop.permute.xlu0 %1493
        %1495 = vrot.lane.b32.xlu0 %v1476, 32
        %v1496 = vpop.permute.xlu0 %1495
        %1497 = vrot.lane.b32.xlu0 %v1477, 32
        %v1498 = vpop.permute.xlu0 %1497
        %1499 = vrot.lane.b32.xlu0 %v1478, 32
        %v1500 = vpop.permute.xlu0 %1499
        %1501 = vrot.lane.b32.xlu0 %v1479, 32
        %v1502 = vpop.permute.xlu0 %1501
        %1503 = vrot.lane.b32.xlu0 %v1480, 32
        %v1504 = vpop.permute.xlu0 %1503
        %vm1513 = vcmask 519424
        %1514 = vst.msk [vmem:[#allocation5] sm:$0xf] %vm1513, %v1490
        %1515 = vst.msk [vmem:[#allocation5 + $0x4] sm:$0xf] %vm1513, %v1492
        %1516 = vst.msk [vmem:[#allocation5 + $0x8] sm:$0xf] %vm1513, %v1494
        %1517 = vst.msk [vmem:[#allocation5 + $0xc] sm:$0xf] %vm1513, %v1496
        %1518 = vst.msk [vmem:[#allocation5 + $0x10] sm:$0xf] %vm1513, %v1498
        %1519 = vst.msk [vmem:[#allocation5 + $0x14] sm:$0xf] %vm1513, %v1500
        %1520 = vst.msk [vmem:[#allocation5 + $0x18] sm:$0xf] %vm1513, %v1502
        %1521 = vst.msk [vmem:[#allocation5 + $0x1c] sm:$0xf] %vm1513, %v1504
        %v1522 = vld [vmem:[#allocation5] sm:$0xf]
        %v1523 = vld [vmem:[#allocation5 + $0x4] sm:$0xf]
        %v1524 = vld [vmem:[#allocation5 + $0x8] sm:$0xf]
        %v1525 = vld [vmem:[#allocation5 + $0xc] sm:$0xf]
        %v1526 = vld [vmem:[#allocation5 + $0x10] sm:$0xf]
        %v1527 = vld [vmem:[#allocation5 + $0x14] sm:$0xf]
        %v1528 = vld [vmem:[#allocation5 + $0x18] sm:$0xf]
        %v1529 = vld [vmem:[#allocation5 + $0x1c] sm:$0xf]
        %v1530 = vld [vmem:[#allocation11] sm:$0xf]
        %v1531 = vld [vmem:[#allocation11 + $0x4] sm:$0xf]
        %v1532 = vld [vmem:[#allocation11 + $0x8] sm:$0xf]
        %v1533 = vld [vmem:[#allocation11 + $0xc] sm:$0xf]
        %v1534 = vld [vmem:[#allocation11 + $0x10] sm:$0xf]
        %v1535 = vld [vmem:[#allocation11 + $0x14] sm:$0xf]
        %v1536 = vld [vmem:[#allocation11 + $0x18] sm:$0xf]
        %v1537 = vld [vmem:[#allocation11 + $0x1c] sm:$0xf]
        %v1546 = vunpack.c.l.b16 %v1522
        %v1547 = vunpack.c.l.b16 %v1523
        %v1548 = vunpack.c.l.b16 %v1524
        %v1549 = vunpack.c.l.b16 %v1525
        %v1550 = vunpack.c.l.b16 %v1526
        %v1551 = vunpack.c.l.b16 %v1527
        %v1552 = vunpack.c.l.b16 %v1528
        %v1553 = vunpack.c.l.b16 %v1529
        %v1554 = vpack.c.b16 %v1547, %v1546
        %v1555 = vpack.c.b16 %v1549, %v1548
        %v1556 = vpack.c.b16 %v1551, %v1550
        %v1557 = vpack.c.b16 %v1553, %v1552
        %v1566 = vunpack.c.l.b16 %v1530
        %v1567 = vunpack.c.l.b16 %v1531
        %v1568 = vunpack.c.l.b16 %v1532
        %v1569 = vunpack.c.l.b16 %v1533
        %v1570 = vunpack.c.l.b16 %v1534
        %v1571 = vunpack.c.l.b16 %v1535
        %v1572 = vunpack.c.l.b16 %v1536
        %v1573 = vunpack.c.l.b16 %v1537
        %v1574 = vpack.c.b16 %v1567, %v1566
        %v1575 = vpack.c.b16 %v1569, %v1568
        %v1576 = vpack.c.b16 %v1571, %v1570
        %v1577 = vpack.c.b16 %v1573, %v1572
        %v1583 = vsel %vm960, %v1554, 0
        %v1586 = vsel %vm960, %v1555, 0
        %v1589 = vsel %vm960, %v1556, 0
        %v1592 = vsel %vm960, %v1557, 0
        %1594 = vmatpush.bf16.msra.mxu0 0
        %1595 = vmatpush.bf16.msra.mxu0 0
        %1596 = vmatpush.bf16.msra.mxu0 0
        %1597 = vmatpush.bf16.msra.mxu0 0
        %1598 = vmatpush.bf16.msra.mxu0 %v1577
        %1599 = vmatpush.bf16.msra.mxu0 %v1576
        %1600 = vmatpush.bf16.msra.mxu0 %v1575
        %1601 = vmatpush.bf16.msra.mxu0 %v1574
        %1602 = vmatmul.bf16.gmra.mxu0 %v1583
        %v1603 = vpop.f32.mrf.mxu0
        %v1604 = vadd.f32 0.0, %v1603
        %v1605 = vpop.f32.mrf.mxu0
        %v1606 = vadd.f32 0.0, %v1605
        %1607 = vmatmul.bf16.gmra.mxu0 %v1586
        %v1608 = vpop.f32.mrf.mxu0
        %v1609 = vadd.f32 0.0, %v1608
        %v1610 = vpop.f32.mrf.mxu0
        %v1611 = vadd.f32 0.0, %v1610
        %1612 = vmatmul.bf16.gmra.mxu0 %v1589
        %v1613 = vpop.f32.mrf.mxu0
        %v1614 = vadd.f32 0.0, %v1613
        %v1615 = vpop.f32.mrf.mxu0
        %v1616 = vadd.f32 0.0, %v1615
        %1617 = vmatmul.bf16.gmra.mxu0 %v1592
        %v1618 = vpop.f32.mrf.mxu0
        %v1619 = vadd.f32 0.0, %v1618
        %v1620 = vpop.f32.mrf.mxu0
        %v1621 = vadd.f32 0.0, %v1620
        %1622 = vdwg.mxu0
        %s1623 = smul.addr %s838, 4
        %s1624 = scalar_lea.vmem %s392, %s1623
        %v1625 = vld [vmem:[%s1624] sm:$0xf]
        %v1626 = vld [vmem:[%s1624 + $0x4] sm:$0xf]
        %v1627 = vld [vmem:[%s1624 + $0x8] sm:$0xf]
        %v1628 = vld [vmem:[%s1624 + $0xc] sm:$0xf]
        %v1629 = vld [vmem:[%s1624 + $0x10] sm:$0xf]
        %v1630 = vld [vmem:[%s1624 + $0x14] sm:$0xf]
        %v1631 = vld [vmem:[%s1624 + $0x18] sm:$0xf]
        %v1632 = vld [vmem:[%s1624 + $0x1c] sm:$0xf]
        %v1633 = vunpack.c.l.bf16 %v1625
        %v1634 = vunpack.c.l.bf16 %v1626
        %v1635 = vunpack.c.l.bf16 %v1627
        %v1636 = vunpack.c.l.bf16 %v1628
        %v1637 = vunpack.c.l.bf16 %v1629
        %v1638 = vunpack.c.l.bf16 %v1630
        %v1639 = vunpack.c.l.bf16 %v1631
        %v1640 = vunpack.c.l.bf16 %v1632
        %v1641 = vadd.f32 %v1633, %v1604
        %v1642 = vadd.f32 %v1634, %v1606
        %v1643 = vadd.f32 %v1635, %v1609
        %v1644 = vadd.f32 %v1636, %v1611
        %v1645 = vadd.f32 %v1637, %v1614
        %v1646 = vadd.f32 %v1638, %v1616
        %v1647 = vadd.f32 %v1639, %v1619
        %v1648 = vadd.f32 %v1640, %v1621
        %v1649 = vld [vmem:[%s8] sm:$0x1]
        %v1651 = vperm.slane %v1649, 0
        %v1653 = vadd.f32 %v1641, %v1651
        %v1654 = vadd.f32 %v1642, %v1651
        %v1655 = vadd.f32 %v1643, %v1651
        %v1656 = vadd.f32 %v1644, %v1651
        %v1657 = vadd.f32 %v1645, %v1651
        %v1658 = vadd.f32 %v1646, %v1651
        %v1659 = vadd.f32 %v1647, %v1651
        %v1660 = vadd.f32 %v1648, %v1651
        %1661 = vst.msk [vmem:[%s387] sm:$0xff] %vm960, %v1653
        %1662 = vst.msk [vmem:[%s387 + $0x8] sm:$0xff] %vm960, %v1654
        %1663 = vst.msk [vmem:[%s387 + $0x10] sm:$0xff] %vm960, %v1655
        %1664 = vst.msk [vmem:[%s387 + $0x18] sm:$0xff] %vm960, %v1656
        %1665 = vst.msk [vmem:[%s387 + $0x20] sm:$0xff] %vm960, %v1657
        %1666 = vst.msk [vmem:[%s387 + $0x28] sm:$0xff] %vm960, %v1658
        %1667 = vst.msk [vmem:[%s387 + $0x30] sm:$0xff] %vm960, %v1659
        %1668 = vst.msk [vmem:[%s387 + $0x38] sm:$0xff] %vm960, %v1660
        %s1669 = sand.u32 %s241, 1
        %s1670 = scalar_lea.sflag [#allocation8], %s1669
        %s1671 = sand.u32 %s241, 1
        %s1672 = smul.addr %s1671, 64
        %s1673 = scalar_lea.vmem [#allocation12], %s1672
        // Predicated region
        $region73: #{tpu_custom_call.1} parent=55 // pred_check
          %p1674 = pneg %p251
        $region74: #{tpu_custom_call.1} parent=55 // pred_check_branch
          %1676 = sbr.rel (%p1674) target = $region76
        $region75: #{tpu_custom_call.1} parent=55 // pred_region
          %s1677 = smul.u32 8, %s30
          %1679 = vsyncadd %s1670, 0
          %s1680 = smul.addr %s29, 8
          %s1681 = sadd.s32 %s1677, %s1680
          %s1682 = smul.addr %s1681, 8
          %s1683 = scalar_lea.hbm %s9, %s1682
          %s1684 = sshll.u32 %s1673, 4
          %s1685 = int_to_ptr.vmem [resolvable:$true] %s1684
          %s1686 = sshll.u32 %s1683, 4
          %s1687 = int_to_ptr.hbm [resolvable:$true] %s1686
          %1692 = dma.vmem_to_hbm [thread:$0]  %s1685, 1024, %s1687, %s1670, 128, 128, 8
        $region76: #{tpu_custom_call.1} parent=55 // pred_fallthru
          _
      $region56: #{tpu_custom_call.1} parent=5 // pred_fallthru
        _
      %p1693 = scmp.le.s32.totalorder 2, %s20
      // Predicated region
      $region77: #{tpu_custom_call.1} parent=5 // pred_check
        %p1694 = pneg %p1693
      $region78: #{tpu_custom_call.1} parent=5 // pred_check_branch
        %1696 = sbr.rel (%p1694) target = $region80
      $region79: #{tpu_custom_call.1} parent=5 // pred_region
        %s1697 = ssub.s32 %s20, 2
        // Predicated region
        $region81: #{tpu_custom_call.1} parent=79 // pred_check
          %p1698 = pneg %p257
        $region82: #{tpu_custom_call.1} parent=79 // pred_check_branch
          %1700 = sbr.rel (%p1698) target = $region84
        $region83: #{tpu_custom_call.1} parent=79 // pred_region
          %s1701 = sand.u32 %s242, 1
          %s1702 = scalar_lea.sflag [#allocation8], %s1701
          %s1703 = sand.u32 %s242, 1
          %s1704 = smul.addr %s1703, 64
          %s1705 = scalar_lea.vmem [#allocation12], %s1704
          %1707 = dma.done %s1702, 1024
        $region84: #{tpu_custom_call.1} parent=79 // pred_fallthru
          _
      $region80: #{tpu_custom_call.1} parent=5 // pred_fallthru
        _
    $region6: #{tpu_custom_call.1} parent=1 // loop_footer
      %s24 = sadd.s32 1, %s20
    $region7: #{tpu_custom_call.1} parent=1 // loop_footer_branch
      %19 = sbr.rel target = $region3
    $region8: #{tpu_custom_call.1} parent=1 // loop_exit
      _
    %1708 = vsyncpa [#allocation7], 1
    %s1709 = scalar_lea.sflag [#allocation7], 1
    %1710 = vsyncpa %s1709, 1
    %1711 = vsyncpa [#allocation10], 1
    %1712 = vsyncpa [#allocation8], 1
    %s1713 = scalar_lea.sflag [#allocation8], 1
    %1714 = vsyncpa %s1713, 1

// kernel: tpu_custom_call.1
$region0: #{tpu_custom_call.1}
  #allocation0 [shape = 'u32[]', space=smem, size = 0x4, offset = 0x4, fixed_abs, tag = 'smem constant byte address 0x4 - core index']
  #allocation1 [shape = 'u32[72,128]{1,0:T(1,128)}', space=vmem, size = 0x9000, scoped, tag = 'internal scratch']
  #allocation2 [shape = 'bf16[64,64]{1,0:T(8,128)(2,1)}', space=vmem, size = 0x4000, scoped, tag = 'scratch operand']
  #allocation3 [shape = 'bf16[64,64]{1,0:T(8,128)(2,1)}', space=vmem, size = 0x4000, scoped, tag = 'scratch operand']
  #allocation4 [shape = 'bf16[64,64]{1,0:T(8,128)(2,1)}', space=vmem, size = 0x4000, scoped, tag = 'scratch operand']
  #allocation5 [shape = 'bf16[64,64]{1,0:T(8,128)(2,1)}', space=vmem, size = 0x4000, scoped, tag = 'scratch operand']
  %s0 = inlined_call_operand.vmem [shape: bf16[2,64,64], index: 0, kind: input, shape index: {}]
  %s1 = inlined_call_operand.hbm [shape: f32[1,64], index: 1, kind: input, shape index: {}]
  %s2 = inlined_call_operand.vmem [shape: f32[1,64], index: 2, kind: input, shape index: {}]
  %s3 = inlined_call_operand.vmem [shape: f32[64,32], index: 3, kind: input, shape index: {}]
  %s4 = inlined_call_operand.vmem [shape: f32[32,64], index: 4, kind: input, shape index: {}]
  %s5 = inlined_call_operand.hbm [shape: bf16[64,192], index: 5, kind: input, shape index: {}]
  %s6 = inlined_call_operand.vmem [shape: f32[1,192], index: 6, kind: input, shape index: {}]
  %s7 = inlined_call_operand.hbm [shape: bf16[64,64], index: 7, kind: input, shape index: {}]
  %s8 = inlined_call_operand.vmem [shape: f32[1,64], index: 8, kind: input, shape index: {}]
  %s9 = inlined_call_operand.hbm [shape: f32[2,64,64], index: 9, kind: output, shape index: {}]
  %s10 = sld [smem:[#allocation0]]
  $region85: #{tpu_custom_call.1} parent=0
    _
  %s12 = ssub.s32 1, %s10
  %s13 = scalar_select 0, %s12, %s10
  $region1: #{tpu_custom_call.1} parent=0
    #allocation6 [shape = 'u8[512]{0}', space=vmem, size = 0x400, scoped, tag = 'input window, operand 1, single buffered']
    #allocation7 [shape = 's32[2]{0}', space=sflag, size = 0x8, scoped, tag = 'scoped memory for tpu_custom_call.1']
    #allocation8 [shape = 's32[2]{0}', space=sflag, size = 0x8, scoped, tag = 'scoped memory for tpu_custom_call.1']
    #allocation9 [shape = 'u8[32768]{0}', space=vmem, size = 0x8000, scoped, tag = 'input window, operand 5, single buffered']
    #allocation10 [shape = 's32[1]{0}', space=sflag, size = 0x4, scoped, tag = 'scoped memory for tpu_custom_call.1']
    #allocation11 [shape = 'u8[16384]{0}', space=vmem, size = 0x4000, scoped, tag = 'input window, operand 7, single buffered']
    #allocation12 [shape = 'u8[65536]{0}', space=vmem, size = 0x10000, scoped, tag = 'output window, operand 0']
    %14 = vsyncpa [#allocation7], 0
    %15 = vsyncpa [#allocation10], 0
    %16 = vsyncpa [#allocation8], 0
    %s17 = scalar_lea.sflag [#allocation8], 1
    %18 = vsyncpa %s17, 0
    loop: start=0, step=1, limit=4
    $region2: #{tpu_custom_call.1} parent=1 // loop_pre_header
      _
    $region3: #{tpu_custom_call.1} parent=1 // loop_header
      %s20 = sphi 0, %s24
      %p21 = scmp.ge.s32.totalorder %s20, 4
      %s27 = sphi 0, %s39
      %s28 = sphi 0, %s35
      %s29 = sphi 0, %s27
      %s30 = sphi 0, %s28
      %s31 = sphi 0, %s29
      %s32 = sphi 0, %s30
      %s42 = sphi 0, %s44
      %s45 = sphi 0, %s42
      %s46 = sphi 0, %s45
      %s62 = sphi 0, %s46
      %s66 = sphi 0, %s66
      %s68 = sphi 0, %s66
      %s69 = sphi 0, %s68
      %s83 = sphi 0, %s69
      %s87 = sphi 0, %s87
      %s89 = sphi 0, %s87
      %s90 = sphi 0, %s89
      %s104 = sphi 0, %s90
      %s108 = sphi 0, %s108
      %s110 = sphi 0, %s108
      %s111 = sphi 0, %s110
      %s125 = sphi 0, %s111
      %s129 = sphi 0, %s129
      %s131 = sphi 0, %s129
      %s132 = sphi 0, %s131
      %s146 = sphi 0, %s132
      %s150 = sphi 0, %s150
      %s152 = sphi 0, %s150
      %s153 = sphi 0, %s152
      %s167 = sphi 0, %s153
      %s171 = sphi 0, %s171
      %s173 = sphi 0, %s171
      %s174 = sphi 0, %s173
      %s188 = sphi 0, %s174
      %s192 = sphi 0, %s192
      %s194 = sphi 0, %s192
      %s195 = sphi 0, %s194
      %s209 = sphi 0, %s195
      %s213 = sphi 0, %s213
      %s215 = sphi 0, %s213
      %s216 = sphi 0, %s215
      %s230 = sphi 0, %s216
      %s238 = sphi 0, %s240
      %s241 = sphi 0, %s238
      %s242 = sphi 0, %s241
      %s258 = sphi 0, %s242
    $region4: #{tpu_custom_call.1} parent=1 // loop_header_branch
      %23 = sbr.rel (%p21) target = $region8
    $region5: #{tpu_custom_call.1} parent=1 // loop_body
      %s25 = ssub.s32 %s20, 1
      %s26 = ssub.s32 %s20, 2
      %s33 = sadd.s32 1, %s28
      %p34 = scmp.ge.s32.totalorder %s33, 1
      %s35 = scalar_select %p34, 0, %s33
      %s36 = sadd.s32 1, %s27
      %s37 = scalar_select %p34, %s36, %s27
      %p38 = scmp.ge.s32.totalorder %s37, 2
      %s39 = scalar_select %p38, 0, %s37
      %s40 = ssub.s32 %s27, %s39
      %p41 = scmp.eq.s32.totalorder %s40, 0
      %s43 = sadd.s32 %s42, 1
      %s44 = scalar_select %p41, %s42, %s43
      %p47 = pneg %p41
      %p48 = scmp.eq.s32.totalorder %s20, 1
      %p49 = por %p47, %p48
      %p50 = scmp.ne.s32.totalorder %s42, %s45
      %p51 = scmp.eq.s32.totalorder %s20, 0
      %p52 = por %p50, %p51
      %p53 = scmp.ne.s32.totalorder %s42, %s45
      %p54 = scmp.eq.s32.totalorder %s25, 1
      %p55 = por %p53, %p54
      %p56 = scmp.ne.s32.totalorder %s45, %s46
      %p57 = scmp.eq.s32.totalorder %s25, 0
      %p58 = por %p56, %p57
      %p59 = scmp.ne.s32.totalorder %s45, %s46
      %p60 = scmp.eq.s32.totalorder %s26, 1
      %p61 = por %p59, %p60
      %p63 = scmp.ne.s32.totalorder %s46, %s62
      %p64 = scmp.eq.s32.totalorder %s26, 0
      %p65 = por %p63, %p64
      %s67 = sadd.s32 %s66, 1
      %p70 = scmp.eq.s32.totalorder %s20, 1
      %p71 = scmp.ne.s32.totalorder %s66, %s68
      %p72 = scmp.eq.s32.totalorder %s20, 0
      %p73 = por %p71, %p72
      %p74 = scmp.ne.s32.totalorder %s66, %s68
      %p75 = scmp.eq.s32.totalorder %s25, 1
      %p76 = por %p74, %p75
      %p77 = scmp.ne.s32.totalorder %s68, %s69
      %p78 = scmp.eq.s32.totalorder %s25, 0
      %p79 = por %p77, %p78
      %p80 = scmp.ne.s32.totalorder %s68, %s69
      %p81 = scmp.eq.s32.totalorder %s26, 1
      %p82 = por %p80, %p81
      %p84 = scmp.ne.s32.totalorder %s69, %s83
      %p85 = scmp.eq.s32.totalorder %s26, 0
      %p86 = por %p84, %p85
      %s88 = sadd.s32 %s87, 1
      %p91 = scmp.eq.s32.totalorder %s20, 1
      %p92 = scmp.ne.s32.totalorder %s87, %s89
      %p93 = scmp.eq.s32.totalorder %s20, 0
      %p94 = por %p92, %p93
      %p95 = scmp.ne.s32.totalorder %s87, %s89
      %p96 = scmp.eq.s32.totalorder %s25, 1
      %p97 = por %p95, %p96
      %p98 = scmp.ne.s32.totalorder %s89, %s90
      %p99 = scmp.eq.s32.totalorder %s25, 0
      %p100 = por %p98, %p99
      %p101 = scmp.ne.s32.totalorder %s89, %s90
      %p102 = scmp.eq.s32.totalorder %s26, 1
      %p103 = por %p101, %p102
      %p105 = scmp.ne.s32.totalorder %s90, %s104
      %p106 = scmp.eq.s32.totalorder %s26, 0
      %p107 = por %p105, %p106
      %s109 = sadd.s32 %s108, 1
      %p112 = scmp.eq.s32.totalorder %s20, 1
      %p113 = scmp.ne.s32.totalorder %s108, %s110
      %p114 = scmp.eq.s32.totalorder %s20, 0
      %p115 = por %p113, %p114
      %p116 = scmp.ne.s32.totalorder %s108, %s110
      %p117 = scmp.eq.s32.totalorder %s25, 1
      %p118 = por %p116, %p117
      %p119 = scmp.ne.s32.totalorder %s110, %s111
      %p120 = scmp.eq.s32.totalorder %s25, 0
      %p121 = por %p119, %p120
      %p122 = scmp.ne.s32.totalorder %s110, %s111
      %p123 = scmp.eq.s32.totalorder %s26, 1
      %p124 = por %p122, %p123
      %p126 = scmp.ne.s32.totalorder %s111, %s125
      %p127 = scmp.eq.s32.totalorder %s26, 0
      %p128 = por %p126, %p127
      %s130 = sadd.s32 %s129, 1
      %p133 = scmp.eq.s32.totalorder %s20, 1
      %p134 = scmp.ne.s32.totalorder %s129, %s131
      %p135 = scmp.eq.s32.totalorder %s20, 0
      %p136 = por %p134, %p135
      %p137 = scmp.ne.s32.totalorder %s129, %s131
      %p138 = scmp.eq.s32.totalorder %s25, 1
      %p139 = por %p137, %p138
      %p140 = scmp.ne.s32.totalorder %s131, %s132
      %p141 = scmp.eq.s32.totalorder %s25, 0
      %p142 = por %p140, %p141
      %p143 = scmp.ne.s32.totalorder %s131, %s132
      %p144 = scmp.eq.s32.totalorder %s26, 1
      %p145 = por %p143, %p144
      %p147 = scmp.ne.s32.totalorder %s132, %s146
      %p148 = scmp.eq.s32.totalorder %s26, 0
      %p149 = por %p147, %p148
      %s151 = sadd.s32 %s150, 1
      %p154 = scmp.eq.s32.totalorder %s20, 1
      %p155 = scmp.ne.s32.totalorder %s150, %s152
      %p156 = scmp.eq.s32.totalorder %s20, 0
      %p157 = por %p155, %p156
      %p158 = scmp.ne.s32.totalorder %s150, %s152
      %p159 = scmp.eq.s32.totalorder %s25, 1
      %p160 = por %p158, %p159
      %p161 = scmp.ne.s32.totalorder %s152, %s153
      %p162 = scmp.eq.s32.totalorder %s25, 0
      %p163 = por %p161, %p162
      %p164 = scmp.ne.s32.totalorder %s152, %s153
      %p165 = scmp.eq.s32.totalorder %s26, 1
      %p166 = por %p164, %p165
      %p168 = scmp.ne.s32.totalorder %s153, %s167
      %p169 = scmp.eq.s32.totalorder %s26, 0
      %p170 = por %p168, %p169
      %s172 = sadd.s32 %s171, 1
      %p175 = scmp.eq.s32.totalorder %s20, 1
      %p176 = scmp.ne.s32.totalorder %s171, %s173
      %p177 = scmp.eq.s32.totalorder %s20, 0
      %p178 = por %p176, %p177
      %p179 = scmp.ne.s32.totalorder %s171, %s173
      %p180 = scmp.eq.s32.totalorder %s25, 1
      %p181 = por %p179, %p180
      %p182 = scmp.ne.s32.totalorder %s173, %s174
      %p183 = scmp.eq.s32.totalorder %s25, 0
      %p184 = por %p182, %p183
      %p185 = scmp.ne.s32.totalorder %s173, %s174
      %p186 = scmp.eq.s32.totalorder %s26, 1
      %p187 = por %p185, %p186
      %p189 = scmp.ne.s32.totalorder %s174, %s188
      %p190 = scmp.eq.s32.totalorder %s26, 0
      %p191 = por %p189, %p190
      %s193 = sadd.s32 %s192, 1
      %p196 = scmp.eq.s32.totalorder %s20, 1
      %p197 = scmp.ne.s32.totalorder %s192, %s194
      %p198 = scmp.eq.s32.totalorder %s20, 0
      %p199 = por %p197, %p198
      %p200 = scmp.ne.s32.totalorder %s192, %s194
      %p201 = scmp.eq.s32.totalorder %s25, 1
      %p202 = por %p200, %p201
      %p203 = scmp.ne.s32.totalorder %s194, %s195
      %p204 = scmp.eq.s32.totalorder %s25, 0
      %p205 = por %p203, %p204
      %p206 = scmp.ne.s32.totalorder %s194, %s195
      %p207 = scmp.eq.s32.totalorder %s26, 1
      %p208 = por %p206, %p207
      %p210 = scmp.ne.s32.totalorder %s195, %s209
      %p211 = scmp.eq.s32.totalorder %s26, 0
      %p212 = por %p210, %p211
      %s214 = sadd.s32 %s213, 1
      %p217 = scmp.eq.s32.totalorder %s20, 1
      %p218 = scmp.ne.s32.totalorder %s213, %s215
      %p219 = scmp.eq.s32.totalorder %s20, 0
      %p220 = por %p218, %p219
      %p221 = scmp.ne.s32.totalorder %s213, %s215
      %p222 = scmp.eq.s32.totalorder %s25, 1
      %p223 = por %p221, %p222
      %p224 = scmp.ne.s32.totalorder %s215, %s216
      %p225 = scmp.eq.s32.totalorder %s25, 0
      %p226 = por %p224, %p225
      %p227 = scmp.ne.s32.totalorder %s215, %s216
      %p228 = scmp.eq.s32.totalorder %s26, 1
      %p229 = por %p227, %p228
      %p231 = scmp.ne.s32.totalorder %s216, %s230
      %p232 = scmp.eq.s32.totalorder %s26, 0
      %p233 = por %p231, %p232
      %s234 = ssub.s32 %s27, %s39
      %s235 = ssub.s32 %s28, %s35
      %s236 = sor.u32 %s234, %s235
      %p237 = scmp.eq.s32.totalorder %s236, 0
      %s239 = sadd.s32 %s238, 1
      %s240 = scalar_select %p237, %s238, %s239
      %p243 = pneg %p237
      %p244 = scmp.eq.s32.totalorder %s20, 1
      %p245 = por %p243, %p244
      %p246 = scmp.ne.s32.totalorder %s238, %s241
      %p247 = scmp.eq.s32.totalorder %s20, 0
      %p248 = por %p246, %p247
      %p249 = scmp.ne.s32.totalorder %s238, %s241
      %p250 = scmp.eq.s32.totalorder %s25, 1
      %p251 = por %p249, %p250
      %p252 = scmp.ne.s32.totalorder %s241, %s242
      %p253 = scmp.eq.s32.totalorder %s25, 0
      %p254 = por %p252, %p253
      %p255 = scmp.ne.s32.totalorder %s241, %s242
      %p256 = scmp.eq.s32.totalorder %s26, 1
      %p257 = por %p255, %p256
      %p259 = scmp.ne.s32.totalorder %s242, %s258
      %p260 = scmp.eq.s32.totalorder %s26, 0
      %p261 = por %p259, %p260
      %p262 = scmp.le.s32.totalorder 1, %s20
      %p263 = scmp.lt.s32.totalorder %s20, 3
      %p264 = pnand %p262, %p263
      %p265 = pneg %p264
      // Predicated region
      $region9: #{tpu_custom_call.1} parent=5 // pred_check
        _
      $region10: #{tpu_custom_call.1} parent=5 // pred_check_branch
        %267 = sbr.rel (%p264) target = $region12
      $region11: #{tpu_custom_call.1} parent=5 // pred_region
        %s268 = ssub.s32 %s20, 1
        // Predicated region
        $region13: #{tpu_custom_call.1} parent=11 // pred_check
          %p269 = pneg %p79
        $region14: #{tpu_custom_call.1} parent=11 // pred_check_branch
          %271 = sbr.rel (%p269) target = $region16
        $region15: #{tpu_custom_call.1} parent=11 // pred_region
          %273 = vsyncadd [#allocation7], 0
          %s275 = sshll.u32 %s1, 4
          %s276 = int_to_ptr.hbm [resolvable:$true] %s275
          %s277 = sshll.u32 [#allocation6], 4
          %s278 = int_to_ptr.vmem [resolvable:$true] %s277
          %280 = dma.hbm_to_vmem [thread:$0]  %s276, 16, %s278, [#allocation7]
        $region16: #{tpu_custom_call.1} parent=11 // pred_fallthru
          _
        // Predicated region
        $region17: #{tpu_custom_call.1} parent=11 // pred_check
          %p281 = pneg %p100
        $region18: #{tpu_custom_call.1} parent=11 // pred_check_branch
          %283 = sbr.rel (%p281) target = $region20
        $region19: #{tpu_custom_call.1} parent=11 // pred_region
          _
        $region20: #{tpu_custom_call.1} parent=11 // pred_fallthru
          _
        // Predicated region
        $region21: #{tpu_custom_call.1} parent=11 // pred_check
          %p284 = pneg %p121
        $region22: #{tpu_custom_call.1} parent=11 // pred_check_branch
          %286 = sbr.rel (%p284) target = $region24
        $region23: #{tpu_custom_call.1} parent=11 // pred_region
          _
        $region24: #{tpu_custom_call.1} parent=11 // pred_fallthru
          _
        // Predicated region
        $region25: #{tpu_custom_call.1} parent=11 // pred_check
          %p287 = pneg %p142
        $region26: #{tpu_custom_call.1} parent=11 // pred_check_branch
          %289 = sbr.rel (%p287) target = $region28
        $region27: #{tpu_custom_call.1} parent=11 // pred_region
          _
        $region28: #{tpu_custom_call.1} parent=11 // pred_fallthru
          _
        // Predicated region
        $region29: #{tpu_custom_call.1} parent=11 // pred_check
          %p290 = pneg %p163
        $region30: #{tpu_custom_call.1} parent=11 // pred_check_branch
          %292 = sbr.rel (%p290) target = $region32
        $region31: #{tpu_custom_call.1} parent=11 // pred_region
          %294 = vsyncadd [#allocation10], 0
          %s295 = sshll.u32 %s5, 4
          %s296 = int_to_ptr.hbm [resolvable:$true] %s295
          %s297 = sshll.u32 [#allocation9], 4
          %s298 = int_to_ptr.vmem [resolvable:$true] %s297
          %303 = dma.hbm_to_vmem [thread:$0]  %s296, 1024, %s298, [#allocation10], 128, 128, 8
        $region32: #{tpu_custom_call.1} parent=11 // pred_fallthru
          _
        // Predicated region
        $region33: #{tpu_custom_call.1} parent=11 // pred_check
          %p304 = pneg %p184
        $region34: #{tpu_custom_call.1} parent=11 // pred_check_branch
          %306 = sbr.rel (%p304) target = $region36
        $region35: #{tpu_custom_call.1} parent=11 // pred_region
          _
        $region36: #{tpu_custom_call.1} parent=11 // pred_fallthru
          _
        // Predicated region
        $region37: #{tpu_custom_call.1} parent=11 // pred_check
          %p307 = pneg %p205
        $region38: #{tpu_custom_call.1} parent=11 // pred_check_branch
          %309 = sbr.rel (%p307) target = $region40
        $region39: #{tpu_custom_call.1} parent=11 // pred_region
          %311 = vsyncadd [#allocation10], 0
          %s312 = sshll.u32 %s7, 4
          %s313 = int_to_ptr.hbm [resolvable:$true] %s312
          %s314 = sshll.u32 [#allocation11], 4
          %s315 = int_to_ptr.vmem [resolvable:$true] %s314
          %320 = dma.hbm_to_vmem [thread:$0]  %s313, 512, %s315, [#allocation10], 64, 64, 4
        $region40: #{tpu_custom_call.1} parent=11 // pred_fallthru
          _
        // Predicated region
        $region41: #{tpu_custom_call.1} parent=11 // pred_check
          %p321 = pneg %p226
        $region42: #{tpu_custom_call.1} parent=11 // pred_check_branch
          %323 = sbr.rel (%p321) target = $region44
        $region43: #{tpu_custom_call.1} parent=11 // pred_region
          _
        $region44: #{tpu_custom_call.1} parent=11 // pred_fallthru
          _
      $region12: #{tpu_custom_call.1} parent=5 // pred_fallthru
        _
      %p324 = scmp.lt.s32.totalorder %s20, 2
      // Predicated region
      $region45: #{tpu_custom_call.1} parent=5 // pred_check
        %p325 = pneg %p324
      $region46: #{tpu_custom_call.1} parent=5 // pred_check_branch
        %327 = sbr.rel (%p325) target = $region48
      $region47: #{tpu_custom_call.1} parent=5 // pred_region
        // Predicated region
        $region49: #{tpu_custom_call.1} parent=47 // pred_check
          %p328 = pneg %p52
        $region50: #{tpu_custom_call.1} parent=47 // pred_check_branch
          %330 = sbr.rel (%p328) target = $region52
        $region51: #{tpu_custom_call.1} parent=47 // pred_region
          %p331 = scmp.lt.s32.totalorder %s27, 1
          %s332 = scalar_select %p331, %s27, 1
          %s333 = smul.addr %s332, 8
          %s334 = smul.addr %s333, 4
          %s335 = scalar_lea.vmem %s0, %s334
        $region52: #{tpu_custom_call.1} parent=47 // pred_fallthru
          _
      $region48: #{tpu_custom_call.1} parent=5 // pred_fallthru
        _
      %p336 = scmp.le.s32.totalorder 1, %s20
      %p337 = scmp.lt.s32.totalorder %s20, 3
      %p338 = pnand %p336, %p337
      %p339 = pneg %p338
      // Predicated region
      $region53: #{tpu_custom_call.1} parent=5 // pred_check
        _
      $region54: #{tpu_custom_call.1} parent=5 // pred_check_branch
        %341 = sbr.rel (%p338) target = $region56
      $region55: #{tpu_custom_call.1} parent=5 // pred_region
        %s342 = ssub.s32 %s20, 1
        // Predicated region
        $region57: #{tpu_custom_call.1} parent=55 // pred_check
          %p343 = pneg %p79
        $region58: #{tpu_custom_call.1} parent=55 // pred_check_branch
          %345 = sbr.rel (%p343) target = $region60
        $region59: #{tpu_custom_call.1} parent=55 // pred_region
          %347 = dma.done [#allocation7], 16
        $region60: #{tpu_custom_call.1} parent=55 // pred_fallthru
          _
        // Predicated region
        $region61: #{tpu_custom_call.1} parent=55 // pred_check
          %p348 = pneg %p163
        $region62: #{tpu_custom_call.1} parent=55 // pred_check_branch
          %350 = sbr.rel (%p348) target = $region64
        $region63: #{tpu_custom_call.1} parent=55 // pred_region
          %352 = dma.done [#allocation10], 1024
        $region64: #{tpu_custom_call.1} parent=55 // pred_fallthru
          _
        // Predicated region
        $region65: #{tpu_custom_call.1} parent=55 // pred_check
          %p353 = pneg %p205
        $region66: #{tpu_custom_call.1} parent=55 // pred_check_branch
          %355 = sbr.rel (%p353) target = $region68
        $region67: #{tpu_custom_call.1} parent=55 // pred_region
          %357 = dma.done [#allocation10], 512
        $region68: #{tpu_custom_call.1} parent=55 // pred_fallthru
          _
        %p358 = scmp.lt.s32.totalorder %s29, 1
        %s359 = scalar_select %p358, %s29, 1
        %s360 = smul.addr %s359, 8
        %s361 = smul.addr %s360, 4
        %s362 = scalar_lea.vmem %s0, %s361
        %p363 = pneg %p58
        %p364 = pneg %p55
        %p365 = pneg %p79
        %p366 = pneg %p76
        %p367 = pneg %p100
        %p368 = pneg %p97
        %p369 = pneg %p121
        %p370 = pneg %p118
        %p371 = pneg %p142
        %p372 = pneg %p139
        %p373 = pneg %p163
        %p374 = pneg %p160
        %p375 = pneg %p184
        %p376 = pneg %p181
        %p377 = pneg %p205
        %p378 = pneg %p202
        %p379 = pneg %p226
        %p380 = pneg %p223
        %p381 = pneg %p254
        %p382 = pneg %p251
        %s383 = sand.u32 %s241, 1
        %s384 = scalar_lea.sflag [#allocation8], %s383
        %s385 = sand.u32 %s241, 1
        %s386 = smul.addr %s385, 64
        %s387 = scalar_lea.vmem [#allocation12], %s386
        %p388 = scmp.lt.s32.totalorder %s29, 1
        %s389 = scalar_select %p388, %s29, 1
        %s390 = smul.addr %s389, 8
        %s391 = smul.addr %s390, 4
        %s392 = scalar_lea.vmem %s0, %s391
        %s393 = smul.u32 8, %s30
        %p395 = scmp.eq.s32.totalorder %s30, 0
        // Predicated region
        $region69: #{tpu_custom_call.1} parent=55 // pred_check
          %p396 = pneg %p395
        $region70: #{tpu_custom_call.1} parent=55 // pred_check_branch
          %398 = sbr.rel (%p396) target = $region72
        $region71: #{tpu_custom_call.1} parent=55 // pred_region
          %v399 = vld [vmem:[%s392] sm:$0xf]
          %v400 = vld [vmem:[%s392 + $0x4] sm:$0xf]
          %v401 = vld [vmem:[%s392 + $0x8] sm:$0xf]
          %v402 = vld [vmem:[%s392 + $0xc] sm:$0xf]
          %v403 = vld [vmem:[%s392 + $0x10] sm:$0xf]
          %v404 = vld [vmem:[%s392 + $0x14] sm:$0xf]
          %v405 = vld [vmem:[%s392 + $0x18] sm:$0xf]
          %v406 = vld [vmem:[%s392 + $0x1c] sm:$0xf]
          %v407 = vunpack.c.l.bf16 %v399
          %v408 = vunpack.c.l.bf16 %v400
          %v409 = vunpack.c.l.bf16 %v401
          %v410 = vunpack.c.l.bf16 %v402
          %v411 = vunpack.c.l.bf16 %v403
          %v412 = vunpack.c.l.bf16 %v404
          %v413 = vunpack.c.l.bf16 %v405
          %v414 = vunpack.c.l.bf16 %v406
          %vm415 = vcmask 523264
          %v416 = vsel %vm415, %v407, 0.0
          %v417 = vsel %vm415, %v408, 0.0
          %v418 = vadd.f32 %v416, %v417
          %v419 = vsel %vm415, %v409, 0.0
          %v420 = vadd.f32 %v418, %v419
          %v421 = vsel %vm415, %v410, 0.0
          %v422 = vadd.f32 %v420, %v421
          %v423 = vsel %vm415, %v411, 0.0
          %v424 = vadd.f32 %v422, %v423
          %v425 = vsel %vm415, %v412, 0.0
          %v426 = vadd.f32 %v424, %v425
          %v427 = vsel %vm415, %v413, 0.0
          %v428 = vadd.f32 %v426, %v427
          %v429 = vsel %vm415, %v414, 0.0
          %v430 = vadd.f32 %v428, %v429
          %v431 = vrot.slane %v430, 4
          %v432 = vadd.f32 %v430, %v431
          %v433 = vrot.slane %v432, 2
          %v434 = vadd.f32 %v432, %v433
          %v435 = vrot.slane %v434, 1
          %v436 = vadd.f32 %v434, %v435
          %v437 = vadd.f32 %v436, 0.0
          %v438 = vld [vmem:[%s3] sm:$0xff]
          %v439 = vld [vmem:[%s3 + $0x8] sm:$0xff]
          %v440 = vld [vmem:[%s3 + $0x10] sm:$0xff]
          %v441 = vld [vmem:[%s3 + $0x18] sm:$0xff]
          %v442 = vld [vmem:[%s3 + $0x20] sm:$0xff]
          %v443 = vld [vmem:[%s3 + $0x28] sm:$0xff]
          %v444 = vld [vmem:[%s3 + $0x30] sm:$0xff]
          %v445 = vld [vmem:[%s3 + $0x38] sm:$0xff]
          %v447 = vsel %vm415, %v437, 0
          %449 = vmatpush.msra.mxu0 0.0
          %450 = vmatpush.msra.mxu0 0.0
          %451 = vmatpush.msra.mxu0 0.0
          %452 = vmatpush.msra.mxu0 0.0
          %453 = vmatpush.msra.mxu0 0.0
          %454 = vmatpush.msra.mxu0 0.0
          %455 = vmatpush.msra.mxu0 0.0
          %456 = vmatpush.msra.mxu0 0.0
          %457 = vmatpush.msra.mxu0 %v445
          %458 = vmatpush.msra.mxu0 %v444
          %459 = vmatpush.msra.mxu0 %v443
          %460 = vmatpush.msra.mxu0 %v442
          %461 = vmatpush.msra.mxu0 %v441
          %462 = vmatpush.msra.mxu0 %v440
          %463 = vmatpush.msra.mxu0 %v439
          %464 = vmatpush.msra.mxu0 %v438
          %465 = vmatmul.f32.gmra.mxu0 %v447
          %v466 = vpop.f32.mrf.mxu0
          %v467 = vadd.f32 0.0, %v466
          %468 = vdwg.mxu0
          %v469 = vmul.f32 %v467, 0.0078125
          %v470 = vld [vmem:[%s4] sm:$0xff]
          %v471 = vld [vmem:[%s4 + $0x8] sm:$0xff]
          %v472 = vld [vmem:[%s4 + $0x10] sm:$0xff]
          %v473 = vld [vmem:[%s4 + $0x18] sm:$0xff]
          %vm474 = vcmask 261120
          %v476 = vsel %vm474, %v469, 0
          %478 = vmatpush.msra.mxu0 0.0
          %479 = vmatpush.msra.mxu0 0.0
          %480 = vmatpush.msra.mxu0 0.0
          %481 = vmatpush.msra.mxu0 0.0
          %482 = vmatpush.msra.mxu0 0.0
          %483 = vmatpush.msra.mxu0 0.0
          %484 = vmatpush.msra.mxu0 0.0
          %485 = vmatpush.msra.mxu0 0.0
          %486 = vmatpush.msra.mxu0 0.0
          %487 = vmatpush.msra.mxu0 0.0
          %488 = vmatpush.msra.mxu0 0.0
          %489 = vmatpush.msra.mxu0 0.0
          %490 = vmatpush.msra.mxu0 %v473
          %491 = vmatpush.msra.mxu0 %v472
          %492 = vmatpush.msra.mxu0 %v471
          %493 = vmatpush.msra.mxu0 %v470
          %494 = vmatmul.f32.gmra.mxu0 %v476
          %v495 = vpop.f32.mrf.mxu0
          %v496 = vadd.f32 0.0, %v495
          %497 = vdwg.mxu0
          %v498 = vperm.slane %v496, 0
          %v499 = vsub.f32 %v407, %v498
          %v500 = vsub.f32 %v408, %v498
          %v501 = vsub.f32 %v409, %v498
          %v502 = vsub.f32 %v410, %v498
          %v503 = vsub.f32 %v411, %v498
          %v504 = vsub.f32 %v412, %v498
          %v505 = vsub.f32 %v413, %v498
          %v506 = vsub.f32 %v414, %v498
          %v507 = vmul.f32 %v499, %v499
          %v508 = vmul.f32 %v500, %v500
          %v509 = vmul.f32 %v501, %v501
          %v510 = vmul.f32 %v502, %v502
          %v511 = vmul.f32 %v503, %v503
          %v512 = vmul.f32 %v504, %v504
          %v513 = vmul.f32 %v505, %v505
          %v514 = vmul.f32 %v506, %v506
          %v515 = vsel %vm415, %v507, 0.0
          %v516 = vsel %vm415, %v508, 0.0
          %v517 = vadd.f32 %v515, %v516
          %v518 = vsel %vm415, %v509, 0.0
          %v519 = vadd.f32 %v517, %v518
          %v520 = vsel %vm415, %v510, 0.0
          %v521 = vadd.f32 %v519, %v520
          %v522 = vsel %vm415, %v511, 0.0
          %v523 = vadd.f32 %v521, %v522
          %v524 = vsel %vm415, %v512, 0.0
          %v525 = vadd.f32 %v523, %v524
          %v526 = vsel %vm415, %v513, 0.0
          %v527 = vadd.f32 %v525, %v526
          %v528 = vsel %vm415, %v514, 0.0
          %v529 = vadd.f32 %v527, %v528
          %v530 = vrot.slane %v529, 4
          %v531 = vadd.f32 %v529, %v530
          %v532 = vrot.slane %v531, 2
          %v533 = vadd.f32 %v531, %v532
          %v534 = vrot.slane %v533, 1
          %v535 = vadd.f32 %v533, %v534
          %v536 = vadd.f32 %v535, 0.0
          %v538 = vsel %vm415, %v536, 0
          %540 = vmatpush.msra.mxu0 0.0
          %541 = vmatpush.msra.mxu0 0.0
          %542 = vmatpush.msra.mxu0 0.0
          %543 = vmatpush.msra.mxu0 0.0
          %544 = vmatpush.msra.mxu0 0.0
          %545 = vmatpush.msra.mxu0 0.0
          %546 = vmatpush.msra.mxu0 0.0
          %547 = vmatpush.msra.mxu0 0.0
          %548 = vmatpush.msra.mxu0 %v445
          %549 = vmatpush.msra.mxu0 %v444
          %550 = vmatpush.msra.mxu0 %v443
          %551 = vmatpush.msra.mxu0 %v442
          %552 = vmatpush.msra.mxu0 %v441
          %553 = vmatpush.msra.mxu0 %v440
          %554 = vmatpush.msra.mxu0 %v439
          %555 = vmatpush.msra.mxu0 %v438
          %556 = vmatmul.f32.gmra.mxu0 %v538
          %v557 = vpop.f32.mrf.mxu0
          %v558 = vadd.f32 0.0, %v557
          %559 = vdwg.mxu0
          %v560 = vmul.f32 %v558, 0.0078125
          %v561 = vadd.f32 %v560, 1e-05
          %v562 = vrsqrt.pop %v561
          %v563 = vmul.f32 %v562, %v561
          %v564 = vmul.f32 %v563, %v562
          %v565 = vmul.f32 0.5, %v564
          %v566 = vsub.f32 1.5, %v565
          %v567 = vmul.f32 %v562, %v566
          %vm568 = vweird.f32 %v561
          %vm569 = vweird.f32 %v562
          %vm570 = vmor %vm568, %vm569
          %v571 = vsel %vm570, %v562, %v567
          %v573 = vsel %vm474, %v571, 0
          %575 = vmatpush.msra.mxu0 0.0
          %576 = vmatpush.msra.mxu0 0.0
          %577 = vmatpush.msra.mxu0 0.0
          %578 = vmatpush.msra.mxu0 0.0
          %579 = vmatpush.msra.mxu0 0.0
          %580 = vmatpush.msra.mxu0 0.0
          %581 = vmatpush.msra.mxu0 0.0
          %582 = vmatpush.msra.mxu0 0.0
          %583 = vmatpush.msra.mxu0 0.0
          %584 = vmatpush.msra.mxu0 0.0
          %585 = vmatpush.msra.mxu0 0.0
          %586 = vmatpush.msra.mxu0 0.0
          %587 = vmatpush.msra.mxu0 %v473
          %588 = vmatpush.msra.mxu0 %v472
          %589 = vmatpush.msra.mxu0 %v471
          %590 = vmatpush.msra.mxu0 %v470
          %591 = vmatmul.f32.gmra.mxu0 %v573
          %v592 = vpop.f32.mrf.mxu0
          %v593 = vadd.f32 0.0, %v592
          %594 = vdwg.mxu0
          %v595 = vperm.slane %v593, 0
          %v596 = vmul.f32 %v499, %v595
          %v597 = vmul.f32 %v500, %v595
          %v598 = vmul.f32 %v501, %v595
          %v599 = vmul.f32 %v502, %v595
          %v600 = vmul.f32 %v503, %v595
          %v601 = vmul.f32 %v504, %v595
          %v602 = vmul.f32 %v505, %v595
          %v603 = vmul.f32 %v506, %v595
          %v604 = vld [vmem:[#allocation6] sm:$0x1]
          %v606 = vperm.slane %v604, 0
          %v608 = vmul.f32 %v596, %v606
          %v609 = vmul.f32 %v597, %v606
          %v610 = vmul.f32 %v598, %v606
          %v611 = vmul.f32 %v599, %v606
          %v612 = vmul.f32 %v600, %v606
          %v613 = vmul.f32 %v601, %v606
          %v614 = vmul.f32 %v602, %v606
          %v615 = vmul.f32 %v603, %v606
          %v616 = vld [vmem:[%s2] sm:$0x1]
          %v618 = vperm.slane %v616, 0
          %v620 = vadd.f32 %v608, %v618
          %v621 = vadd.f32 %v609, %v618
          %v622 = vadd.f32 %v610, %v618
          %v623 = vadd.f32 %v611, %v618
          %v624 = vadd.f32 %v612, %v618
          %v625 = vadd.f32 %v613, %v618
          %v626 = vadd.f32 %v614, %v618
          %v627 = vadd.f32 %v615, %v618
          %v628 = vpack.c.bf16 %v621, %v620
          %v629 = vpack.c.bf16 %v623, %v622
          %v630 = vpack.c.bf16 %v625, %v624
          %v631 = vpack.c.bf16 %v627, %v626
          %v632 = vld [vmem:[#allocation9] sm:$0xff]
          %v633 = vld [vmem:[#allocation9 + $0x8] sm:$0xff]
          %v634 = vld [vmem:[#allocation9 + $0x10] sm:$0xff]
          %v635 = vld [vmem:[#allocation9 + $0x18] sm:$0xff]
          %v636 = vld [vmem:[#allocation9 + $0x20] sm:$0xff]
          %v637 = vld [vmem:[#allocation9 + $0x28] sm:$0xff]
          %v638 = vld [vmem:[#allocation9 + $0x30] sm:$0xff]
          %v639 = vld [vmem:[#allocation9 + $0x38] sm:$0xff]
          %v640 = vld [vmem:[%s6] sm:$0x3]
          %v642 = vperm.slane %v640, 0
          %v643 = vperm.slane %v640, 1
          %v654 = vunpack.c.l.b16 %v632
          %v655 = vunpack.c.h.b16 %v632
          %v656 = vunpack.c.l.b16 %v633
          %v657 = vunpack.c.h.b16 %v633
          %v658 = vunpack.c.l.b16 %v634
          %v659 = vunpack.c.h.b16 %v634
          %v660 = vunpack.c.l.b16 %v635
          %v661 = vunpack.c.h.b16 %v635
          %v662 = vunpack.c.l.b16 %v636
          %v663 = vunpack.c.h.b16 %v636
          %v664 = vunpack.c.l.b16 %v637
          %v665 = vunpack.c.h.b16 %v637
          %v666 = vunpack.c.l.b16 %v638
          %v667 = vunpack.c.h.b16 %v638
          %v668 = vunpack.c.l.b16 %v639
          %v669 = vunpack.c.h.b16 %v639
          %v670 = vpack.c.b16 %v656, %v654
          %v671 = vpack.c.b16 %v657, %v655
          %v672 = vpack.c.b16 %v660, %v658
          %v673 = vpack.c.b16 %v661, %v659
          %v674 = vpack.c.b16 %v664, %v662
          %v675 = vpack.c.b16 %v665, %v663
          %v676 = vpack.c.b16 %v668, %v666
          %v677 = vpack.c.b16 %v669, %v667
          %v687 = vsel %vm415, %v628, 0
          %v690 = vsel %vm415, %v629, 0
          %v693 = vsel %vm415, %v630, 0
          %v696 = vsel %vm415, %v631, 0
          %698 = vmatpush.bf16.msra.mxu0 0
          %699 = vmatpush.bf16.msra.mxu0 0
          %700 = vmatpush.bf16.msra.mxu0 0
          %701 = vmatpush.bf16.msra.mxu0 0
          %702 = vmatpush.bf16.msra.mxu0 %v676
          %703 = vmatpush.bf16.msra.mxu0 %v674
          %704 = vmatpush.bf16.msra.mxu0 %v672
          %705 = vmatpush.bf16.msra.mxu0 %v670
          %706 = vmatmul.bf16.gmra.mxu0 %v687
          %v707 = vpop.f32.mrf.mxu0
          %v708 = vadd.f32 %v642, %v707
          %v709 = vpop.f32.mrf.mxu0
          %v710 = vadd.f32 %v642, %v709
          %711 = vmatmul.bf16.gmra.mxu0 %v690
          %v712 = vpop.f32.mrf.mxu0
          %v713 = vadd.f32 %v642, %v712
          %v714 = vpop.f32.mrf.mxu0
          %v715 = vadd.f32 %v642, %v714
          %716 = vmatmul.bf16.gmra.mxu0 %v693
          %v717 = vpop.f32.mrf.mxu0
          %v718 = vadd.f32 %v642, %v717
          %v719 = vpop.f32.mrf.mxu0
          %v720 = vadd.f32 %v642, %v719
          %721 = vmatmul.bf16.gmra.mxu0 %v696
          %v722 = vpop.f32.mrf.mxu0
          %v723 = vadd.f32 %v642, %v722
          %v724 = vpop.f32.mrf.mxu0
          %v725 = vadd.f32 %v642, %v724
          %726 = vdwg.mxu0
          %727 = vmatpush.bf16.msra.mxu0 0
          %728 = vmatpush.bf16.msra.mxu0 0
          %729 = vmatpush.bf16.msra.mxu0 0
          %730 = vmatpush.bf16.msra.mxu0 0
          %731 = vmatpush.bf16.msra.mxu0 %v677
          %732 = vmatpush.bf16.msra.mxu0 %v675
          %733 = vmatpush.bf16.msra.mxu0 %v673
          %734 = vmatpush.bf16.msra.mxu0 %v671
          %735 = vmatmul.bf16.gmra.mxu0 %v687
          %v736 = vpop.f32.mrf.mxu0
          %v737 = vadd.f32 %v643, %v736
          %v738 = vpop.f32.mrf.mxu0
          %v739 = vadd.f32 %v643, %v738
          %740 = vmatmul.bf16.gmra.mxu0 %v690
          %v741 = vpop.f32.mrf.mxu0
          %v742 = vadd.f32 %v643, %v741
          %v743 = vpop.f32.mrf.mxu0
          %v744 = vadd.f32 %v643, %v743
          %745 = vmatmul.bf16.gmra.mxu0 %v693
          %v746 = vpop.f32.mrf.mxu0
          %v747 = vadd.f32 %v643, %v746
          %v748 = vpop.f32.mrf.mxu0
          %v749 = vadd.f32 %v643, %v748
          %750 = vmatmul.bf16.gmra.mxu0 %v696
          %v751 = vpop.f32.mrf.mxu0
          %v752 = vadd.f32 %v643, %v751
          %v753 = vpop.f32.mrf.mxu0
          %v754 = vadd.f32 %v643, %v753
          %755 = vdwg.mxu0
          %v756 = vmul.f32 %v708, 0.4204482
          %v757 = vmul.f32 %v710, 0.4204482
          %v758 = vmul.f32 %v713, 0.4204482
          %v759 = vmul.f32 %v715, 0.4204482
          %v760 = vmul.f32 %v718, 0.4204482
          %v761 = vmul.f32 %v720, 0.4204482
          %v762 = vmul.f32 %v723, 0.4204482
          %v763 = vmul.f32 %v725, 0.4204482
          %v764 = vpack.c.bf16 %v756, %v756
          %v765 = vpack.c.bf16 %v757, %v757
          %v766 = vpack.c.bf16 %v758, %v758
          %v767 = vpack.c.bf16 %v759, %v759
          %v768 = vpack.c.bf16 %v760, %v760
          %v769 = vpack.c.bf16 %v761, %v761
          %v770 = vpack.c.bf16 %v762, %v762
          %v771 = vpack.c.bf16 %v763, %v763
          %vm772 = vcmask 519168
          %773 = vst.msk [vmem:[#allocation2] sm:$0xf] %vm772, %v764
          %774 = vst.msk [vmem:[#allocation2 + $0x4] sm:$0xf] %vm772, %v765
          %775 = vst.msk [vmem:[#allocation2 + $0x8] sm:$0xf] %vm772, %v766
          %776 = vst.msk [vmem:[#allocation2 + $0xc] sm:$0xf] %vm772, %v767
          %777 = vst.msk [vmem:[#allocation2 + $0x10] sm:$0xf] %vm772, %v768
          %778 = vst.msk [vmem:[#allocation2 + $0x14] sm:$0xf] %vm772, %v769
          %779 = vst.msk [vmem:[#allocation2 + $0x18] sm:$0xf] %vm772, %v770
          %780 = vst.msk [vmem:[#allocation2 + $0x1c] sm:$0xf] %vm772, %v771
          %789 = vrot.lane.b32.xlu0 %v764, 64
          %v790 = vpop.permute.xlu0 %789
          %791 = vrot.lane.b32.xlu0 %v765, 64
          %v792 = vpop.permute.xlu0 %791
          %793 = vrot.lane.b32.xlu0 %v766, 64
          %v794 = vpop.permute.xlu0 %793
          %795 = vrot.lane.b32.xlu0 %v767, 64
          %v796 = vpop.permute.xlu0 %795
          %797 = vrot.lane.b32.xlu0 %v768, 64
          %v798 = vpop.permute.xlu0 %797
          %799 = vrot.lane.b32.xlu0 %v769, 64
          %v800 = vpop.permute.xlu0 %799
          %801 = vrot.lane.b32.xlu0 %v770, 64
          %v802 = vpop.permute.xlu0 %801
          %803 = vrot.lane.b32.xlu0 %v771, 64
          %v804 = vpop.permute.xlu0 %803
          %813 = vst.msk [vmem:[#allocation3] sm:$0xf] %vm772, %v790
          %814 = vst.msk [vmem:[#allocation3 + $0x4] sm:$0xf] %vm772, %v792
          %815 = vst.msk [vmem:[#allocation3 + $0x8] sm:$0xf] %vm772, %v794
          %816 = vst.msk [vmem:[#allocation3 + $0xc] sm:$0xf] %vm772, %v796
          %817 = vst.msk [vmem:[#allocation3 + $0x10] sm:$0xf] %vm772, %v798
          %818 = vst.msk [vmem:[#allocation3 + $0x14] sm:$0xf] %vm772, %v800
          %819 = vst.msk [vmem:[#allocation3 + $0x18] sm:$0xf] %vm772, %v802
          %820 = vst.msk [vmem:[#allocation3 + $0x1c] sm:$0xf] %vm772, %v804
          %v821 = vpack.c.bf16 %v737, %v737
          %v822 = vpack.c.bf16 %v739, %v739
          %v823 = vpack.c.bf16 %v742, %v742
          %v824 = vpack.c.bf16 %v744, %v744
          %v825 = vpack.c.bf16 %v747, %v747
          %v826 = vpack.c.bf16 %v749, %v749
          %v827 = vpack.c.bf16 %v752, %v752
          %v828 = vpack.c.bf16 %v754, %v754
          %829 = vst.msk [vmem:[#allocation4] sm:$0xf] %vm772, %v821
          %830 = vst.msk [vmem:[#allocation4 + $0x4] sm:$0xf] %vm772, %v822
          %831 = vst.msk [vmem:[#allocation4 + $0x8] sm:$0xf] %vm772, %v823
          %832 = vst.msk [vmem:[#allocation4 + $0xc] sm:$0xf] %vm772, %v824
          %833 = vst.msk [vmem:[#allocation4 + $0x10] sm:$0xf] %vm772, %v825
          %834 = vst.msk [vmem:[#allocation4 + $0x14] sm:$0xf] %vm772, %v826
          %835 = vst.msk [vmem:[#allocation4 + $0x18] sm:$0xf] %vm772, %v827
          %836 = vst.msk [vmem:[#allocation4 + $0x1c] sm:$0xf] %vm772, %v828
        $region72: #{tpu_custom_call.1} parent=55 // pred_fallthru
          _
        %s837 = smul.u32 %s30, 64
        %s838 = sshra.s32 %s837, 3
        %s839 = sand.u32 %s837, 7
        %s840 = smul.addr %s838, 4
        %s841 = scalar_lea.vmem [#allocation2], %s840
        %v842 = vld [vmem:[%s841] sm:$0xf]
        %v843 = vld [vmem:[%s841 + $0x4] sm:$0xf]
        %v844 = vld [vmem:[%s841 + $0x8] sm:$0xf]
        %v845 = vld [vmem:[%s841 + $0xc] sm:$0xf]
        %v846 = vld [vmem:[%s841 + $0x10] sm:$0xf]
        %v847 = vld [vmem:[%s841 + $0x14] sm:$0xf]
        %v848 = vld [vmem:[%s841 + $0x18] sm:$0xf]
        %v849 = vld [vmem:[%s841 + $0x1c] sm:$0xf]
        %v850 = vld [vmem:[#allocation3] sm:$0xf]
        %v851 = vld [vmem:[#allocation3 + $0x4] sm:$0xf]
        %v852 = vld [vmem:[#allocation3 + $0x8] sm:$0xf]
        %v853 = vld [vmem:[#allocation3 + $0xc] sm:$0xf]
        %v854 = vld [vmem:[#allocation3 + $0x10] sm:$0xf]
        %v855 = vld [vmem:[#allocation3 + $0x14] sm:$0xf]
        %v856 = vld [vmem:[#allocation3 + $0x18] sm:$0xf]
        %v857 = vld [vmem:[#allocation3 + $0x1c] sm:$0xf]
        %v858 = vld [vmem:[#allocation4] sm:$0xf]
        %v859 = vld [vmem:[#allocation4 + $0x4] sm:$0xf]
        %v860 = vld [vmem:[#allocation4 + $0x8] sm:$0xf]
        %v861 = vld [vmem:[#allocation4 + $0xc] sm:$0xf]
        %v862 = vld [vmem:[#allocation4 + $0x10] sm:$0xf]
        %v863 = vld [vmem:[#allocation4 + $0x14] sm:$0xf]
        %v864 = vld [vmem:[#allocation4 + $0x18] sm:$0xf]
        %v865 = vld [vmem:[#allocation4 + $0x1c] sm:$0xf]
        %v874 = vunpack.c.l.b16 %v842
        %v875 = vunpack.c.l.b16 %v843
        %v876 = vunpack.c.l.b16 %v844
        %v877 = vunpack.c.l.b16 %v845
        %v878 = vunpack.c.l.b16 %v846
        %v879 = vunpack.c.l.b16 %v847
        %v880 = vunpack.c.l.b16 %v848
        %v881 = vunpack.c.l.b16 %v849
        %v882 = vpack.c.b16 %v875, %v874
        %v883 = vpack.c.b16 %v877, %v876
        %v884 = vpack.c.b16 %v879, %v878
        %v885 = vpack.c.b16 %v881, %v880
        %v894 = vunpack.c.l.b16 %v850
        %v895 = vunpack.c.l.b16 %v851
        %v896 = vunpack.c.l.b16 %v852
        %v897 = vunpack.c.l.b16 %v853
        %v898 = vunpack.c.l.b16 %v854
        %v899 = vunpack.c.l.b16 %v855
        %v900 = vunpack.c.l.b16 %v856
        %v901 = vunpack.c.l.b16 %v857
        %v902 = vpack.c.b16 %v895, %v894
        %v903 = vpack.c.b16 %v897, %v896
        %v904 = vpack.c.b16 %v899, %v898
        %v905 = vpack.c.b16 %v901, %v900
        %vm906 = vcmask 261120
        %v908 = vsel %vm906, %v882, 0
        %v911 = vsel %vm906, %v883, 0
        %v914 = vsel %vm906, %v884, 0
        %v917 = vsel %vm906, %v885, 0
        %v920 = vsel %vm906, %v902, 0
        %v923 = vsel %vm906, %v903, 0
        %v926 = vsel %vm906, %v904, 0
        %v929 = vsel %vm906, %v905, 0
        %931 = vmatpush.bf16.xpose.msra.mxu0 0
        %932 = vmatpush.bf16.xpose.msra.mxu0 0
        %933 = vmatpush.bf16.xpose.msra.mxu0 0
        %934 = vmatpush.bf16.xpose.msra.mxu0 0
        %935 = vmatpush.bf16.xpose.msra.mxu0 %v929
        %936 = vmatpush.bf16.xpose.msra.mxu0 %v926
        %937 = vmatpush.bf16.xpose.msra.mxu0 %v923
        %938 = vmatpush.bf16.xpose.msra.mxu0 %v920
        %939 = vmatmul.bf16.gmra.mxu0 %v908
        %v940 = vpop.f32.mrf.mxu0
        %v941 = vadd.f32 0.0, %v940
        %v942 = vpop.f32.mrf.mxu0
        %v943 = vadd.f32 0.0, %v942
        %944 = vmatmul.bf16.gmra.mxu0 %v911
        %v945 = vpop.f32.mrf.mxu0
        %v946 = vadd.f32 0.0, %v945
        %v947 = vpop.f32.mrf.mxu0
        %v948 = vadd.f32 0.0, %v947
        %949 = vmatmul.bf16.gmra.mxu0 %v914
        %v950 = vpop.f32.mrf.mxu0
        %v951 = vadd.f32 0.0, %v950
        %v952 = vpop.f32.mrf.mxu0
        %v953 = vadd.f32 0.0, %v952
        %954 = vmatmul.bf16.gmra.mxu0 %v917
        %v955 = vpop.f32.mrf.mxu0
        %v956 = vadd.f32 0.0, %v955
        %v957 = vpop.f32.mrf.mxu0
        %v958 = vadd.f32 0.0, %v957
        %959 = vdwg.mxu0
        %vm960 = vcmask 523264
        %v961 = vsel %vm960, %v941, -inf
        %962 = vmax.xlane.f32.xlu0 %v961
        %v963 = vpop.xlane.xlu0 %962
        %v964 = vsel %vm960, %v943, -inf
        %965 = vmax.xlane.f32.xlu0 %v964
        %v966 = vpop.xlane.xlu0 %965
        %v967 = vsel %vm960, %v946, -inf
        %968 = vmax.xlane.f32.xlu0 %v967
        %v969 = vpop.xlane.xlu0 %968
        %v970 = vsel %vm960, %v948, -inf
        %971 = vmax.xlane.f32.xlu0 %v970
        %v972 = vpop.xlane.xlu0 %971
        %v973 = vsel %vm960, %v951, -inf
        %974 = vmax.xlane.f32.xlu0 %v973
        %v975 = vpop.xlane.xlu0 %974
        %v976 = vsel %vm960, %v953, -inf
        %977 = vmax.xlane.f32.xlu0 %v976
        %v978 = vpop.xlane.xlu0 %977
        %v979 = vsel %vm960, %v956, -inf
        %980 = vmax.xlane.f32.xlu0 %v979
        %v981 = vpop.xlane.xlu0 %980
        %v982 = vsel %vm960, %v958, -inf
        %983 = vmax.xlane.f32.xlu0 %v982
        %v984 = vpop.xlane.xlu0 %983
        %v985 = vsub.f32 %v941, %v963
        %v986 = vsub.f32 %v943, %v966
        %v987 = vsub.f32 %v946, %v969
        %v988 = vsub.f32 %v948, %v972
        %v989 = vsub.f32 %v951, %v975
        %v990 = vsub.f32 %v953, %v978
        %v991 = vsub.f32 %v956, %v981
        %v992 = vsub.f32 %v958, %v984
        %v993 = vpack.c.bf16 %v986, %v985
        %v994 = vpack.c.bf16 %v988, %v987
        %v995 = vpack.c.bf16 %v990, %v989
        %v996 = vpack.c.bf16 %v992, %v991
        %v997 = vunpack.c.l.bf16 %v993
        %v998 = vunpack.c.h.bf16 %v993
        %v999 = vunpack.c.l.bf16 %v994
        %v1000 = vunpack.c.h.bf16 %v994
        %v1001 = vunpack.c.l.bf16 %v995
        %v1002 = vunpack.c.h.bf16 %v995
        %v1003 = vunpack.c.l.bf16 %v996
        %v1004 = vunpack.c.h.bf16 %v996
        %v1005 = vmul.f32 %v997, 1.442695
        %v1006 = vpow.pop %v1005
        %v1007 = vmul.f32 %v998, 1.442695
        %v1008 = vpow.pop %v1007
        %v1009 = vmul.f32 %v999, 1.442695
        %v1010 = vpow.pop %v1009
        %v1011 = vmul.f32 %v1000, 1.442695
        %v1012 = vpow.pop %v1011
        %v1013 = vmul.f32 %v1001, 1.442695
        %v1014 = vpow.pop %v1013
        %v1015 = vmul.f32 %v1002, 1.442695
        %v1016 = vpow.pop %v1015
        %v1017 = vmul.f32 %v1003, 1.442695
        %v1018 = vpow.pop %v1017
        %v1019 = vmul.f32 %v1004, 1.442695
        %v1020 = vpow.pop %v1019
        %v1021 = vpack.c.bf16 %v1008, %v1006
        %v1022 = vpack.c.bf16 %v1012, %v1010
        %v1023 = vpack.c.bf16 %v1016, %v1014
        %v1024 = vpack.c.bf16 %v1020, %v1018
        %v1025 = vunpack.c.l.bf16 %v1021
        %v1026 = vunpack.c.h.bf16 %v1021
        %v1027 = vunpack.c.l.bf16 %v1022
        %v1028 = vunpack.c.h.bf16 %v1022
        %v1029 = vunpack.c.l.bf16 %v1023
        %v1030 = vunpack.c.h.bf16 %v1023
        %v1031 = vunpack.c.l.bf16 %v1024
        %v1032 = vunpack.c.h.bf16 %v1024
        %v1033 = vsel %vm960, %v1025, 0.0
        %1034 = vadd.xlane.f32.xlu0 %v1033
        %v1035 = vpop.xlane.xlu0 %1034
        %v1036 = vsel %vm960, %v1026, 0.0
        %1037 = vadd.xlane.f32.xlu0 %v1036
        %v1038 = vpop.xlane.xlu0 %1037
        %v1039 = vsel %vm960, %v1027, 0.0
        %1040 = vadd.xlane.f32.xlu0 %v1039
        %v1041 = vpop.xlane.xlu0 %1040
        %v1042 = vsel %vm960, %v1028, 0.0
        %1043 = vadd.xlane.f32.xlu0 %v1042
        %v1044 = vpop.xlane.xlu0 %1043
        %v1045 = vsel %vm960, %v1029, 0.0
        %1046 = vadd.xlane.f32.xlu0 %v1045
        %v1047 = vpop.xlane.xlu0 %1046
        %v1048 = vsel %vm960, %v1030, 0.0
        %1049 = vadd.xlane.f32.xlu0 %v1048
        %v1050 = vpop.xlane.xlu0 %1049
        %v1051 = vsel %vm960, %v1031, 0.0
        %1052 = vadd.xlane.f32.xlu0 %v1051
        %v1053 = vpop.xlane.xlu0 %1052
        %v1054 = vsel %vm960, %v1032, 0.0
        %1055 = vadd.xlane.f32.xlu0 %v1054
        %v1056 = vpop.xlane.xlu0 %1055
        %v1065 = vunpack.c.l.b16 %v858
        %v1066 = vunpack.c.l.b16 %v859
        %v1067 = vunpack.c.l.b16 %v860
        %v1068 = vunpack.c.l.b16 %v861
        %v1069 = vunpack.c.l.b16 %v862
        %v1070 = vunpack.c.l.b16 %v863
        %v1071 = vunpack.c.l.b16 %v864
        %v1072 = vunpack.c.l.b16 %v865
        %v1073 = vpack.c.b16 %v1066, %v1065
        %v1074 = vpack.c.b16 %v1068, %v1067
        %v1075 = vpack.c.b16 %v1070, %v1069
        %v1076 = vpack.c.b16 %v1072, %v1071
        %v1082 = vsel %vm960, %v1021, 0
        %v1085 = vsel %vm960, %v1022, 0
        %v1088 = vsel %vm960, %v1023, 0
        %v1091 = vsel %vm960, %v1024, 0
        %1093 = vmatpush.bf16.msra.mxu0 0
        %1094 = vmatpush.bf16.msra.mxu0 0
        %1095 = vmatpush.bf16.msra.mxu0 0
        %1096 = vmatpush.bf16.msra.mxu0 0
        %1097 = vmatpush.bf16.msra.mxu0 %v1076
        %1098 = vmatpush.bf16.msra.mxu0 %v1075
        %1099 = vmatpush.bf16.msra.mxu0 %v1074
        %1100 = vmatpush.bf16.msra.mxu0 %v1073
        %1101 = vmatmul.bf16.gmra.mxu0 %v1082
        %v1102 = vpop.f32.mrf.mxu0
        %v1103 = vadd.f32 0.0, %v1102
        %v1104 = vpop.f32.mrf.mxu0
        %v1105 = vadd.f32 0.0, %v1104
        %1106 = vmatmul.bf16.gmra.mxu0 %v1085
        %v1107 = vpop.f32.mrf.mxu0
        %v1108 = vadd.f32 0.0, %v1107
        %v1109 = vpop.f32.mrf.mxu0
        %v1110 = vadd.f32 0.0, %v1109
        %1111 = vmatmul.bf16.gmra.mxu0 %v1088
        %v1112 = vpop.f32.mrf.mxu0
        %v1113 = vadd.f32 0.0, %v1112
        %v1114 = vpop.f32.mrf.mxu0
        %v1115 = vadd.f32 0.0, %v1114
        %1116 = vmatmul.bf16.gmra.mxu0 %v1091
        %v1117 = vpop.f32.mrf.mxu0
        %v1118 = vadd.f32 0.0, %v1117
        %v1119 = vpop.f32.mrf.mxu0
        %v1120 = vadd.f32 0.0, %v1119
        %1121 = vdwg.mxu0
        %v1122 = vrcp.pop %v1035
        %v1123 = vrcp.pop %v1038
        %v1124 = vrcp.pop %v1041
        %v1125 = vrcp.pop %v1044
        %v1126 = vrcp.pop %v1047
        %v1127 = vrcp.pop %v1050
        %v1128 = vrcp.pop %v1053
        %v1129 = vrcp.pop %v1056
        %v1130 = vmul.f32 %v1103, %v1122
        %v1131 = vmul.f32 %v1105, %v1123
        %v1132 = vmul.f32 %v1108, %v1124
        %v1133 = vmul.f32 %v1110, %v1125
        %v1134 = vmul.f32 %v1113, %v1126
        %v1135 = vmul.f32 %v1115, %v1127
        %v1136 = vmul.f32 %v1118, %v1128
        %v1137 = vmul.f32 %v1120, %v1129
        %v1138 = vpack.c.bf16 %v1130, %v1130
        %v1139 = vpack.c.bf16 %v1131, %v1131
        %v1140 = vpack.c.bf16 %v1132, %v1132
        %v1141 = vpack.c.bf16 %v1133, %v1133
        %v1142 = vpack.c.bf16 %v1134, %v1134
        %v1143 = vpack.c.bf16 %v1135, %v1135
        %v1144 = vpack.c.bf16 %v1136, %v1136
        %v1145 = vpack.c.bf16 %v1137, %v1137
        %vm1146 = vcmask 257024
        %1147 = vst.msk [vmem:[#allocation5] sm:$0xf] %vm1146, %v1138
        %1148 = vst.msk [vmem:[#allocation5 + $0x4] sm:$0xf] %vm1146, %v1139
        %1149 = vst.msk [vmem:[#allocation5 + $0x8] sm:$0xf] %vm1146, %v1140
        %1150 = vst.msk [vmem:[#allocation5 + $0xc] sm:$0xf] %vm1146, %v1141
        %1151 = vst.msk [vmem:[#allocation5 + $0x10] sm:$0xf] %vm1146, %v1142
        %1152 = vst.msk [vmem:[#allocation5 + $0x14] sm:$0xf] %vm1146, %v1143
        %1153 = vst.msk [vmem:[#allocation5 + $0x18] sm:$0xf] %vm1146, %v1144
        %1154 = vst.msk [vmem:[#allocation5 + $0x1c] sm:$0xf] %vm1146, %v1145
        %v1155 = vld [vmem:[%s841] sm:$0xf]
        %v1156 = vld [vmem:[%s841 + $0x4] sm:$0xf]
        %v1157 = vld [vmem:[%s841 + $0x8] sm:$0xf]
        %v1158 = vld [vmem:[%s841 + $0xc] sm:$0xf]
        %v1159 = vld [vmem:[%s841 + $0x10] sm:$0xf]
        %v1160 = vld [vmem:[%s841 + $0x14] sm:$0xf]
        %v1161 = vld [vmem:[%s841 + $0x18] sm:$0xf]
        %v1162 = vld [vmem:[%s841 + $0x1c] sm:$0xf]
        %v1163 = vld [vmem:[#allocation3] sm:$0xf]
        %v1164 = vld [vmem:[#allocation3 + $0x4] sm:$0xf]
        %v1165 = vld [vmem:[#allocation3 + $0x8] sm:$0xf]
        %v1166 = vld [vmem:[#allocation3 + $0xc] sm:$0xf]
        %v1167 = vld [vmem:[#allocation3 + $0x10] sm:$0xf]
        %v1168 = vld [vmem:[#allocation3 + $0x14] sm:$0xf]
        %v1169 = vld [vmem:[#allocation3 + $0x18] sm:$0xf]
        %v1170 = vld [vmem:[#allocation3 + $0x1c] sm:$0xf]
        %v1171 = vld [vmem:[#allocation4] sm:$0xf]
        %v1172 = vld [vmem:[#allocation4 + $0x4] sm:$0xf]
        %v1173 = vld [vmem:[#allocation4 + $0x8] sm:$0xf]
        %v1174 = vld [vmem:[#allocation4 + $0xc] sm:$0xf]
        %v1175 = vld [vmem:[#allocation4 + $0x10] sm:$0xf]
        %v1176 = vld [vmem:[#allocation4 + $0x14] sm:$0xf]
        %v1177 = vld [vmem:[#allocation4 + $0x18] sm:$0xf]
        %v1178 = vld [vmem:[#allocation4 + $0x1c] sm:$0xf]
        %v1187 = vunpack.c.l.b16 %v1155
        %v1188 = vunpack.c.l.b16 %v1156
        %v1189 = vunpack.c.l.b16 %v1157
        %v1190 = vunpack.c.l.b16 %v1158
        %v1191 = vunpack.c.l.b16 %v1159
        %v1192 = vunpack.c.l.b16 %v1160
        %v1193 = vunpack.c.l.b16 %v1161
        %v1194 = vunpack.c.l.b16 %v1162
        %v1195 = vpack.c.b16 %v1188, %v1187
        %v1196 = vpack.c.b16 %v1190, %v1189
        %v1197 = vpack.c.b16 %v1192, %v1191
        %v1198 = vpack.c.b16 %v1194, %v1193
        %1199 = vrot.lane.b32.xlu0 %v1195, 96
        %v1200 = vpop.permute.xlu0 %1199
        %1201 = vrot.lane.b32.xlu0 %v1196, 96
        %v1202 = vpop.permute.xlu0 %1201
        %1203 = vrot.lane.b32.xlu0 %v1197, 96
        %v1204 = vpop.permute.xlu0 %1203
        %1205 = vrot.lane.b32.xlu0 %v1198, 96
        %v1206 = vpop.permute.xlu0 %1205
        %v1215 = vunpack.c.l.b16 %v1163
        %v1216 = vunpack.c.l.b16 %v1164
        %v1217 = vunpack.c.l.b16 %v1165
        %v1218 = vunpack.c.l.b16 %v1166
        %v1219 = vunpack.c.l.b16 %v1167
        %v1220 = vunpack.c.l.b16 %v1168
        %v1221 = vunpack.c.l.b16 %v1169
        %v1222 = vunpack.c.l.b16 %v1170
        %v1223 = vpack.c.b16 %v1216, %v1215
        %v1224 = vpack.c.b16 %v1218, %v1217
        %v1225 = vpack.c.b16 %v1220, %v1219
        %v1226 = vpack.c.b16 %v1222, %v1221
        %1227 = vrot.lane.b32.xlu0 %v1223, 96
        %v1228 = vpop.permute.xlu0 %1227
        %1229 = vrot.lane.b32.xlu0 %v1224, 96
        %v1230 = vpop.permute.xlu0 %1229
        %1231 = vrot.lane.b32.xlu0 %v1225, 96
        %v1232 = vpop.permute.xlu0 %1231
        %1233 = vrot.lane.b32.xlu0 %v1226, 96
        %v1234 = vpop.permute.xlu0 %1233
        %v1236 = vsel %vm906, %v1200, 0
        %v1239 = vsel %vm906, %v1202, 0
        %v1242 = vsel %vm906, %v1204, 0
        %v1245 = vsel %vm906, %v1206, 0
        %v1248 = vsel %vm906, %v1228, 0
        %v1251 = vsel %vm906, %v1230, 0
        %v1254 = vsel %vm906, %v1232, 0
        %v1257 = vsel %vm906, %v1234, 0
        %1259 = vmatpush.bf16.xpose.msra.mxu0 0
        %1260 = vmatpush.bf16.xpose.msra.mxu0 0
        %1261 = vmatpush.bf16.xpose.msra.mxu0 0
        %1262 = vmatpush.bf16.xpose.msra.mxu0 0
        %1263 = vmatpush.bf16.xpose.msra.mxu0 %v1257
        %1264 = vmatpush.bf16.xpose.msra.mxu0 %v1254
        %1265 = vmatpush.bf16.xpose.msra.mxu0 %v1251
        %1266 = vmatpush.bf16.xpose.msra.mxu0 %v1248
        %1267 = vmatmul.bf16.gmra.mxu0 %v1236
        %v1268 = vpop.f32.mrf.mxu0
        %v1269 = vadd.f32 0.0, %v1268
        %v1270 = vpop.f32.mrf.mxu0
        %v1271 = vadd.f32 0.0, %v1270
        %1272 = vmatmul.bf16.gmra.mxu0 %v1239
        %v1273 = vpop.f32.mrf.mxu0
        %v1274 = vadd.f32 0.0, %v1273
        %v1275 = vpop.f32.mrf.mxu0
        %v1276 = vadd.f32 0.0, %v1275
        %1277 = vmatmul.bf16.gmra.mxu0 %v1242
        %v1278 = vpop.f32.mrf.mxu0
        %v1279 = vadd.f32 0.0, %v1278
        %v1280 = vpop.f32.mrf.mxu0
        %v1281 = vadd.f32 0.0, %v1280
        %1282 = vmatmul.bf16.gmra.mxu0 %v1245
        %v1283 = vpop.f32.mrf.mxu0
        %v1284 = vadd.f32 0.0, %v1283
        %v1285 = vpop.f32.mrf.mxu0
        %v1286 = vadd.f32 0.0, %v1285
        %1287 = vdwg.mxu0
        %v1288 = vsel %vm960, %v1269, -inf
        %1289 = vmax.xlane.f32.xlu0 %v1288
        %v1290 = vpop.xlane.xlu0 %1289
        %v1291 = vsel %vm960, %v1271, -inf
        %1292 = vmax.xlane.f32.xlu0 %v1291
        %v1293 = vpop.xlane.xlu0 %1292
        %v1294 = vsel %vm960, %v1274, -inf
        %1295 = vmax.xlane.f32.xlu0 %v1294
        %v1296 = vpop.xlane.xlu0 %1295
        %v1297 = vsel %vm960, %v1276, -inf
        %1298 = vmax.xlane.f32.xlu0 %v1297
        %v1299 = vpop.xlane.xlu0 %1298
        %v1300 = vsel %vm960, %v1279, -inf
        %1301 = vmax.xlane.f32.xlu0 %v1300
        %v1302 = vpop.xlane.xlu0 %1301
        %v1303 = vsel %vm960, %v1281, -inf
        %1304 = vmax.xlane.f32.xlu0 %v1303
        %v1305 = vpop.xlane.xlu0 %1304
        %v1306 = vsel %vm960, %v1284, -inf
        %1307 = vmax.xlane.f32.xlu0 %v1306
        %v1308 = vpop.xlane.xlu0 %1307
        %v1309 = vsel %vm960, %v1286, -inf
        %1310 = vmax.xlane.f32.xlu0 %v1309
        %v1311 = vpop.xlane.xlu0 %1310
        %v1312 = vsub.f32 %v1269, %v1290
        %v1313 = vsub.f32 %v1271, %v1293
        %v1314 = vsub.f32 %v1274, %v1296
        %v1315 = vsub.f32 %v1276, %v1299
        %v1316 = vsub.f32 %v1279, %v1302
        %v1317 = vsub.f32 %v1281, %v1305
        %v1318 = vsub.f32 %v1284, %v1308
        %v1319 = vsub.f32 %v1286, %v1311
        %v1320 = vpack.c.bf16 %v1313, %v1312
        %v1321 = vpack.c.bf16 %v1315, %v1314
        %v1322 = vpack.c.bf16 %v1317, %v1316
        %v1323 = vpack.c.bf16 %v1319, %v1318
        %v1324 = vunpack.c.l.bf16 %v1320
        %v1325 = vunpack.c.h.bf16 %v1320
        %v1326 = vunpack.c.l.bf16 %v1321
        %v1327 = vunpack.c.h.bf16 %v1321
        %v1328 = vunpack.c.l.bf16 %v1322
        %v1329 = vunpack.c.h.bf16 %v1322
        %v1330 = vunpack.c.l.bf16 %v1323
        %v1331 = vunpack.c.h.bf16 %v1323
        %v1332 = vmul.f32 %v1324, 1.442695
        %v1333 = vpow.pop %v1332
        %v1334 = vmul.f32 %v1325, 1.442695
        %v1335 = vpow.pop %v1334
        %v1336 = vmul.f32 %v1326, 1.442695
        %v1337 = vpow.pop %v1336
        %v1338 = vmul.f32 %v1327, 1.442695
        %v1339 = vpow.pop %v1338
        %v1340 = vmul.f32 %v1328, 1.442695
        %v1341 = vpow.pop %v1340
        %v1342 = vmul.f32 %v1329, 1.442695
        %v1343 = vpow.pop %v1342
        %v1344 = vmul.f32 %v1330, 1.442695
        %v1345 = vpow.pop %v1344
        %v1346 = vmul.f32 %v1331, 1.442695
        %v1347 = vpow.pop %v1346
        %v1348 = vpack.c.bf16 %v1335, %v1333
        %v1349 = vpack.c.bf16 %v1339, %v1337
        %v1350 = vpack.c.bf16 %v1343, %v1341
        %v1351 = vpack.c.bf16 %v1347, %v1345
        %v1352 = vunpack.c.l.bf16 %v1348
        %v1353 = vunpack.c.h.bf16 %v1348
        %v1354 = vunpack.c.l.bf16 %v1349
        %v1355 = vunpack.c.h.bf16 %v1349
        %v1356 = vunpack.c.l.bf16 %v1350
        %v1357 = vunpack.c.h.bf16 %v1350
        %v1358 = vunpack.c.l.bf16 %v1351
        %v1359 = vunpack.c.h.bf16 %v1351
        %v1360 = vsel %vm960, %v1352, 0.0
        %1361 = vadd.xlane.f32.xlu0 %v1360
        %v1362 = vpop.xlane.xlu0 %1361
        %v1363 = vsel %vm960, %v1353, 0.0
        %1364 = vadd.xlane.f32.xlu0 %v1363
        %v1365 = vpop.xlane.xlu0 %1364
        %v1366 = vsel %vm960, %v1354, 0.0
        %1367 = vadd.xlane.f32.xlu0 %v1366
        %v1368 = vpop.xlane.xlu0 %1367
        %v1369 = vsel %vm960, %v1355, 0.0
        %1370 = vadd.xlane.f32.xlu0 %v1369
        %v1371 = vpop.xlane.xlu0 %1370
        %v1372 = vsel %vm960, %v1356, 0.0
        %1373 = vadd.xlane.f32.xlu0 %v1372
        %v1374 = vpop.xlane.xlu0 %1373
        %v1375 = vsel %vm960, %v1357, 0.0
        %1376 = vadd.xlane.f32.xlu0 %v1375
        %v1377 = vpop.xlane.xlu0 %1376
        %v1378 = vsel %vm960, %v1358, 0.0
        %1379 = vadd.xlane.f32.xlu0 %v1378
        %v1380 = vpop.xlane.xlu0 %1379
        %v1381 = vsel %vm960, %v1359, 0.0
        %1382 = vadd.xlane.f32.xlu0 %v1381
        %v1383 = vpop.xlane.xlu0 %1382
        %v1392 = vunpack.c.l.b16 %v1171
        %v1393 = vunpack.c.l.b16 %v1172
        %v1394 = vunpack.c.l.b16 %v1173
        %v1395 = vunpack.c.l.b16 %v1174
        %v1396 = vunpack.c.l.b16 %v1175
        %v1397 = vunpack.c.l.b16 %v1176
        %v1398 = vunpack.c.l.b16 %v1177
        %v1399 = vunpack.c.l.b16 %v1178
        %v1400 = vpack.c.b16 %v1393, %v1392
        %v1401 = vpack.c.b16 %v1395, %v1394
        %v1402 = vpack.c.b16 %v1397, %v1396
        %v1403 = vpack.c.b16 %v1399, %v1398
        %1404 = vrot.lane.b32.xlu0 %v1400, 96
        %v1405 = vpop.permute.xlu0 %1404
        %1406 = vrot.lane.b32.xlu0 %v1401, 96
        %v1407 = vpop.permute.xlu0 %1406
        %1408 = vrot.lane.b32.xlu0 %v1402, 96
        %v1409 = vpop.permute.xlu0 %1408
        %1410 = vrot.lane.b32.xlu0 %v1403, 96
        %v1411 = vpop.permute.xlu0 %1410
        %v1417 = vsel %vm960, %v1348, 0
        %v1420 = vsel %vm960, %v1349, 0
        %v1423 = vsel %vm960, %v1350, 0
        %v1426 = vsel %vm960, %v1351, 0
        %1428 = vmatpush.bf16.msra.mxu0 0
        %1429 = vmatpush.bf16.msra.mxu0 0
        %1430 = vmatpush.bf16.msra.mxu0 0
        %1431 = vmatpush.bf16.msra.mxu0 0
        %1432 = vmatpush.bf16.msra.mxu0 %v1411
        %1433 = vmatpush.bf16.msra.mxu0 %v1409
        %1434 = vmatpush.bf16.msra.mxu0 %v1407
        %1435 = vmatpush.bf16.msra.mxu0 %v1405
        %1436 = vmatmul.bf16.gmra.mxu0 %v1417
        %v1437 = vpop.f32.mrf.mxu0
        %v1438 = vadd.f32 0.0, %v1437
        %v1439 = vpop.f32.mrf.mxu0
        %v1440 = vadd.f32 0.0, %v1439
        %1441 = vmatmul.bf16.gmra.mxu0 %v1420
        %v1442 = vpop.f32.mrf.mxu0
        %v1443 = vadd.f32 0.0, %v1442
        %v1444 = vpop.f32.mrf.mxu0
        %v1445 = vadd.f32 0.0, %v1444
        %1446 = vmatmul.bf16.gmra.mxu0 %v1423
        %v1447 = vpop.f32.mrf.mxu0
        %v1448 = vadd.f32 0.0, %v1447
        %v1449 = vpop.f32.mrf.mxu0
        %v1450 = vadd.f32 0.0, %v1449
        %1451 = vmatmul.bf16.gmra.mxu0 %v1426
        %v1452 = vpop.f32.mrf.mxu0
        %v1453 = vadd.f32 0.0, %v1452
        %v1454 = vpop.f32.mrf.mxu0
        %v1455 = vadd.f32 0.0, %v1454
        %1456 = vdwg.mxu0
        %v1457 = vrcp.pop %v1362
        %v1458 = vrcp.pop %v1365
        %v1459 = vrcp.pop %v1368
        %v1460 = vrcp.pop %v1371
        %v1461 = vrcp.pop %v1374
        %v1462 = vrcp.pop %v1377
        %v1463 = vrcp.pop %v1380
        %v1464 = vrcp.pop %v1383
        %v1465 = vmul.f32 %v1438, %v1457
        %v1466 = vmul.f32 %v1440, %v1458
        %v1467 = vmul.f32 %v1443, %v1459
        %v1468 = vmul.f32 %v1445, %v1460
        %v1469 = vmul.f32 %v1448, %v1461
        %v1470 = vmul.f32 %v1450, %v1462
        %v1471 = vmul.f32 %v1453, %v1463
        %v1472 = vmul.f32 %v1455, %v1464
        %v1473 = vpack.c.bf16 %v1465, %v1465
        %v1474 = vpack.c.bf16 %v1466, %v1466
        %v1475 = vpack.c.bf16 %v1467, %v1467
        %v1476 = vpack.c.bf16 %v1468, %v1468
        %v1477 = vpack.c.bf16 %v1469, %v1469
        %v1478 = vpack.c.bf16 %v1470, %v1470
        %v1479 = vpack.c.bf16 %v1471, %v1471
        %v1480 = vpack.c.bf16 %v1472, %v1472
        %1489 = vrot.lane.b32.xlu0 %v1473, 32
        %v1490 = vpop.permute.xlu0 %1489
        %1491 = vrot.lane.b32.xlu0 %v1474, 32
        %v1492 = vpop.permute.xlu0 %1491
        %1493 = vrot.lane.b32.xlu0 %v1475, 32
        %v1494 = vpop.permute.xlu0 %1493
        %1495 = vrot.lane.b32.xlu0 %v1476, 32
        %v1496 = vpop.permute.xlu0 %1495
        %1497 = vrot.lane.b32.xlu0 %v1477, 32
        %v1498 = vpop.permute.xlu0 %1497
        %1499 = vrot.lane.b32.xlu0 %v1478, 32
        %v1500 = vpop.permute.xlu0 %1499
        %1501 = vrot.lane.b32.xlu0 %v1479, 32
        %v1502 = vpop.permute.xlu0 %1501
        %1503 = vrot.lane.b32.xlu0 %v1480, 32
        %v1504 = vpop.permute.xlu0 %1503
        %vm1513 = vcmask 519424
        %1514 = vst.msk [vmem:[#allocation5] sm:$0xf] %vm1513, %v1490
        %1515 = vst.msk [vmem:[#allocation5 + $0x4] sm:$0xf] %vm1513, %v1492
        %1516 = vst.msk [vmem:[#allocation5 + $0x8] sm:$0xf] %vm1513, %v1494
        %1517 = vst.msk [vmem:[#allocation5 + $0xc] sm:$0xf] %vm1513, %v1496
        %1518 = vst.msk [vmem:[#allocation5 + $0x10] sm:$0xf] %vm1513, %v1498
        %1519 = vst.msk [vmem:[#allocation5 + $0x14] sm:$0xf] %vm1513, %v1500
        %1520 = vst.msk [vmem:[#allocation5 + $0x18] sm:$0xf] %vm1513, %v1502
        %1521 = vst.msk [vmem:[#allocation5 + $0x1c] sm:$0xf] %vm1513, %v1504
        %v1522 = vld [vmem:[#allocation5] sm:$0xf]
        %v1523 = vld [vmem:[#allocation5 + $0x4] sm:$0xf]
        %v1524 = vld [vmem:[#allocation5 + $0x8] sm:$0xf]
        %v1525 = vld [vmem:[#allocation5 + $0xc] sm:$0xf]
        %v1526 = vld [vmem:[#allocation5 + $0x10] sm:$0xf]
        %v1527 = vld [vmem:[#allocation5 + $0x14] sm:$0xf]
        %v1528 = vld [vmem:[#allocation5 + $0x18] sm:$0xf]
        %v1529 = vld [vmem:[#allocation5 + $0x1c] sm:$0xf]
        %v1530 = vld [vmem:[#allocation11] sm:$0xf]
        %v1531 = vld [vmem:[#allocation11 + $0x4] sm:$0xf]
        %v1532 = vld [vmem:[#allocation11 + $0x8] sm:$0xf]
        %v1533 = vld [vmem:[#allocation11 + $0xc] sm:$0xf]
        %v1534 = vld [vmem:[#allocation11 + $0x10] sm:$0xf]
        %v1535 = vld [vmem:[#allocation11 + $0x14] sm:$0xf]
        %v1536 = vld [vmem:[#allocation11 + $0x18] sm:$0xf]
        %v1537 = vld [vmem:[#allocation11 + $0x1c] sm:$0xf]
        %v1546 = vunpack.c.l.b16 %v1522
        %v1547 = vunpack.c.l.b16 %v1523
        %v1548 = vunpack.c.l.b16 %v1524
        %v1549 = vunpack.c.l.b16 %v1525
        %v1550 = vunpack.c.l.b16 %v1526
        %v1551 = vunpack.c.l.b16 %v1527
        %v1552 = vunpack.c.l.b16 %v1528
        %v1553 = vunpack.c.l.b16 %v1529
        %v1554 = vpack.c.b16 %v1547, %v1546
        %v1555 = vpack.c.b16 %v1549, %v1548
        %v1556 = vpack.c.b16 %v1551, %v1550
        %v1557 = vpack.c.b16 %v1553, %v1552
        %v1566 = vunpack.c.l.b16 %v1530
        %v1567 = vunpack.c.l.b16 %v1531
        %v1568 = vunpack.c.l.b16 %v1532
        %v1569 = vunpack.c.l.b16 %v1533
        %v1570 = vunpack.c.l.b16 %v1534
        %v1571 = vunpack.c.l.b16 %v1535
        %v1572 = vunpack.c.l.b16 %v1536
        %v1573 = vunpack.c.l.b16 %v1537
        %v1574 = vpack.c.b16 %v1567, %v1566
        %v1575 = vpack.c.b16 %v1569, %v1568
        %v1576 = vpack.c.b16 %v1571, %v1570
        %v1577 = vpack.c.b16 %v1573, %v1572
        %v1583 = vsel %vm960, %v1554, 0
        %v1586 = vsel %vm960, %v1555, 0
        %v1589 = vsel %vm960, %v1556, 0
        %v1592 = vsel %vm960, %v1557, 0
        %1594 = vmatpush.bf16.msra.mxu0 0
        %1595 = vmatpush.bf16.msra.mxu0 0
        %1596 = vmatpush.bf16.msra.mxu0 0
        %1597 = vmatpush.bf16.msra.mxu0 0
        %1598 = vmatpush.bf16.msra.mxu0 %v1577
        %1599 = vmatpush.bf16.msra.mxu0 %v1576
        %1600 = vmatpush.bf16.msra.mxu0 %v1575
        %1601 = vmatpush.bf16.msra.mxu0 %v1574
        %1602 = vmatmul.bf16.gmra.mxu0 %v1583
        %v1603 = vpop.f32.mrf.mxu0
        %v1604 = vadd.f32 0.0, %v1603
        %v1605 = vpop.f32.mrf.mxu0
        %v1606 = vadd.f32 0.0, %v1605
        %1607 = vmatmul.bf16.gmra.mxu0 %v1586
        %v1608 = vpop.f32.mrf.mxu0
        %v1609 = vadd.f32 0.0, %v1608
        %v1610 = vpop.f32.mrf.mxu0
        %v1611 = vadd.f32 0.0, %v1610
        %1612 = vmatmul.bf16.gmra.mxu0 %v1589
        %v1613 = vpop.f32.mrf.mxu0
        %v1614 = vadd.f32 0.0, %v1613
        %v1615 = vpop.f32.mrf.mxu0
        %v1616 = vadd.f32 0.0, %v1615
        %1617 = vmatmul.bf16.gmra.mxu0 %v1592
        %v1618 = vpop.f32.mrf.mxu0
        %v1619 = vadd.f32 0.0, %v1618
        %v1620 = vpop.f32.mrf.mxu0
        %v1621 = vadd.f32 0.0, %v1620
        %1622 = vdwg.mxu0
        %s1623 = smul.addr %s838, 4
        %s1624 = scalar_lea.vmem %s392, %s1623
        %v1625 = vld [vmem:[%s1624] sm:$0xf]
        %v1626 = vld [vmem:[%s1624 + $0x4] sm:$0xf]
        %v1627 = vld [vmem:[%s1624 + $0x8] sm:$0xf]
        %v1628 = vld [vmem:[%s1624 + $0xc] sm:$0xf]
        %v1629 = vld [vmem:[%s1624 + $0x10] sm:$0xf]
        %v1630 = vld [vmem:[%s1624 + $0x14] sm:$0xf]
        %v1631 = vld [vmem:[%s1624 + $0x18] sm:$0xf]
        %v1632 = vld [vmem:[%s1624 + $0x1c] sm:$0xf]
        %v1633 = vunpack.c.l.bf16 %v1625
        %v1634 = vunpack.c.l.bf16 %v1626
        %v1635 = vunpack.c.l.bf16 %v1627
        %v1636 = vunpack.c.l.bf16 %v1628
        %v1637 = vunpack.c.l.bf16 %v1629
        %v1638 = vunpack.c.l.bf16 %v1630
        %v1639 = vunpack.c.l.bf16 %v1631
        %v1640 = vunpack.c.l.bf16 %v1632
        %v1641 = vadd.f32 %v1633, %v1604
        %v1642 = vadd.f32 %v1634, %v1606
        %v1643 = vadd.f32 %v1635, %v1609
        %v1644 = vadd.f32 %v1636, %v1611
        %v1645 = vadd.f32 %v1637, %v1614
        %v1646 = vadd.f32 %v1638, %v1616
        %v1647 = vadd.f32 %v1639, %v1619
        %v1648 = vadd.f32 %v1640, %v1621
        %v1649 = vld [vmem:[%s8] sm:$0x1]
        %v1651 = vperm.slane %v1649, 0
        %v1653 = vadd.f32 %v1641, %v1651
        %v1654 = vadd.f32 %v1642, %v1651
        %v1655 = vadd.f32 %v1643, %v1651
        %v1656 = vadd.f32 %v1644, %v1651
        %v1657 = vadd.f32 %v1645, %v1651
        %v1658 = vadd.f32 %v1646, %v1651
        %v1659 = vadd.f32 %v1647, %v1651
        %v1660 = vadd.f32 %v1648, %v1651
        %1661 = vst.msk [vmem:[%s387] sm:$0xff] %vm960, %v1653
        %1662 = vst.msk [vmem:[%s387 + $0x8] sm:$0xff] %vm960, %v1654
        %1663 = vst.msk [vmem:[%s387 + $0x10] sm:$0xff] %vm960, %v1655
        %1664 = vst.msk [vmem:[%s387 + $0x18] sm:$0xff] %vm960, %v1656
        %1665 = vst.msk [vmem:[%s387 + $0x20] sm:$0xff] %vm960, %v1657
        %1666 = vst.msk [vmem:[%s387 + $0x28] sm:$0xff] %vm960, %v1658
        %1667 = vst.msk [vmem:[%s387 + $0x30] sm:$0xff] %vm960, %v1659
        %1668 = vst.msk [vmem:[%s387 + $0x38] sm:$0xff] %vm960, %v1660
        %s1669 = sand.u32 %s241, 1
        %s1670 = scalar_lea.sflag [#allocation8], %s1669
        %s1671 = sand.u32 %s241, 1
        %s1672 = smul.addr %s1671, 64
        %s1673 = scalar_lea.vmem [#allocation12], %s1672
        // Predicated region
        $region73: #{tpu_custom_call.1} parent=55 // pred_check
          %p1674 = pneg %p251
        $region74: #{tpu_custom_call.1} parent=55 // pred_check_branch
          %1676 = sbr.rel (%p1674) target = $region76
        $region75: #{tpu_custom_call.1} parent=55 // pred_region
          %s1677 = smul.u32 8, %s30
          %1679 = vsyncadd %s1670, 0
          %s1680 = smul.addr %s29, 8
          %s1681 = sadd.s32 %s1677, %s1680
          %s1682 = smul.addr %s1681, 8
          %s1683 = scalar_lea.hbm %s9, %s1682
          %s1684 = sshll.u32 %s1673, 4
          %s1685 = int_to_ptr.vmem [resolvable:$true] %s1684
          %s1686 = sshll.u32 %s1683, 4
          %s1687 = int_to_ptr.hbm [resolvable:$true] %s1686
          %1692 = dma.vmem_to_hbm [thread:$0]  %s1685, 1024, %s1687, %s1670, 128, 128, 8
        $region76: #{tpu_custom_call.1} parent=55 // pred_fallthru
          _
      $region56: #{tpu_custom_call.1} parent=5 // pred_fallthru
        _
      %p1693 = scmp.le.s32.totalorder 2, %s20
      // Predicated region
      $region77: #{tpu_custom_call.1} parent=5 // pred_check
        %p1694 = pneg %p1693
      $region78: #{tpu_custom_call.1} parent=5 // pred_check_branch
        %1696 = sbr.rel (%p1694) target = $region80
      $region79: #{tpu_custom_call.1} parent=5 // pred_region
        %s1697 = ssub.s32 %s20, 2
        // Predicated region
        $region81: #{tpu_custom_call.1} parent=79 // pred_check
          %p1698 = pneg %p257
        $region82: #{tpu_custom_call.1} parent=79 // pred_check_branch
          %1700 = sbr.rel (%p1698) target = $region84
        $region83: #{tpu_custom_call.1} parent=79 // pred_region
          %s1701 = sand.u32 %s242, 1
          %s1702 = scalar_lea.sflag [#allocation8], %s1701
          %s1703 = sand.u32 %s242, 1
          %s1704 = smul.addr %s1703, 64
          %s1705 = scalar_lea.vmem [#allocation12], %s1704
          %1707 = dma.done %s1702, 1024
        $region84: #{tpu_custom_call.1} parent=79 // pred_fallthru
          _
      $region80: #{tpu_custom_call.1} parent=5 // pred_fallthru
        _
    $region6: #{tpu_custom_call.1} parent=1 // loop_footer
      %s24 = sadd.s32 1, %s20
    $region7: #{tpu_custom_call.1} parent=1 // loop_footer_branch
      %19 = sbr.rel target = $region3
    $region8: #{tpu_custom_call.1} parent=1 // loop_exit
      _
    %1708 = vsyncpa [#allocation7], 1
    %s1709 = scalar_lea.sflag [#allocation7], 1
    %1710 = vsyncpa %s1709, 1
    %1711 = vsyncpa [#allocation10], 1
    %1712 = vsyncpa [#allocation8], 1
    %s1713 = scalar_lea.sflag [#allocation8], 1
    %1714 = vsyncpa %s1713, 1

// kernel: tpu_custom_call.1
$region0: #{tpu_custom_call.1}
  #allocation0 [shape = 'u32[]', space=smem, size = 0x4, offset = 0x4, fixed_abs, tag = 'smem constant byte address 0x4 - core index']
  #allocation1 [shape = 'u32[72,128]{1,0:T(1,128)}', space=vmem, size = 0x9000, scoped, tag = 'internal scratch']
  #allocation2 [shape = 'bf16[64,64]{1,0:T(8,128)(2,1)}', space=vmem, size = 0x4000, scoped, tag = 'scratch operand']
  #allocation3 [shape = 'bf16[64,64]{1,0:T(8,128)(2,1)}', space=vmem, size = 0x4000, scoped, tag = 'scratch operand']
  #allocation4 [shape = 'bf16[64,64]{1,0:T(8,128)(2,1)}', space=vmem, size = 0x4000, scoped, tag = 'scratch operand']
  #allocation5 [shape = 'bf16[64,64]{1,0:T(8,128)(2,1)}', space=vmem, size = 0x4000, scoped, tag = 'scratch operand']
  %s0 = inlined_call_operand.vmem [shape: bf16[2,64,64], index: 0, kind: input, shape index: {}]
  %s1 = inlined_call_operand.hbm [shape: f32[1,64], index: 1, kind: input, shape index: {}]
  %s2 = inlined_call_operand.vmem [shape: f32[1,64], index: 2, kind: input, shape index: {}]
  %s3 = inlined_call_operand.vmem [shape: f32[64,32], index: 3, kind: input, shape index: {}]
  %s4 = inlined_call_operand.vmem [shape: f32[32,64], index: 4, kind: input, shape index: {}]
  %s5 = inlined_call_operand.hbm [shape: bf16[64,192], index: 5, kind: input, shape index: {}]
  %s6 = inlined_call_operand.vmem [shape: f32[1,192], index: 6, kind: input, shape index: {}]
  %s7 = inlined_call_operand.hbm [shape: bf16[64,64], index: 7, kind: input, shape index: {}]
  %s8 = inlined_call_operand.vmem [shape: f32[1,64], index: 8, kind: input, shape index: {}]
  %s9 = inlined_call_operand.hbm [shape: f32[2,64,64], index: 9, kind: output, shape index: {}]
  %s10 = sld [smem:[#allocation0]]
  $region85: #{tpu_custom_call.1} parent=0
    _
  %s12 = ssub.s32 1, %s10
  %s13 = scalar_select 0, %s12, %s10
  $region1: #{tpu_custom_call.1} parent=0
    #allocation6 [shape = 'u8[512]{0}', space=vmem, size = 0x400, scoped, tag = 'input window, operand 1, single buffered']
    #allocation7 [shape = 's32[2]{0}', space=sflag, size = 0x8, scoped, tag = 'scoped memory for tpu_custom_call.1']
    #allocation8 [shape = 's32[2]{0}', space=sflag, size = 0x8, scoped, tag = 'scoped memory for tpu_custom_call.1']
    #allocation9 [shape = 'u8[32768]{0}', space=vmem, size = 0x8000, scoped, tag = 'input window, operand 5, single buffered']
    #allocation10 [shape = 's32[1]{0}', space=sflag, size = 0x4, scoped, tag = 'scoped memory for tpu_custom_call.1']
    #allocation11 [shape = 'u8[16384]{0}', space=vmem, size = 0x4000, scoped, tag = 'input window, operand 7, single buffered']
    #allocation12 [shape = 'u8[65536]{0}', space=vmem, size = 0x10000, scoped, tag = 'output window, operand 0']
    %14 = vsyncpa [#allocation7], 0
    %15 = vsyncpa [#allocation10], 0
    %16 = vsyncpa [#allocation8], 0
    %s17 = scalar_lea.sflag [#allocation8], 1
    %18 = vsyncpa %s17, 0
    loop: start=0, step=1, limit=4
    $region2: #{tpu_custom_call.1} parent=1 // loop_pre_header
      _
    $region3: #{tpu_custom_call.1} parent=1 // loop_header
      %s20 = sphi 0, %s24
      %p21 = scmp.ge.s32.totalorder %s20, 4
      %s27 = sphi 0, %s39
      %s28 = sphi 0, %s35
      %s29 = sphi 0, %s27
      %s30 = sphi 0, %s28
      %s31 = sphi 0, %s29
      %s32 = sphi 0, %s30
      %s42 = sphi 0, %s44
      %s45 = sphi 0, %s42
      %s46 = sphi 0, %s45
      %s62 = sphi 0, %s46
      %s66 = sphi 0, %s66
      %s68 = sphi 0, %s66
      %s69 = sphi 0, %s68
      %s83 = sphi 0, %s69
      %s87 = sphi 0, %s87
      %s89 = sphi 0, %s87
      %s90 = sphi 0, %s89
      %s104 = sphi 0, %s90
      %s108 = sphi 0, %s108
      %s110 = sphi 0, %s108
      %s111 = sphi 0, %s110
      %s125 = sphi 0, %s111
      %s129 = sphi 0, %s129
      %s131 = sphi 0, %s129
      %s132 = sphi 0, %s131
      %s146 = sphi 0, %s132
      %s150 = sphi 0, %s150
      %s152 = sphi 0, %s150
      %s153 = sphi 0, %s152
      %s167 = sphi 0, %s153
      %s171 = sphi 0, %s171
      %s173 = sphi 0, %s171
      %s174 = sphi 0, %s173
      %s188 = sphi 0, %s174
      %s192 = sphi 0, %s192
      %s194 = sphi 0, %s192
      %s195 = sphi 0, %s194
      %s209 = sphi 0, %s195
      %s213 = sphi 0, %s213
      %s215 = sphi 0, %s213
      %s216 = sphi 0, %s215
      %s230 = sphi 0, %s216
      %s238 = sphi 0, %s240
      %s241 = sphi 0, %s238
      %s242 = sphi 0, %s241
      %s258 = sphi 0, %s242
    $region4: #{tpu_custom_call.1} parent=1 // loop_header_branch
      %23 = sbr.rel (%p21) target = $region8
    $region5: #{tpu_custom_call.1} parent=1 // loop_body
      %s25 = ssub.s32 %s20, 1
      %s26 = ssub.s32 %s20, 2
      %s33 = sadd.s32 1, %s28
      %p34 = scmp.ge.s32.totalorder %s33, 1
      %s35 = scalar_select %p34, 0, %s33
      %s36 = sadd.s32 1, %s27
      %s37 = scalar_select %p34, %s36, %s27
      %p38 = scmp.ge.s32.totalorder %s37, 2
      %s39 = scalar_select %p38, 0, %s37
      %s40 = ssub.s32 %s27, %s39
      %p41 = scmp.eq.s32.totalorder %s40, 0
      %s43 = sadd.s32 %s42, 1
      %s44 = scalar_select %p41, %s42, %s43
      %p47 = pneg %p41
      %p48 = scmp.eq.s32.totalorder %s20, 1
      %p49 = por %p47, %p48
      %p50 = scmp.ne.s32.totalorder %s42, %s45
      %p51 = scmp.eq.s32.totalorder %s20, 0
      %p52 = por %p50, %p51
      %p53 = scmp.ne.s32.totalorder %s42, %s45
      %p54 = scmp.eq.s32.totalorder %s25, 1
      %p55 = por %p53, %p54
      %p56 = scmp.ne.s32.totalorder %s45, %s46
      %p57 = scmp.eq.s32.totalorder %s25, 0
      %p58 = por %p56, %p57
      %p59 = scmp.ne.s32.totalorder %s45, %s46
      %p60 = scmp.eq.s32.totalorder %s26, 1
      %p61 = por %p59, %p60
      %p63 = scmp.ne.s32.totalorder %s46, %s62
      %p64 = scmp.eq.s32.totalorder %s26, 0
      %p65 = por %p63, %p64
      %s67 = sadd.s32 %s66, 1
      %p70 = scmp.eq.s32.totalorder %s20, 1
      %p71 = scmp.ne.s32.totalorder %s66, %s68
      %p72 = scmp.eq.s32.totalorder %s20, 0
      %p73 = por %p71, %p72
      %p74 = scmp.ne.s32.totalorder %s66, %s68
      %p75 = scmp.eq.s32.totalorder %s25, 1
      %p76 = por %p74, %p75
      %p77 = scmp.ne.s32.totalorder %s68, %s69
      %p78 = scmp.eq.s32.totalorder %s25, 0
      %p79 = por %p77, %p78
      %p80 = scmp.ne.s32.totalorder %s68, %s69
      %p81 = scmp.eq.s32.totalorder %s26, 1
      %p82 = por %p80, %p81
      %p84 = scmp.ne.s32.totalorder %s69, %s83
      %p85 = scmp.eq.s32.totalorder %s26, 0
      %p86 = por %p84, %p85
      %s88 = sadd.s32 %s87, 1
      %p91 = scmp.eq.s32.totalorder %s20, 1
      %p92 = scmp.ne.s32.totalorder %s87, %s89
      %p93 = scmp.eq.s32.totalorder %s20, 0
      %p94 = por %p92, %p93
      %p95 = scmp.ne.s32.totalorder %s87, %s89
      %p96 = scmp.eq.s32.totalorder %s25, 1
      %p97 = por %p95, %p96
      %p98 = scmp.ne.s32.totalorder %s89, %s90
      %p99 = scmp.eq.s32.totalorder %s25, 0
      %p100 = por %p98, %p99
      %p101 = scmp.ne.s32.totalorder %s89, %s90
      %p102 = scmp.eq.s32.totalorder %s26, 1
      %p103 = por %p101, %p102
      %p105 = scmp.ne.s32.totalorder %s90, %s104
      %p106 = scmp.eq.s32.totalorder %s26, 0
      %p107 = por %p105, %p106
      %s109 = sadd.s32 %s108, 1
      %p112 = scmp.eq.s32.totalorder %s20, 1
      %p113 = scmp.ne.s32.totalorder %s108, %s110
      %p114 = scmp.eq.s32.totalorder %s20, 0
      %p115 = por %p113, %p114
      %p116 = scmp.ne.s32.totalorder %s108, %s110
      %p117 = scmp.eq.s32.totalorder %s25, 1
      %p118 = por %p116, %p117
      %p119 = scmp.ne.s32.totalorder %s110, %s111
      %p120 = scmp.eq.s32.totalorder %s25, 0
      %p121 = por %p119, %p120
      %p122 = scmp.ne.s32.totalorder %s110, %s111
      %p123 = scmp.eq.s32.totalorder %s26, 1
      %p124 = por %p122, %p123
      %p126 = scmp.ne.s32.totalorder %s111, %s125
      %p127 = scmp.eq.s32.totalorder %s26, 0
      %p128 = por %p126, %p127
      %s130 = sadd.s32 %s129, 1
      %p133 = scmp.eq.s32.totalorder %s20, 1
      %p134 = scmp.ne.s32.totalorder %s129, %s131
      %p135 = scmp.eq.s32.totalorder %s20, 0
      %p136 = por %p134, %p135
      %p137 = scmp.ne.s32.totalorder %s129, %s131
      %p138 = scmp.eq.s32.totalorder %s25, 1
      %p139 = por %p137, %p138
      %p140 = scmp.ne.s32.totalorder %s131, %s132
      %p141 = scmp.eq.s32.totalorder %s25, 0
      %p142 = por %p140, %p141
      %p143 = scmp.ne.s32.totalorder %s131, %s132
      %p144 = scmp.eq.s32.totalorder %s26, 1
      %p145 = por %p143, %p144
      %p147 = scmp.ne.s32.totalorder %s132, %s146
      %p148 = scmp.eq.s32.totalorder %s26, 0
      %p149 = por %p147, %p148
      %s151 = sadd.s32 %s150, 1
      %p154 = scmp.eq.s32.totalorder %s20, 1
      %p155 = scmp.ne.s32.totalorder %s150, %s152
      %p156 = scmp.eq.s32.totalorder %s20, 0
      %p157 = por %p155, %p156
      %p158 = scmp.ne.s32.totalorder %s150, %s152
      %p159 = scmp.eq.s32.totalorder %s25, 1
      %p160 = por %p158, %p159
      %p161 = scmp.ne.s32.totalorder %s152, %s153
      %p162 = scmp.eq.s32.totalorder %s25, 0
      %p163 = por %p161, %p162
      %p164 = scmp.ne.s32.totalorder %s152, %s153
      %p165 = scmp.eq.s32.totalorder %s26, 1
      %p166 = por %p164, %p165
      %p168 = scmp.ne.s32.totalorder %s153, %s167
      %p169 = scmp.eq.s32.totalorder %s26, 0
      %p170 = por %p168, %p169
      %s172 = sadd.s32 %s171, 1
      %p175 = scmp.eq.s32.totalorder %s20, 1
      %p176 = scmp.ne.s32.totalorder %s171, %s173
      %p177 = scmp.eq.s32.totalorder %s20, 0
      %p178 = por %p176, %p177
      %p179 = scmp.ne.s32.totalorder %s171, %s173
      %p180 = scmp.eq.s32.totalorder %s25, 1
      %p181 = por %p179, %p180
      %p182 = scmp.ne.s32.totalorder %s173, %s174
      %p183 = scmp.eq.s32.totalorder %s25, 0
      %p184 = por %p182, %p183
      %p185 = scmp.ne.s32.totalorder %s173, %s174
      %p186 = scmp.eq.s32.totalorder %s26, 1
      %p187 = por %p185, %p186
      %p189 = scmp.ne.s32.totalorder %s174, %s188
      %p190 = scmp.eq.s32.totalorder %s26, 0
      %p191 = por %p189, %p190
      %s193 = sadd.s32 %s192, 1
      %p196 = scmp.eq.s32.totalorder %s20, 1
      %p197 = scmp.ne.s32.totalorder %s192, %s194
      %p198 = scmp.eq.s32.totalorder %s20, 0
      %p199 = por %p197, %p198
      %p200 = scmp.ne.s32.totalorder %s192, %s194
      %p201 = scmp.eq.s32.totalorder %s25, 1
      %p202 = por %p200, %p201
      %p203 = scmp.ne.s32.totalorder %s194, %s195
      %p204 = scmp.eq.s32.totalorder %s25, 0
      %p205 = por %p203, %p204
      %p206 = scmp.ne.s32.totalorder %s194, %s195
      %p207 = scmp.eq.s32.totalorder %s26, 1
      %p208 = por %p206, %p207
      %p210 = scmp.ne.s32.totalorder %s195, %s209
      %p211 = scmp.eq.s32.totalorder %s26, 0
      %p212 = por %p210, %p211
      %s214 = sadd.s32 %s213, 1
      %p217 = scmp.eq.s32.totalorder %s20, 1
      %p218 = scmp.ne.s32.totalorder %s213, %s215
      %p219 = scmp.eq.s32.totalorder %s20, 0
      %p220 = por %p218, %p219
      %p221 = scmp.ne.s32.totalorder %s213, %s215
      %p222 = scmp.eq.s32.totalorder %s25, 1
      %p223 = por %p221, %p222
      %p224 = scmp.ne.s32.totalorder %s215, %s216
      %p225 = scmp.eq.s32.totalorder %s25, 0
      %p226 = por %p224, %p225
      %p227 = scmp.ne.s32.totalorder %s215, %s216
      %p228 = scmp.eq.s32.totalorder %s26, 1
      %p229 = por %p227, %p228
      %p231 = scmp.ne.s32.totalorder %s216, %s230
      %p232 = scmp.eq.s32.totalorder %s26, 0
      %p233 = por %p231, %p232
      %s234 = ssub.s32 %s27, %s39
      %s235 = ssub.s32 %s28, %s35
      %s236 = sor.u32 %s234, %s235
      %p237 = scmp.eq.s32.totalorder %s236, 0
      %s239 = sadd.s32 %s238, 1
      %s240 = scalar_select %p237, %s238, %s239
      %p243 = pneg %p237
      %p244 = scmp.eq.s32.totalorder %s20, 1
      %p245 = por %p243, %p244
      %p246 = scmp.ne.s32.totalorder %s238, %s241
      %p247 = scmp.eq.s32.totalorder %s20, 0
      %p248 = por %p246, %p247
      %p249 = scmp.ne.s32.totalorder %s238, %s241
      %p250 = scmp.eq.s32.totalorder %s25, 1
      %p251 = por %p249, %p250
      %p252 = scmp.ne.s32.totalorder %s241, %s242
      %p253 = scmp.eq.s32.totalorder %s25, 0
      %p254 = por %p252, %p253
      %p255 = scmp.ne.s32.totalorder %s241, %s242
      %p256 = scmp.eq.s32.totalorder %s26, 1
      %p257 = por %p255, %p256
      %p259 = scmp.ne.s32.totalorder %s242, %s258
      %p260 = scmp.eq.s32.totalorder %s26, 0
      %p261 = por %p259, %p260
      %p262 = scmp.le.s32.totalorder 1, %s20
      %p263 = scmp.lt.s32.totalorder %s20, 3
      %p264 = pnand %p262, %p263
      %p265 = pneg %p264
      // Predicated region
      $region9: #{tpu_custom_call.1} parent=5 // pred_check
        _
      $region10: #{tpu_custom_call.1} parent=5 // pred_check_branch
        %267 = sbr.rel (%p264) target = $region12
      $region11: #{tpu_custom_call.1} parent=5 // pred_region
        %s268 = ssub.s32 %s20, 1
        // Predicated region
        $region13: #{tpu_custom_call.1} parent=11 // pred_check
          %p269 = pneg %p79
        $region14: #{tpu_custom_call.1} parent=11 // pred_check_branch
          %271 = sbr.rel (%p269) target = $region16
        $region15: #{tpu_custom_call.1} parent=11 // pred_region
          %273 = vsyncadd [#allocation7], 0
          %s275 = sshll.u32 %s1, 4
          %s276 = int_to_ptr.hbm [resolvable:$true] %s275
          %s277 = sshll.u32 [#allocation6], 4
          %s278 = int_to_ptr.vmem [resolvable:$true] %s277
          %280 = dma.hbm_to_vmem [thread:$0]  %s276, 16, %s278, [#allocation7]
        $region16: #{tpu_custom_call.1} parent=11 // pred_fallthru
          _
        // Predicated region
        $region17: #{tpu_custom_call.1} parent=11 // pred_check
          %p281 = pneg %p100
        $region18: #{tpu_custom_call.1} parent=11 // pred_check_branch
          %283 = sbr.rel (%p281) target = $region20
        $region19: #{tpu_custom_call.1} parent=11 // pred_region
          _
        $region20: #{tpu_custom_call.1} parent=11 // pred_fallthru
          _
        // Predicated region
        $region21: #{tpu_custom_call.1} parent=11 // pred_check
          %p284 = pneg %p121
        $region22: #{tpu_custom_call.1} parent=11 // pred_check_branch
          %286 = sbr.rel (%p284) target = $region24
        $region23: #{tpu_custom_call.1} parent=11 // pred_region
          _
        $region24: #{tpu_custom_call.1} parent=11 // pred_fallthru
          _
        // Predicated region
        $region25: #{tpu_custom_call.1} parent=11 // pred_check
          %p287 = pneg %p142
        $region26: #{tpu_custom_call.1} parent=11 // pred_check_branch
          %289 = sbr.rel (%p287) target = $region28
        $region27: #{tpu_custom_call.1} parent=11 // pred_region
          _
        $region28: #{tpu_custom_call.1} parent=11 // pred_fallthru
          _
        // Predicated region
        $region29: #{tpu_custom_call.1} parent=11 // pred_check
          %p290 = pneg %p163
        $region30: #{tpu_custom_call.1} parent=11 // pred_check_branch
          %292 = sbr.rel (%p290) target = $region32
        $region31: #{tpu_custom_call.1} parent=11 // pred_region
          %294 = vsyncadd [#allocation10], 0
          %s295 = sshll.u32 %s5, 4
          %s296 = int_to_ptr.hbm [resolvable:$true] %s295
          %s297 = sshll.u32 [#allocation9], 4
          %s298 = int_to_ptr.vmem [resolvable:$true] %s297
          %303 = dma.hbm_to_vmem [thread:$0]  %s296, 1024, %s298, [#allocation10], 128, 128, 8
        $region32: #{tpu_custom_call.1} parent=11 // pred_fallthru
          _
        // Predicated region
        $region33: #{tpu_custom_call.1} parent=11 // pred_check
          %p304 = pneg %p184
        $region34: #{tpu_custom_call.1} parent=11 // pred_check_branch
          %306 = sbr.rel (%p304) target = $region36
        $region35: #{tpu_custom_call.1} parent=11 // pred_region
          _
        $region36: #{tpu_custom_call.1} parent=11 // pred_fallthru
          _
        // Predicated region
        $region37: #{tpu_custom_call.1} parent=11 // pred_check
          %p307 = pneg %p205
        $region38: #{tpu_custom_call.1} parent=11 // pred_check_branch
          %309 = sbr.rel (%p307) target = $region40
        $region39: #{tpu_custom_call.1} parent=11 // pred_region
          %311 = vsyncadd [#allocation10], 0
          %s312 = sshll.u32 %s7, 4
          %s313 = int_to_ptr.hbm [resolvable:$true] %s312
          %s314 = sshll.u32 [#allocation11], 4
          %s315 = int_to_ptr.vmem [resolvable:$true] %s314
          %320 = dma.hbm_to_vmem [thread:$0]  %s313, 512, %s315, [#allocation10], 64, 64, 4
        $region40: #{tpu_custom_call.1} parent=11 // pred_fallthru
          _
        // Predicated region
        $region41: #{tpu_custom_call.1} parent=11 // pred_check
          %p321 = pneg %p226
        $region42: #{tpu_custom_call.1} parent=11 // pred_check_branch
          %323 = sbr.rel (%p321) target = $region44
        $region43: #{tpu_custom_call.1} parent=11 // pred_region
          _
        $region44: #{tpu_custom_call.1} parent=11 // pred_fallthru
          _
      $region12: #{tpu_custom_call.1} parent=5 // pred_fallthru
        _
      %p324 = scmp.lt.s32.totalorder %s20, 2
      // Predicated region
      $region45: #{tpu_custom_call.1} parent=5 // pred_check
        %p325 = pneg %p324
      $region46: #{tpu_custom_call.1} parent=5 // pred_check_branch
        %327 = sbr.rel (%p325) target = $region48
      $region47: #{tpu_custom_call.1} parent=5 // pred_region
        // Predicated region
        $region49: #{tpu_custom_call.1} parent=47 // pred_check
          %p328 = pneg %p52
        $region50: #{tpu_custom_call.1} parent=47 // pred_check_branch
          %330 = sbr.rel (%p328) target = $region52
        $region51: #{tpu_custom_call.1} parent=47 // pred_region
          %p331 = scmp.lt.s32.totalorder %s27, 1
          %s332 = scalar_select %p331, %s27, 1
          %s333 = smul.addr %s332, 8
          %s334 = smul.addr %s333, 4
          %s335 = scalar_lea.vmem %s0, %s334
        $region52: #{tpu_custom_call.1} parent=47 // pred_fallthru
          _
      $region48: #{tpu_custom_call.1} parent=5 // pred_fallthru
        _
      %p336 = scmp.le.s32.totalorder 1, %s20
      %p337 = scmp.lt.s32.totalorder %s20, 3
      %p338 = pnand %p336, %p337
      %p339 = pneg %p338
      // Predicated region
      $region53: #{tpu_custom_call.1} parent=5 // pred_check
        _
      $region54: #{tpu_custom_call.1} parent=5 // pred_check_branch
        %341 = sbr.rel (%p338) target = $region56
      $region55: #{tpu_custom_call.1} parent=5 // pred_region
        %s342 = ssub.s32 %s20, 1
        // Predicated region
        $region57: #{tpu_custom_call.1} parent=55 // pred_check
          %p343 = pneg %p79
        $region58: #{tpu_custom_call.1} parent=55 // pred_check_branch
          %345 = sbr.rel (%p343) target = $region60
        $region59: #{tpu_custom_call.1} parent=55 // pred_region
          %347 = dma.done [#allocation7], 16
        $region60: #{tpu_custom_call.1} parent=55 // pred_fallthru
          _
        // Predicated region
        $region61: #{tpu_custom_call.1} parent=55 // pred_check
          %p348 = pneg %p163
        $region62: #{tpu_custom_call.1} parent=55 // pred_check_branch
          %350 = sbr.rel (%p348) target = $region64
        $region63: #{tpu_custom_call.1} parent=55 // pred_region
          %352 = dma.done [#allocation10], 1024
        $region64: #{tpu_custom_call.1} parent=55 // pred_fallthru
          _
        // Predicated region
        $region65: #{tpu_custom_call.1} parent=55 // pred_check
          %p353 = pneg %p205
        $region66: #{tpu_custom_call.1} parent=55 // pred_check_branch
          %355 = sbr.rel (%p353) target = $region68
        $region67: #{tpu_custom_call.1} parent=55 // pred_region
          %357 = dma.done [#allocation10], 512
        $region68: #{tpu_custom_call.1} parent=55 // pred_fallthru
          _
        %p358 = scmp.lt.s32.totalorder %s29, 1
        %s359 = scalar_select %p358, %s29, 1
        %s360 = smul.addr %s359, 8
        %s361 = smul.addr %s360, 4
        %s362 = scalar_lea.vmem %s0, %s361
        %p363 = pneg %p58
        %p364 = pneg %p55
        %p365 = pneg %p79
        %p366 = pneg %p76
        %p367 = pneg %p100
        %p368 = pneg %p97
        %p369 = pneg %p121
        %p370 = pneg %p118
        %p371 = pneg %p142
        %p372 = pneg %p139
        %p373 = pneg %p163
        %p374 = pneg %p160
        %p375 = pneg %p184
        %p376 = pneg %p181
        %p377 = pneg %p205
        %p378 = pneg %p202
        %p379 = pneg %p226
        %p380 = pneg %p223
        %p381 = pneg %p254
        %p382 = pneg %p251
        %s383 = sand.u32 %s241, 1
        %s384 = scalar_lea.sflag [#allocation8], %s383
        %s385 = sand.u32 %s241, 1
        %s386 = smul.addr %s385, 64
        %s387 = scalar_lea.vmem [#allocation12], %s386
        %p388 = scmp.lt.s32.totalorder %s29, 1
        %s389 = scalar_select %p388, %s29, 1
        %s390 = smul.addr %s389, 8
        %s391 = smul.addr %s390, 4
        %s392 = scalar_lea.vmem %s0, %s391
        %s393 = smul.u32 8, %s30
        %p395 = scmp.eq.s32.totalorder %s30, 0
        // Predicated region
        $region69: #{tpu_custom_call.1} parent=55 // pred_check
          %p396 = pneg %p395
        $region70: #{tpu_custom_call.1} parent=55 // pred_check_branch
          %398 = sbr.rel (%p396) target = $region72
        $region71: #{tpu_custom_call.1} parent=55 // pred_region
          %v399 = vld [vmem:[%s392] sm:$0xf]
          %v400 = vld [vmem:[%s392 + $0x4] sm:$0xf]
          %v401 = vld [vmem:[%s392 + $0x8] sm:$0xf]
          %v402 = vld [vmem:[%s392 + $0xc] sm:$0xf]
          %v403 = vld [vmem:[%s392 + $0x10] sm:$0xf]
          %v404 = vld [vmem:[%s392 + $0x14] sm:$0xf]
          %v405 = vld [vmem:[%s392 + $0x18] sm:$0xf]
          %v406 = vld [vmem:[%s392 + $0x1c] sm:$0xf]
          %v407 = vunpack.c.l.bf16 %v399
          %v408 = vunpack.c.l.bf16 %v400
          %v409 = vunpack.c.l.bf16 %v401
          %v410 = vunpack.c.l.bf16 %v402
          %v411 = vunpack.c.l.bf16 %v403
          %v412 = vunpack.c.l.bf16 %v404
          %v413 = vunpack.c.l.bf16 %v405
          %v414 = vunpack.c.l.bf16 %v406
          %vm415 = vcmask 523264
          %v416 = vsel %vm415, %v407, 0.0
          %v417 = vsel %vm415, %v408, 0.0
          %v418 = vadd.f32 %v416, %v417
          %v419 = vsel %vm415, %v409, 0.0
          %v420 = vadd.f32 %v418, %v419
          %v421 = vsel %vm415, %v410, 0.0
          %v422 = vadd.f32 %v420, %v421
          %v423 = vsel %vm415, %v411, 0.0
          %v424 = vadd.f32 %v422, %v423
          %v425 = vsel %vm415, %v412, 0.0
          %v426 = vadd.f32 %v424, %v425
          %v427 = vsel %vm415, %v413, 0.0
          %v428 = vadd.f32 %v426, %v427
          %v429 = vsel %vm415, %v414, 0.0
          %v430 = vadd.f32 %v428, %v429
          %v431 = vrot.slane %v430, 4
          %v432 = vadd.f32 %v430, %v431
          %v433 = vrot.slane %v432, 2
          %v434 = vadd.f32 %v432, %v433
          %v435 = vrot.slane %v434, 1
          %v436 = vadd.f32 %v434, %v435
          %v437 = vadd.f32 %v436, 0.0
          %v438 = vld [vmem:[%s3] sm:$0xff]
          %v439 = vld [vmem:[%s3 + $0x8] sm:$0xff]
          %v440 = vld [vmem:[%s3 + $0x10] sm:$0xff]
          %v441 = vld [vmem:[%s3 + $0x18] sm:$0xff]
          %v442 = vld [vmem:[%s3 + $0x20] sm:$0xff]
          %v443 = vld [vmem:[%s3 + $0x28] sm:$0xff]
          %v444 = vld [vmem:[%s3 + $0x30] sm:$0xff]
          %v445 = vld [vmem:[%s3 + $0x38] sm:$0xff]
          %v447 = vsel %vm415, %v437, 0
          %449 = vmatpush.msra.mxu0 0.0
          %450 = vmatpush.msra.mxu0 0.0
          %451 = vmatpush.msra.mxu0 0.0
          %452 = vmatpush.msra.mxu0 0.0
          %453 = vmatpush.msra.mxu0 0.0
          %454 = vmatpush.msra.mxu0 0.0
          %455 = vmatpush.msra.mxu0 0.0
          %456 = vmatpush.msra.mxu0 0.0
          %457 = vmatpush.msra.mxu0 %v445
          %458 = vmatpush.msra.mxu0 %v444
          %459 = vmatpush.msra.mxu0 %v443
          %460 = vmatpush.msra.mxu0 %v442
          %461 = vmatpush.msra.mxu0 %v441
          %462 = vmatpush.msra.mxu0 %v440
          %463 = vmatpush.msra.mxu0 %v439
          %464 = vmatpush.msra.mxu0 %v438
          %465 = vmatmul.f32.gmra.mxu0 %v447
          %v466 = vpop.f32.mrf.mxu0
          %v467 = vadd.f32 0.0, %v466
          %468 = vdwg.mxu0
          %v469 = vmul.f32 %v467, 0.0078125
          %v470 = vld [vmem:[%s4] sm:$0xff]
          %v471 = vld [vmem:[%s4 + $0x8] sm:$0xff]
          %v472 = vld [vmem:[%s4 + $0x10] sm:$0xff]
          %v473 = vld [vmem:[%s4 + $0x18] sm:$0xff]
          %vm474 = vcmask 261120
          %v476 = vsel %vm474, %v469, 0
          %478 = vmatpush.msra.mxu0 0.0
          %479 = vmatpush.msra.mxu0 0.0
          %480 = vmatpush.msra.mxu0 0.0
          %481 = vmatpush.msra.mxu0 0.0
          %482 = vmatpush.msra.mxu0 0.0
          %483 = vmatpush.msra.mxu0 0.0
          %484 = vmatpush.msra.mxu0 0.0
          %485 = vmatpush.msra.mxu0 0.0
          %486 = vmatpush.msra.mxu0 0.0
          %487 = vmatpush.msra.mxu0 0.0
          %488 = vmatpush.msra.mxu0 0.0
          %489 = vmatpush.msra.mxu0 0.0
          %490 = vmatpush.msra.mxu0 %v473
          %491 = vmatpush.msra.mxu0 %v472
          %492 = vmatpush.msra.mxu0 %v471
          %493 = vmatpush.msra.mxu0 %v470
          %494 = vmatmul.f32.gmra.mxu0 %v476
          %v495 = vpop.f32.mrf.mxu0
          %v496 = vadd.f32 0.0, %v495
          %497 = vdwg.mxu0
          %v498 = vperm.slane %v496, 0
          %v499 = vsub.f32 %v407, %v498
          %v500 = vsub.f32 %v408, %v498
          %v501 = vsub.f32 %v409, %v498
          %v502 = vsub.f32 %v410, %v498
          %v503 = vsub.f32 %v411, %v498
          %v504 = vsub.f32 %v412, %v498
          %v505 = vsub.f32 %v413, %v498
          %v506 = vsub.f32 %v414, %v498
          %v507 = vmul.f32 %v499, %v499
          %v508 = vmul.f32 %v500, %v500
          %v509 = vmul.f32 %v501, %v501
          %v510 = vmul.f32 %v502, %v502
          %v511 = vmul.f32 %v503, %v503
          %v512 = vmul.f32 %v504, %v504
          %v513 = vmul.f32 %v505, %v505
          %v514 = vmul.f32 %v506, %v506
          %v515 = vsel %vm415, %v507, 0.0
          %v516 = vsel %vm415, %v508, 0.0
          %v517 = vadd.f32 %v515, %v516
          %v518 = vsel %vm415, %v509, 0.0
          %v519 = vadd.f32 %v517, %v518
          %v520 = vsel %vm415, %v510, 0.0
          %v521 = vadd.f32 %v519, %v520
          %v522 = vsel %vm415, %v511, 0.0
          %v523 = vadd.f32 %v521, %v522
          %v524 = vsel %vm415, %v512, 0.0
          %v525 = vadd.f32 %v523, %v524
          %v526 = vsel %vm415, %v513, 0.0
          %v527 = vadd.f32 %v525, %v526
          %v528 = vsel %vm415, %v514, 0.0
          %v529 = vadd.f32 %v527, %v528
          %v530 = vrot.slane %v529, 4
          %v531 = vadd.f32 %v529, %v530
          %v532 = vrot.slane %v531, 2
          %v533 = vadd.f32 %v531, %v532
          %v534 = vrot.slane %v533, 1
          %v535 = vadd.f32 %v533, %v534
          %v536 = vadd.f32 %v535, 0.0
          %v538 = vsel %vm415, %v536, 0
          %540 = vmatpush.msra.mxu0 0.0
          %541 = vmatpush.msra.mxu0 0.0
          %542 = vmatpush.msra.mxu0 0.0
          %543 = vmatpush.msra.mxu0 0.0
          %544 = vmatpush.msra.mxu0 0.0
          %545 = vmatpush.msra.mxu0 0.0
          %546 = vmatpush.msra.mxu0 0.0
          %547 = vmatpush.msra.mxu0 0.0
          %548 = vmatpush.msra.mxu0 %v445
          %549 = vmatpush.msra.mxu0 %v444
          %550 = vmatpush.msra.mxu0 %v443
          %551 = vmatpush.msra.mxu0 %v442
          %552 = vmatpush.msra.mxu0 %v441
          %553 = vmatpush.msra.mxu0 %v440
          %554 = vmatpush.msra.mxu0 %v439
          %555 = vmatpush.msra.mxu0 %v438
          %556 = vmatmul.f32.gmra.mxu0 %v538
          %v557 = vpop.f32.mrf.mxu0
          %v558 = vadd.f32 0.0, %v557
          %559 = vdwg.mxu0
          %v560 = vmul.f32 %v558, 0.0078125
          %v561 = vadd.f32 %v560, 1e-05
          %v562 = vrsqrt.pop %v561
          %v563 = vmul.f32 %v562, %v561
          %v564 = vmul.f32 %v563, %v562
          %v565 = vmul.f32 0.5, %v564
          %v566 = vsub.f32 1.5, %v565
          %v567 = vmul.f32 %v562, %v566
          %vm568 = vweird.f32 %v561
          %vm569 = vweird.f32 %v562
          %vm570 = vmor %vm568, %vm569
          %v571 = vsel %vm570, %v562, %v567
          %v573 = vsel %vm474, %v571, 0
          %575 = vmatpush.msra.mxu0 0.0
          %576 = vmatpush.msra.mxu0 0.0
          %577 = vmatpush.msra.mxu0 0.0
          %578 = vmatpush.msra.mxu0 0.0
          %579 = vmatpush.msra.mxu0 0.0
          %580 = vmatpush.msra.mxu0 0.0
          %581 = vmatpush.msra.mxu0 0.0
          %582 = vmatpush.msra.mxu0 0.0
          %583 = vmatpush.msra.mxu0 0.0
          %584 = vmatpush.msra.mxu0 0.0
          %585 = vmatpush.msra.mxu0 0.0
          %586 = vmatpush.msra.mxu0 0.0
          %587 = vmatpush.msra.mxu0 %v473
          %588 = vmatpush.msra.mxu0 %v472
          %589 = vmatpush.msra.mxu0 %v471
          %590 = vmatpush.msra.mxu0 %v470
          %591 = vmatmul.f32.gmra.mxu0 %v573
          %v592 = vpop.f32.mrf.mxu0
          %v593 = vadd.f32 0.0, %v592
          %594 = vdwg.mxu0
          %v595 = vperm.slane %v593, 0
          %v596 = vmul.f32 %v499, %v595
          %v597 = vmul.f32 %v500, %v595
          %v598 = vmul.f32 %v501, %v595
          %v599 = vmul.f32 %v502, %v595
          %v600 = vmul.f32 %v503, %v595
          %v601 = vmul.f32 %v504, %v595
          %v602 = vmul.f32 %v505, %v595
          %v603 = vmul.f32 %v506, %v595
          %v604 = vld [vmem:[#allocation6] sm:$0x1]
          %v606 = vperm.slane %v604, 0
          %v608 = vmul.f32 %v596, %v606
          %v609 = vmul.f32 %v597, %v606
          %v610 = vmul.f32 %v598, %v606
          %v611 = vmul.f32 %v599, %v606
          %v612 = vmul.f32 %v600, %v606
          %v613 = vmul.f32 %v601, %v606
          %v614 = vmul.f32 %v602, %v606
          %v615 = vmul.f32 %v603, %v606
          %v616 = vld [vmem:[%s2] sm:$0x1]
          %v618 = vperm.slane %v616, 0
          %v620 = vadd.f32 %v608, %v618
          %v621 = vadd.f32 %v609, %v618
          %v622 = vadd.f32 %v610, %v618
          %v623 = vadd.f32 %v611, %v618
          %v624 = vadd.f32 %v612, %v618
          %v625 = vadd.f32 %v613, %v618
          %v626 = vadd.f32 %v614, %v618
          %v627 = vadd.f32 %v615, %v618
          %v628 = vpack.c.bf16 %v621, %v620
          %v629 = vpack.c.bf16 %v623, %v622
          %v630 = vpack.c.bf16 %v625, %v624
          %v631 = vpack.c.bf16 %v627, %v626
          %v632 = vld [vmem:[#allocation9] sm:$0xff]
          %v633 = vld [vmem:[#allocation9 + $0x8] sm:$0xff]
          %v634 = vld [vmem:[#allocation9 + $0x10] sm:$0xff]
          %v635 = vld [vmem:[#allocation9 + $0x18] sm:$0xff]
          %v636 = vld [vmem:[#allocation9 + $0x20] sm:$0xff]
          %v637 = vld [vmem:[#allocation9 + $0x28] sm:$0xff]
          %v638 = vld [vmem:[#allocation9 + $0x30] sm:$0xff]
          %v639 = vld [vmem:[#allocation9 + $0x38] sm:$0xff]
          %v640 = vld [vmem:[%s6] sm:$0x3]
          %v642 = vperm.slane %v640, 0
          %v643 = vperm.slane %v640, 1
          %v654 = vunpack.c.l.b16 %v632
          %v655 = vunpack.c.h.b16 %v632
          %v656 = vunpack.c.l.b16 %v633
          %v657 = vunpack.c.h.b16 %v633
          %v658 = vunpack.c.l.b16 %v634
          %v659 = vunpack.c.h.b16 %v634
          %v660 = vunpack.c.l.b16 %v635
          %v661 = vunpack.c.h.b16 %v635
          %v662 = vunpack.c.l.b16 %v636
          %v663 = vunpack.c.h.b16 %v636
          %v664 = vunpack.c.l.b16 %v637
          %v665 = vunpack.c.h.b16 %v637
          %v666 = vunpack.c.l.b16 %v638
          %v667 = vunpack.c.h.b16 %v638
          %v668 = vunpack.c.l.b16 %v639
          %v669 = vunpack.c.h.b16 %v639
          %v670 = vpack.c.b16 %v656, %v654
          %v671 = vpack.c.b16 %v657, %v655
          %v672 = vpack.c.b16 %v660, %v658
          %v673 = vpack.c.b16 %v661, %v659
          %v674 = vpack.c.b16 %v664, %v662
          %v675 = vpack.c.b16 %v665, %v663
          %v676 = vpack.c.b16 %v668, %v666
          %v677 = vpack.c.b16 %v669, %v667
          %v687 = vsel %vm415, %v628, 0
          %v690 = vsel %vm415, %v629, 0
          %v693 = vsel %vm415, %v630, 0
          %v696 = vsel %vm415, %v631, 0
          %698 = vmatpush.bf16.msra.mxu0 0
          %699 = vmatpush.bf16.msra.mxu0 0
          %700 = vmatpush.bf16.msra.mxu0 0
          %701 = vmatpush.bf16.msra.mxu0 0
          %702 = vmatpush.bf16.msra.mxu0 %v676
          %703 = vmatpush.bf16.msra.mxu0 %v674
          %704 = vmatpush.bf16.msra.mxu0 %v672
          %705 = vmatpush.bf16.msra.mxu0 %v670
          %706 = vmatmul.bf16.gmra.mxu0 %v687
          %v707 = vpop.f32.mrf.mxu0
          %v708 = vadd.f32 %v642, %v707
          %v709 = vpop.f32.mrf.mxu0
          %v710 = vadd.f32 %v642, %v709
          %711 = vmatmul.bf16.gmra.mxu0 %v690
          %v712 = vpop.f32.mrf.mxu0
          %v713 = vadd.f32 %v642, %v712
          %v714 = vpop.f32.mrf.mxu0
          %v715 = vadd.f32 %v642, %v714
          %716 = vmatmul.bf16.gmra.mxu0 %v693
          %v717 = vpop.f32.mrf.mxu0
          %v718 = vadd.f32 %v642, %v717
          %v719 = vpop.f32.mrf.mxu0
          %v720 = vadd.f32 %v642, %v719
          %721 = vmatmul.bf16.gmra.mxu0 %v696
          %v722 = vpop.f32.mrf.mxu0
          %v723 = vadd.f32 %v642, %v722
          %v724 = vpop.f32.mrf.mxu0
          %v725 = vadd.f32 %v642, %v724
          %726 = vdwg.mxu0
          %727 = vmatpush.bf16.msra.mxu0 0
          %728 = vmatpush.bf16.msra.mxu0 0
          %729 = vmatpush.bf16.msra.mxu0 0
          %730 = vmatpush.bf16.msra.mxu0 0
          %731 = vmatpush.bf16.msra.mxu0 %v677
          %732 = vmatpush.bf16.msra.mxu0 %v675
          %733 = vmatpush.bf16.msra.mxu0 %v673
          %734 = vmatpush.bf16.msra.mxu0 %v671
          %735 = vmatmul.bf16.gmra.mxu0 %v687
          %v736 = vpop.f32.mrf.mxu0
          %v737 = vadd.f32 %v643, %v736
          %v738 = vpop.f32.mrf.mxu0
          %v739 = vadd.f32 %v643, %v738
          %740 = vmatmul.bf16.gmra.mxu0 %v690
          %v741 = vpop.f32.mrf.mxu0
          %v742 = vadd.f32 %v643, %v741
          %v743 = vpop.f32.mrf.mxu0
          %v744 = vadd.f32 %v643, %v743
          %745 = vmatmul.bf16.gmra.mxu0 %v693
          %v746 = vpop.f32.mrf.mxu0
          %v747 = vadd.f32 %v643, %v746
          %v748 = vpop.f32.mrf.mxu0
          %v749 = vadd.f32 %v643, %v748
          %750 = vmatmul.bf16.gmra.mxu0 %v696
          %v751 = vpop.f32.mrf.mxu0
          %v752 = vadd.f32 %v643, %v751
          %v753 = vpop.f32.mrf.mxu0
          %v754 = vadd.f32 %v643, %v753
          %755 = vdwg.mxu0
          %v756 = vmul.f32 %v708, 0.4204482
          %v757 = vmul.f32 %v710, 0.4204482
          %v758 = vmul.f32 %v713, 0.4204482
          %v759 = vmul.f32 %v715, 0.4204482
          %v760 = vmul.f32 %v718, 0.4204482
          %v761 = vmul.f32 %v720, 0.4204482
          %v762 = vmul.f32 %v723, 0.4204482
          %v763 = vmul.f32 %v725, 0.4204482
          %v764 = vpack.c.bf16 %v756, %v756
          %v765 = vpack.c.bf16 %v757, %v757
          %v766 = vpack.c.bf16 %v758, %v758
          %v767 = vpack.c.bf16 %v759, %v759
          %v768 = vpack.c.bf16 %v760, %v760
          %v769 = vpack.c.bf16 %v761, %v761
          %v770 = vpack.c.bf16 %v762, %v762
          %v771 = vpack.c.bf16 %v763, %v763
          %vm772 = vcmask 519168
          %773 = vst.msk [vmem:[#allocation2] sm:$0xf] %vm772, %v764
          %774 = vst.msk [vmem:[#allocation2 + $0x4] sm:$0xf] %vm772, %v765
          %775 = vst.msk [vmem:[#allocation2 + $0x8] sm:$0xf] %vm772, %v766
          %776 = vst.msk [vmem:[#allocation2 + $0xc] sm:$0xf] %vm772, %v767
          %777 = vst.msk [vmem:[#allocation2 + $0x10] sm:$0xf] %vm772, %v768
          %778 = vst.msk [vmem:[#allocation2 + $0x14] sm:$0xf] %vm772, %v769
          %779 = vst.msk [vmem:[#allocation2 + $0x18] sm:$0xf] %vm772, %v770
          %780 = vst.msk [vmem:[#allocation2 + $0x1c] sm:$0xf] %vm772, %v771
          %789 = vrot.lane.b32.xlu0 %v764, 64
          %v790 = vpop.permute.xlu0 %789
          %791 = vrot.lane.b32.xlu0 %v765, 64
          %v792 = vpop.permute.xlu0 %791
          %793 = vrot.lane.b32.xlu0 %v766, 64
          %v794 = vpop.permute.xlu0 %793
          %795 = vrot.lane.b32.xlu0 %v767, 64
          %v796 = vpop.permute.xlu0 %795
          %797 = vrot.lane.b32.xlu0 %v768, 64
          %v798 = vpop.permute.xlu0 %797
          %799 = vrot.lane.b32.xlu0 %v769, 64
          %v800 = vpop.permute.xlu0 %799
          %801 = vrot.lane.b32.xlu0 %v770, 64
          %v802 = vpop.permute.xlu0 %801
          %803 = vrot.lane.b32.xlu0 %v771, 64
          %v804 = vpop.permute.xlu0 %803
          %813 = vst.msk [vmem:[#allocation3] sm:$0xf] %vm772, %v790
          %814 = vst.msk [vmem:[#allocation3 + $0x4] sm:$0xf] %vm772, %v792
          %815 = vst.msk [vmem:[#allocation3 + $0x8] sm:$0xf] %vm772, %v794
          %816 = vst.msk [vmem:[#allocation3 + $0xc] sm:$0xf] %vm772, %v796
          %817 = vst.msk [vmem:[#allocation3 + $0x10] sm:$0xf] %vm772, %v798
          %818 = vst.msk [vmem:[#allocation3 + $0x14] sm:$0xf] %vm772, %v800
          %819 = vst.msk [vmem:[#allocation3 + $0x18] sm:$0xf] %vm772, %v802
          %820 = vst.msk [vmem:[#allocation3 + $0x1c] sm:$0xf] %vm772, %v804
          %v821 = vpack.c.bf16 %v737, %v737
          %v822 = vpack.c.bf16 %v739, %v739
          %v823 = vpack.c.bf16 %v742, %v742
          %v824 = vpack.c.bf16 %v744, %v744
          %v825 = vpack.c.bf16 %v747, %v747
          %v826 = vpack.c.bf16 %v749, %v749
          %v827 = vpack.c.bf16 %v752, %v752
          %v828 = vpack.c.bf16 %v754, %v754
          %829 = vst.msk [vmem:[#allocation4] sm:$0xf] %vm772, %v821
          %830 = vst.msk [vmem:[#allocation4 + $0x4] sm:$0xf] %vm772, %v822
          %831 = vst.msk [vmem:[#allocation4 + $0x8] sm:$0xf] %vm772, %v823
          %832 = vst.msk [vmem:[#allocation4 + $0xc] sm:$0xf] %vm772, %v824
          %833 = vst.msk [vmem:[#allocation4 + $0x10] sm:$0xf] %vm772, %v825
          %834 = vst.msk [vmem:[#allocation4 + $0x14] sm:$0xf] %vm772, %v826
          %835 = vst.msk [vmem:[#allocation4 + $0x18] sm:$0xf] %vm772, %v827
          %836 = vst.msk [vmem:[#allocation4 + $0x1c] sm:$0xf] %vm772, %v828
        $region72: #{tpu_custom_call.1} parent=55 // pred_fallthru
          _
        %s837 = smul.u32 %s30, 64
        %s838 = sshra.s32 %s837, 3
        %s839 = sand.u32 %s837, 7
        %s840 = smul.addr %s838, 4
        %s841 = scalar_lea.vmem [#allocation2], %s840
        %v842 = vld [vmem:[%s841] sm:$0xf]
        %v843 = vld [vmem:[%s841 + $0x4] sm:$0xf]
        %v844 = vld [vmem:[%s841 + $0x8] sm:$0xf]
        %v845 = vld [vmem:[%s841 + $0xc] sm:$0xf]
        %v846 = vld [vmem:[%s841 + $0x10] sm:$0xf]
        %v847 = vld [vmem:[%s841 + $0x14] sm:$0xf]
        %v848 = vld [vmem:[%s841 + $0x18] sm:$0xf]
        %v849 = vld [vmem:[%s841 + $0x1c] sm:$0xf]
        %v850 = vld [vmem:[#allocation3] sm:$0xf]
        %v851 = vld [vmem:[#allocation3 + $0x4] sm:$0xf]
        %v852 = vld [vmem:[#allocation3 + $0x8] sm:$0xf]
        %v853 = vld [vmem:[#allocation3 + $0xc] sm:$0xf]
        %v854 = vld [vmem:[#allocation3 + $0x10] sm:$0xf]
        %v855 = vld [vmem:[#allocation3 + $0x14] sm:$0xf]
        %v856 = vld [vmem:[#allocation3 + $0x18] sm:$0xf]
        %v857 = vld [vmem:[#allocation3 + $0x1c] sm:$0xf]
        %v858 = vld [vmem:[#allocation4] sm:$0xf]
        %v859 = vld [vmem:[#allocation4 + $0x4] sm:$0xf]
        %v860 = vld [vmem:[#allocation4 + $0x8] sm:$0xf]
        %v861 = vld [vmem:[#allocation4 + $0xc] sm:$0xf]
        %v862 = vld [vmem:[#allocation4 + $0x10] sm:$0xf]
        %v863 = vld [vmem:[#allocation4 + $0x14] sm:$0xf]
        %v864 = vld [vmem:[#allocation4 + $0x18] sm:$0xf]
        %v865 = vld [vmem:[#allocation4 + $0x1c] sm:$0xf]
        %v874 = vunpack.c.l.b16 %v842
        %v875 = vunpack.c.l.b16 %v843
        %v876 = vunpack.c.l.b16 %v844
        %v877 = vunpack.c.l.b16 %v845
        %v878 = vunpack.c.l.b16 %v846
        %v879 = vunpack.c.l.b16 %v847
        %v880 = vunpack.c.l.b16 %v848
        %v881 = vunpack.c.l.b16 %v849
        %v882 = vpack.c.b16 %v875, %v874
        %v883 = vpack.c.b16 %v877, %v876
        %v884 = vpack.c.b16 %v879, %v878
        %v885 = vpack.c.b16 %v881, %v880
        %v894 = vunpack.c.l.b16 %v850
        %v895 = vunpack.c.l.b16 %v851
        %v896 = vunpack.c.l.b16 %v852
        %v897 = vunpack.c.l.b16 %v853
        %v898 = vunpack.c.l.b16 %v854
        %v899 = vunpack.c.l.b16 %v855
        %v900 = vunpack.c.l.b16 %v856
        %v901 = vunpack.c.l.b16 %v857
        %v902 = vpack.c.b16 %v895, %v894
        %v903 = vpack.c.b16 %v897, %v896
        %v904 = vpack.c.b16 %v899, %v898
        %v905 = vpack.c.b16 %v901, %v900
        %vm906 = vcmask 261120
        %v908 = vsel %vm906, %v882, 0
        %v911 = vsel %vm906, %v883, 0
        %v914 = vsel %vm906, %v884, 0
        %v917 = vsel %vm906, %v885, 0
        %v920 = vsel %vm906, %v902, 0
        %v923 = vsel %vm906, %v903, 0
        %v926 = vsel %vm906, %v904, 0
        %v929 = vsel %vm906, %v905, 0
        %931 = vmatpush.bf16.xpose.msra.mxu0 0
        %932 = vmatpush.bf16.xpose.msra.mxu0 0
        %933 = vmatpush.bf16.xpose.msra.mxu0 0
        %934 = vmatpush.bf16.xpose.msra.mxu0 0
        %935 = vmatpush.bf16.xpose.msra.mxu0 %v929
        %936 = vmatpush.bf16.xpose.msra.mxu0 %v926
        %937 = vmatpush.bf16.xpose.msra.mxu0 %v923
        %938 = vmatpush.bf16.xpose.msra.mxu0 %v920
        %939 = vmatmul.bf16.gmra.mxu0 %v908
        %v940 = vpop.f32.mrf.mxu0
        %v941 = vadd.f32 0.0, %v940
        %v942 = vpop.f32.mrf.mxu0
        %v943 = vadd.f32 0.0, %v942
        %944 = vmatmul.bf16.gmra.mxu0 %v911
        %v945 = vpop.f32.mrf.mxu0
        %v946 = vadd.f32 0.0, %v945
        %v947 = vpop.f32.mrf.mxu0
        %v948 = vadd.f32 0.0, %v947
        %949 = vmatmul.bf16.gmra.mxu0 %v914
        %v950 = vpop.f32.mrf.mxu0
        %v951 = vadd.f32 0.0, %v950
        %v952 = vpop.f32.mrf.mxu0
        %v953 = vadd.f32 0.0, %v952
        %954 = vmatmul.bf16.gmra.mxu0 %v917
        %v955 = vpop.f32.mrf.mxu0
        %v956 = vadd.f32 0.0, %v955
        %v957 = vpop.f32.mrf.mxu0
        %v958 = vadd.f32 0.0, %v957
        %959 = vdwg.mxu0
        %vm960 = vcmask 523264
        %v961 = vsel %vm960, %v941, -inf
        %962 = vmax.xlane.f32.xlu0 %v961
        %v963 = vpop.xlane.xlu0 %962
        %v964 = vsel %vm960, %v943, -inf
        %965 = vmax.xlane.f32.xlu0 %v964
        %v966 = vpop.xlane.xlu0 %965
        %v967 = vsel %vm960, %v946, -inf
        %968 = vmax.xlane.f32.xlu0 %v967
        %v969 = vpop.xlane.xlu0 %968
        %v970 = vsel %vm960, %v948, -inf
        %971 = vmax.xlane.f32.xlu0 %v970
        %v972 = vpop.xlane.xlu0 %971
        %v973 = vsel %vm960, %v951, -inf
        %974 = vmax.xlane.f32.xlu0 %v973
        %v975 = vpop.xlane.xlu0 %974
        %v976 = vsel %vm960, %v953, -inf
        %977 = vmax.xlane.f32.xlu0 %v976
        %v978 = vpop.xlane.xlu0 %977
        %v979 = vsel %vm960, %v956, -inf
        %980 = vmax.xlane.f32.xlu0 %v979
        %v981 = vpop.xlane.xlu0 %980
        %v982 = vsel %vm960, %v958, -inf
        %983 = vmax.xlane.f32.xlu0 %v982
        %v984 = vpop.xlane.xlu0 %983
        %v985 = vsub.f32 %v941, %v963
        %v986 = vsub.f32 %v943, %v966
        %v987 = vsub.f32 %v946, %v969
        %v988 = vsub.f32 %v948, %v972
        %v989 = vsub.f32 %v951, %v975
        %v990 = vsub.f32 %v953, %v978
        %v991 = vsub.f32 %v956, %v981
        %v992 = vsub.f32 %v958, %v984
        %v993 = vmul.f32 %v985, 1.442695
        %v994 = vpow.pop %v993
        %v995 = vmul.f32 %v986, 1.442695
        %v996 = vpow.pop %v995
        %v997 = vmul.f32 %v987, 1.442695
        %v998 = vpow.pop %v997
        %v999 = vmul.f32 %v988, 1.442695
        %v1000 = vpow.pop %v999
        %v1001 = vmul.f32 %v989, 1.442695
        %v1002 = vpow.pop %v1001
        %v1003 = vmul.f32 %v990, 1.442695
        %v1004 = vpow.pop %v1003
        %v1005 = vmul.f32 %v991, 1.442695
        %v1006 = vpow.pop %v1005
        %v1007 = vmul.f32 %v992, 1.442695
        %v1008 = vpow.pop %v1007
        %v1009 = vpack.c.bf16 %v996, %v994
        %v1010 = vpack.c.bf16 %v1000, %v998
        %v1011 = vpack.c.bf16 %v1004, %v1002
        %v1012 = vpack.c.bf16 %v1008, %v1006
        %v1013 = vunpack.c.l.bf16 %v1009
        %v1014 = vunpack.c.h.bf16 %v1009
        %v1015 = vunpack.c.l.bf16 %v1010
        %v1016 = vunpack.c.h.bf16 %v1010
        %v1017 = vunpack.c.l.bf16 %v1011
        %v1018 = vunpack.c.h.bf16 %v1011
        %v1019 = vunpack.c.l.bf16 %v1012
        %v1020 = vunpack.c.h.bf16 %v1012
        %v1021 = vsel %vm960, %v1013, 0.0
        %1022 = vadd.xlane.f32.xlu0 %v1021
        %v1023 = vpop.xlane.xlu0 %1022
        %v1024 = vsel %vm960, %v1014, 0.0
        %1025 = vadd.xlane.f32.xlu0 %v1024
        %v1026 = vpop.xlane.xlu0 %1025
        %v1027 = vsel %vm960, %v1015, 0.0
        %1028 = vadd.xlane.f32.xlu0 %v1027
        %v1029 = vpop.xlane.xlu0 %1028
        %v1030 = vsel %vm960, %v1016, 0.0
        %1031 = vadd.xlane.f32.xlu0 %v1030
        %v1032 = vpop.xlane.xlu0 %1031
        %v1033 = vsel %vm960, %v1017, 0.0
        %1034 = vadd.xlane.f32.xlu0 %v1033
        %v1035 = vpop.xlane.xlu0 %1034
        %v1036 = vsel %vm960, %v1018, 0.0
        %1037 = vadd.xlane.f32.xlu0 %v1036
        %v1038 = vpop.xlane.xlu0 %1037
        %v1039 = vsel %vm960, %v1019, 0.0
        %1040 = vadd.xlane.f32.xlu0 %v1039
        %v1041 = vpop.xlane.xlu0 %1040
        %v1042 = vsel %vm960, %v1020, 0.0
        %1043 = vadd.xlane.f32.xlu0 %v1042
        %v1044 = vpop.xlane.xlu0 %1043
        %v1053 = vunpack.c.l.b16 %v858
        %v1054 = vunpack.c.l.b16 %v859
        %v1055 = vunpack.c.l.b16 %v860
        %v1056 = vunpack.c.l.b16 %v861
        %v1057 = vunpack.c.l.b16 %v862
        %v1058 = vunpack.c.l.b16 %v863
        %v1059 = vunpack.c.l.b16 %v864
        %v1060 = vunpack.c.l.b16 %v865
        %v1061 = vpack.c.b16 %v1054, %v1053
        %v1062 = vpack.c.b16 %v1056, %v1055
        %v1063 = vpack.c.b16 %v1058, %v1057
        %v1064 = vpack.c.b16 %v1060, %v1059
        %v1070 = vsel %vm960, %v1009, 0
        %v1073 = vsel %vm960, %v1010, 0
        %v1076 = vsel %vm960, %v1011, 0
        %v1079 = vsel %vm960, %v1012, 0
        %1081 = vmatpush.bf16.msra.mxu0 0
        %1082 = vmatpush.bf16.msra.mxu0 0
        %1083 = vmatpush.bf16.msra.mxu0 0
        %1084 = vmatpush.bf16.msra.mxu0 0
        %1085 = vmatpush.bf16.msra.mxu0 %v1064
        %1086 = vmatpush.bf16.msra.mxu0 %v1063
        %1087 = vmatpush.bf16.msra.mxu0 %v1062
        %1088 = vmatpush.bf16.msra.mxu0 %v1061
        %1089 = vmatmul.bf16.gmra.mxu0 %v1070
        %v1090 = vpop.f32.mrf.mxu0
        %v1091 = vadd.f32 0.0, %v1090
        %v1092 = vpop.f32.mrf.mxu0
        %v1093 = vadd.f32 0.0, %v1092
        %1094 = vmatmul.bf16.gmra.mxu0 %v1073
        %v1095 = vpop.f32.mrf.mxu0
        %v1096 = vadd.f32 0.0, %v1095
        %v1097 = vpop.f32.mrf.mxu0
        %v1098 = vadd.f32 0.0, %v1097
        %1099 = vmatmul.bf16.gmra.mxu0 %v1076
        %v1100 = vpop.f32.mrf.mxu0
        %v1101 = vadd.f32 0.0, %v1100
        %v1102 = vpop.f32.mrf.mxu0
        %v1103 = vadd.f32 0.0, %v1102
        %1104 = vmatmul.bf16.gmra.mxu0 %v1079
        %v1105 = vpop.f32.mrf.mxu0
        %v1106 = vadd.f32 0.0, %v1105
        %v1107 = vpop.f32.mrf.mxu0
        %v1108 = vadd.f32 0.0, %v1107
        %1109 = vdwg.mxu0
        %v1110 = vrcp.pop %v1023
        %v1111 = vrcp.pop %v1026
        %v1112 = vrcp.pop %v1029
        %v1113 = vrcp.pop %v1032
        %v1114 = vrcp.pop %v1035
        %v1115 = vrcp.pop %v1038
        %v1116 = vrcp.pop %v1041
        %v1117 = vrcp.pop %v1044
        %v1118 = vmul.f32 %v1091, %v1110
        %v1119 = vmul.f32 %v1093, %v1111
        %v1120 = vmul.f32 %v1096, %v1112
        %v1121 = vmul.f32 %v1098, %v1113
        %v1122 = vmul.f32 %v1101, %v1114
        %v1123 = vmul.f32 %v1103, %v1115
        %v1124 = vmul.f32 %v1106, %v1116
        %v1125 = vmul.f32 %v1108, %v1117
        %v1126 = vpack.c.bf16 %v1118, %v1118
        %v1127 = vpack.c.bf16 %v1119, %v1119
        %v1128 = vpack.c.bf16 %v1120, %v1120
        %v1129 = vpack.c.bf16 %v1121, %v1121
        %v1130 = vpack.c.bf16 %v1122, %v1122
        %v1131 = vpack.c.bf16 %v1123, %v1123
        %v1132 = vpack.c.bf16 %v1124, %v1124
        %v1133 = vpack.c.bf16 %v1125, %v1125
        %vm1134 = vcmask 257024
        %1135 = vst.msk [vmem:[#allocation5] sm:$0xf] %vm1134, %v1126
        %1136 = vst.msk [vmem:[#allocation5 + $0x4] sm:$0xf] %vm1134, %v1127
        %1137 = vst.msk [vmem:[#allocation5 + $0x8] sm:$0xf] %vm1134, %v1128
        %1138 = vst.msk [vmem:[#allocation5 + $0xc] sm:$0xf] %vm1134, %v1129
        %1139 = vst.msk [vmem:[#allocation5 + $0x10] sm:$0xf] %vm1134, %v1130
        %1140 = vst.msk [vmem:[#allocation5 + $0x14] sm:$0xf] %vm1134, %v1131
        %1141 = vst.msk [vmem:[#allocation5 + $0x18] sm:$0xf] %vm1134, %v1132
        %1142 = vst.msk [vmem:[#allocation5 + $0x1c] sm:$0xf] %vm1134, %v1133
        %v1143 = vld [vmem:[%s841] sm:$0xf]
        %v1144 = vld [vmem:[%s841 + $0x4] sm:$0xf]
        %v1145 = vld [vmem:[%s841 + $0x8] sm:$0xf]
        %v1146 = vld [vmem:[%s841 + $0xc] sm:$0xf]
        %v1147 = vld [vmem:[%s841 + $0x10] sm:$0xf]
        %v1148 = vld [vmem:[%s841 + $0x14] sm:$0xf]
        %v1149 = vld [vmem:[%s841 + $0x18] sm:$0xf]
        %v1150 = vld [vmem:[%s841 + $0x1c] sm:$0xf]
        %v1151 = vld [vmem:[#allocation3] sm:$0xf]
        %v1152 = vld [vmem:[#allocation3 + $0x4] sm:$0xf]
        %v1153 = vld [vmem:[#allocation3 + $0x8] sm:$0xf]
        %v1154 = vld [vmem:[#allocation3 + $0xc] sm:$0xf]
        %v1155 = vld [vmem:[#allocation3 + $0x10] sm:$0xf]
        %v1156 = vld [vmem:[#allocation3 + $0x14] sm:$0xf]
        %v1157 = vld [vmem:[#allocation3 + $0x18] sm:$0xf]
        %v1158 = vld [vmem:[#allocation3 + $0x1c] sm:$0xf]
        %v1159 = vld [vmem:[#allocation4] sm:$0xf]
        %v1160 = vld [vmem:[#allocation4 + $0x4] sm:$0xf]
        %v1161 = vld [vmem:[#allocation4 + $0x8] sm:$0xf]
        %v1162 = vld [vmem:[#allocation4 + $0xc] sm:$0xf]
        %v1163 = vld [vmem:[#allocation4 + $0x10] sm:$0xf]
        %v1164 = vld [vmem:[#allocation4 + $0x14] sm:$0xf]
        %v1165 = vld [vmem:[#allocation4 + $0x18] sm:$0xf]
        %v1166 = vld [vmem:[#allocation4 + $0x1c] sm:$0xf]
        %v1175 = vunpack.c.l.b16 %v1143
        %v1176 = vunpack.c.l.b16 %v1144
        %v1177 = vunpack.c.l.b16 %v1145
        %v1178 = vunpack.c.l.b16 %v1146
        %v1179 = vunpack.c.l.b16 %v1147
        %v1180 = vunpack.c.l.b16 %v1148
        %v1181 = vunpack.c.l.b16 %v1149
        %v1182 = vunpack.c.l.b16 %v1150
        %v1183 = vpack.c.b16 %v1176, %v1175
        %v1184 = vpack.c.b16 %v1178, %v1177
        %v1185 = vpack.c.b16 %v1180, %v1179
        %v1186 = vpack.c.b16 %v1182, %v1181
        %1187 = vrot.lane.b32.xlu0 %v1183, 96
        %v1188 = vpop.permute.xlu0 %1187
        %1189 = vrot.lane.b32.xlu0 %v1184, 96
        %v1190 = vpop.permute.xlu0 %1189
        %1191 = vrot.lane.b32.xlu0 %v1185, 96
        %v1192 = vpop.permute.xlu0 %1191
        %1193 = vrot.lane.b32.xlu0 %v1186, 96
        %v1194 = vpop.permute.xlu0 %1193
        %v1203 = vunpack.c.l.b16 %v1151
        %v1204 = vunpack.c.l.b16 %v1152
        %v1205 = vunpack.c.l.b16 %v1153
        %v1206 = vunpack.c.l.b16 %v1154
        %v1207 = vunpack.c.l.b16 %v1155
        %v1208 = vunpack.c.l.b16 %v1156
        %v1209 = vunpack.c.l.b16 %v1157
        %v1210 = vunpack.c.l.b16 %v1158
        %v1211 = vpack.c.b16 %v1204, %v1203
        %v1212 = vpack.c.b16 %v1206, %v1205
        %v1213 = vpack.c.b16 %v1208, %v1207
        %v1214 = vpack.c.b16 %v1210, %v1209
        %1215 = vrot.lane.b32.xlu0 %v1211, 96
        %v1216 = vpop.permute.xlu0 %1215
        %1217 = vrot.lane.b32.xlu0 %v1212, 96
        %v1218 = vpop.permute.xlu0 %1217
        %1219 = vrot.lane.b32.xlu0 %v1213, 96
        %v1220 = vpop.permute.xlu0 %1219
        %1221 = vrot.lane.b32.xlu0 %v1214, 96
        %v1222 = vpop.permute.xlu0 %1221
        %v1224 = vsel %vm906, %v1188, 0
        %v1227 = vsel %vm906, %v1190, 0
        %v1230 = vsel %vm906, %v1192, 0
        %v1233 = vsel %vm906, %v1194, 0
        %v1236 = vsel %vm906, %v1216, 0
        %v1239 = vsel %vm906, %v1218, 0
        %v1242 = vsel %vm906, %v1220, 0
        %v1245 = vsel %vm906, %v1222, 0
        %1247 = vmatpush.bf16.xpose.msra.mxu0 0
        %1248 = vmatpush.bf16.xpose.msra.mxu0 0
        %1249 = vmatpush.bf16.xpose.msra.mxu0 0
        %1250 = vmatpush.bf16.xpose.msra.mxu0 0
        %1251 = vmatpush.bf16.xpose.msra.mxu0 %v1245
        %1252 = vmatpush.bf16.xpose.msra.mxu0 %v1242
        %1253 = vmatpush.bf16.xpose.msra.mxu0 %v1239
        %1254 = vmatpush.bf16.xpose.msra.mxu0 %v1236
        %1255 = vmatmul.bf16.gmra.mxu0 %v1224
        %v1256 = vpop.f32.mrf.mxu0
        %v1257 = vadd.f32 0.0, %v1256
        %v1258 = vpop.f32.mrf.mxu0
        %v1259 = vadd.f32 0.0, %v1258
        %1260 = vmatmul.bf16.gmra.mxu0 %v1227
        %v1261 = vpop.f32.mrf.mxu0
        %v1262 = vadd.f32 0.0, %v1261
        %v1263 = vpop.f32.mrf.mxu0
        %v1264 = vadd.f32 0.0, %v1263
        %1265 = vmatmul.bf16.gmra.mxu0 %v1230
        %v1266 = vpop.f32.mrf.mxu0
        %v1267 = vadd.f32 0.0, %v1266
        %v1268 = vpop.f32.mrf.mxu0
        %v1269 = vadd.f32 0.0, %v1268
        %1270 = vmatmul.bf16.gmra.mxu0 %v1233
        %v1271 = vpop.f32.mrf.mxu0
        %v1272 = vadd.f32 0.0, %v1271
        %v1273 = vpop.f32.mrf.mxu0
        %v1274 = vadd.f32 0.0, %v1273
        %1275 = vdwg.mxu0
        %v1276 = vsel %vm960, %v1257, -inf
        %1277 = vmax.xlane.f32.xlu0 %v1276
        %v1278 = vpop.xlane.xlu0 %1277
        %v1279 = vsel %vm960, %v1259, -inf
        %1280 = vmax.xlane.f32.xlu0 %v1279
        %v1281 = vpop.xlane.xlu0 %1280
        %v1282 = vsel %vm960, %v1262, -inf
        %1283 = vmax.xlane.f32.xlu0 %v1282
        %v1284 = vpop.xlane.xlu0 %1283
        %v1285 = vsel %vm960, %v1264, -inf
        %1286 = vmax.xlane.f32.xlu0 %v1285
        %v1287 = vpop.xlane.xlu0 %1286
        %v1288 = vsel %vm960, %v1267, -inf
        %1289 = vmax.xlane.f32.xlu0 %v1288
        %v1290 = vpop.xlane.xlu0 %1289
        %v1291 = vsel %vm960, %v1269, -inf
        %1292 = vmax.xlane.f32.xlu0 %v1291
        %v1293 = vpop.xlane.xlu0 %1292
        %v1294 = vsel %vm960, %v1272, -inf
        %1295 = vmax.xlane.f32.xlu0 %v1294
        %v1296 = vpop.xlane.xlu0 %1295
        %v1297 = vsel %vm960, %v1274, -inf
        %1298 = vmax.xlane.f32.xlu0 %v1297
        %v1299 = vpop.xlane.xlu0 %1298
        %v1300 = vsub.f32 %v1257, %v1278
        %v1301 = vsub.f32 %v1259, %v1281
        %v1302 = vsub.f32 %v1262, %v1284
        %v1303 = vsub.f32 %v1264, %v1287
        %v1304 = vsub.f32 %v1267, %v1290
        %v1305 = vsub.f32 %v1269, %v1293
        %v1306 = vsub.f32 %v1272, %v1296
        %v1307 = vsub.f32 %v1274, %v1299
        %v1308 = vmul.f32 %v1300, 1.442695
        %v1309 = vpow.pop %v1308
        %v1310 = vmul.f32 %v1301, 1.442695
        %v1311 = vpow.pop %v1310
        %v1312 = vmul.f32 %v1302, 1.442695
        %v1313 = vpow.pop %v1312
        %v1314 = vmul.f32 %v1303, 1.442695
        %v1315 = vpow.pop %v1314
        %v1316 = vmul.f32 %v1304, 1.442695
        %v1317 = vpow.pop %v1316
        %v1318 = vmul.f32 %v1305, 1.442695
        %v1319 = vpow.pop %v1318
        %v1320 = vmul.f32 %v1306, 1.442695
        %v1321 = vpow.pop %v1320
        %v1322 = vmul.f32 %v1307, 1.442695
        %v1323 = vpow.pop %v1322
        %v1324 = vpack.c.bf16 %v1311, %v1309
        %v1325 = vpack.c.bf16 %v1315, %v1313
        %v1326 = vpack.c.bf16 %v1319, %v1317
        %v1327 = vpack.c.bf16 %v1323, %v1321
        %v1328 = vunpack.c.l.bf16 %v1324
        %v1329 = vunpack.c.h.bf16 %v1324
        %v1330 = vunpack.c.l.bf16 %v1325
        %v1331 = vunpack.c.h.bf16 %v1325
        %v1332 = vunpack.c.l.bf16 %v1326
        %v1333 = vunpack.c.h.bf16 %v1326
        %v1334 = vunpack.c.l.bf16 %v1327
        %v1335 = vunpack.c.h.bf16 %v1327
        %v1336 = vsel %vm960, %v1328, 0.0
        %1337 = vadd.xlane.f32.xlu0 %v1336
        %v1338 = vpop.xlane.xlu0 %1337
        %v1339 = vsel %vm960, %v1329, 0.0
        %1340 = vadd.xlane.f32.xlu0 %v1339
        %v1341 = vpop.xlane.xlu0 %1340
        %v1342 = vsel %vm960, %v1330, 0.0
        %1343 = vadd.xlane.f32.xlu0 %v1342
        %v1344 = vpop.xlane.xlu0 %1343
        %v1345 = vsel %vm960, %v1331, 0.0
        %1346 = vadd.xlane.f32.xlu0 %v1345
        %v1347 = vpop.xlane.xlu0 %1346
        %v1348 = vsel %vm960, %v1332, 0.0
        %1349 = vadd.xlane.f32.xlu0 %v1348
        %v1350 = vpop.xlane.xlu0 %1349
        %v1351 = vsel %vm960, %v1333, 0.0
        %1352 = vadd.xlane.f32.xlu0 %v1351
        %v1353 = vpop.xlane.xlu0 %1352
        %v1354 = vsel %vm960, %v1334, 0.0
        %1355 = vadd.xlane.f32.xlu0 %v1354
        %v1356 = vpop.xlane.xlu0 %1355
        %v1357 = vsel %vm960, %v1335, 0.0
        %1358 = vadd.xlane.f32.xlu0 %v1357
        %v1359 = vpop.xlane.xlu0 %1358
        %v1368 = vunpack.c.l.b16 %v1159
        %v1369 = vunpack.c.l.b16 %v1160
        %v1370 = vunpack.c.l.b16 %v1161
        %v1371 = vunpack.c.l.b16 %v1162
        %v1372 = vunpack.c.l.b16 %v1163
        %v1373 = vunpack.c.l.b16 %v1164
        %v1374 = vunpack.c.l.b16 %v1165
        %v1375 = vunpack.c.l.b16 %v1166
        %v1376 = vpack.c.b16 %v1369, %v1368
        %v1377 = vpack.c.b16 %v1371, %v1370
        %v1378 = vpack.c.b16 %v1373, %v1372
        %v1379 = vpack.c.b16 %v1375, %v1374
        %1380 = vrot.lane.b32.xlu0 %v1376, 96
        %v1381 = vpop.permute.xlu0 %1380
        %1382 = vrot.lane.b32.xlu0 %v1377, 96
        %v1383 = vpop.permute.xlu0 %1382
        %1384 = vrot.lane.b32.xlu0 %v1378, 96
        %v1385 = vpop.permute.xlu0 %1384
        %1386 = vrot.lane.b32.xlu0 %v1379, 96
        %v1387 = vpop.permute.xlu0 %1386
        %v1393 = vsel %vm960, %v1324, 0
        %v1396 = vsel %vm960, %v1325, 0
        %v1399 = vsel %vm960, %v1326, 0
        %v1402 = vsel %vm960, %v1327, 0
        %1404 = vmatpush.bf16.msra.mxu0 0
        %1405 = vmatpush.bf16.msra.mxu0 0
        %1406 = vmatpush.bf16.msra.mxu0 0
        %1407 = vmatpush.bf16.msra.mxu0 0
        %1408 = vmatpush.bf16.msra.mxu0 %v1387
        %1409 = vmatpush.bf16.msra.mxu0 %v1385
        %1410 = vmatpush.bf16.msra.mxu0 %v1383
        %1411 = vmatpush.bf16.msra.mxu0 %v1381
        %1412 = vmatmul.bf16.gmra.mxu0 %v1393
        %v1413 = vpop.f32.mrf.mxu0
        %v1414 = vadd.f32 0.0, %v1413
        %v1415 = vpop.f32.mrf.mxu0
        %v1416 = vadd.f32 0.0, %v1415
        %1417 = vmatmul.bf16.gmra.mxu0 %v1396
        %v1418 = vpop.f32.mrf.mxu0
        %v1419 = vadd.f32 0.0, %v1418
        %v1420 = vpop.f32.mrf.mxu0
        %v1421 = vadd.f32 0.0, %v1420
        %1422 = vmatmul.bf16.gmra.mxu0 %v1399
        %v1423 = vpop.f32.mrf.mxu0
        %v1424 = vadd.f32 0.0, %v1423
        %v1425 = vpop.f32.mrf.mxu0
        %v1426 = vadd.f32 0.0, %v1425
        %1427 = vmatmul.bf16.gmra.mxu0 %v1402
        %v1428 = vpop.f32.mrf.mxu0
        %v1429 = vadd.f32 0.0, %v1428
        %v1430 = vpop.f32.mrf.mxu0
        %v1431 = vadd.f32 0.0, %v1430
        %1432 = vdwg.mxu0
        %v1433 = vrcp.pop %v1338
        %v1434 = vrcp.pop %v1341
        %v1435 = vrcp.pop %v1344
        %v1436 = vrcp.pop %v1347
        %v1437 = vrcp.pop %v1350
        %v1438 = vrcp.pop %v1353
        %v1439 = vrcp.pop %v1356
        %v1440 = vrcp.pop %v1359
        %v1441 = vmul.f32 %v1414, %v1433
        %v1442 = vmul.f32 %v1416, %v1434
        %v1443 = vmul.f32 %v1419, %v1435
        %v1444 = vmul.f32 %v1421, %v1436
        %v1445 = vmul.f32 %v1424, %v1437
        %v1446 = vmul.f32 %v1426, %v1438
        %v1447 = vmul.f32 %v1429, %v1439
        %v1448 = vmul.f32 %v1431, %v1440
        %v1449 = vpack.c.bf16 %v1441, %v1441
        %v1450 = vpack.c.bf16 %v1442, %v1442
        %v1451 = vpack.c.bf16 %v1443, %v1443
        %v1452 = vpack.c.bf16 %v1444, %v1444
        %v1453 = vpack.c.bf16 %v1445, %v1445
        %v1454 = vpack.c.bf16 %v1446, %v1446
        %v1455 = vpack.c.bf16 %v1447, %v1447
        %v1456 = vpack.c.bf16 %v1448, %v1448
        %1465 = vrot.lane.b32.xlu0 %v1449, 32
        %v1466 = vpop.permute.xlu0 %1465
        %1467 = vrot.lane.b32.xlu0 %v1450, 32
        %v1468 = vpop.permute.xlu0 %1467
        %1469 = vrot.lane.b32.xlu0 %v1451, 32
        %v1470 = vpop.permute.xlu0 %1469
        %1471 = vrot.lane.b32.xlu0 %v1452, 32
        %v1472 = vpop.permute.xlu0 %1471
        %1473 = vrot.lane.b32.xlu0 %v1453, 32
        %v1474 = vpop.permute.xlu0 %1473
        %1475 = vrot.lane.b32.xlu0 %v1454, 32
        %v1476 = vpop.permute.xlu0 %1475
        %1477 = vrot.lane.b32.xlu0 %v1455, 32
        %v1478 = vpop.permute.xlu0 %1477
        %1479 = vrot.lane.b32.xlu0 %v1456, 32
        %v1480 = vpop.permute.xlu0 %1479
        %vm1489 = vcmask 519424
        %1490 = vst.msk [vmem:[#allocation5] sm:$0xf] %vm1489, %v1466
        %1491 = vst.msk [vmem:[#allocation5 + $0x4] sm:$0xf] %vm1489, %v1468
        %1492 = vst.msk [vmem:[#allocation5 + $0x8] sm:$0xf] %vm1489, %v1470
        %1493 = vst.msk [vmem:[#allocation5 + $0xc] sm:$0xf] %vm1489, %v1472
        %1494 = vst.msk [vmem:[#allocation5 + $0x10] sm:$0xf] %vm1489, %v1474
        %1495 = vst.msk [vmem:[#allocation5 + $0x14] sm:$0xf] %vm1489, %v1476
        %1496 = vst.msk [vmem:[#allocation5 + $0x18] sm:$0xf] %vm1489, %v1478
        %1497 = vst.msk [vmem:[#allocation5 + $0x1c] sm:$0xf] %vm1489, %v1480
        %v1498 = vld [vmem:[#allocation5] sm:$0xf]
        %v1499 = vld [vmem:[#allocation5 + $0x4] sm:$0xf]
        %v1500 = vld [vmem:[#allocation5 + $0x8] sm:$0xf]
        %v1501 = vld [vmem:[#allocation5 + $0xc] sm:$0xf]
        %v1502 = vld [vmem:[#allocation5 + $0x10] sm:$0xf]
        %v1503 = vld [vmem:[#allocation5 + $0x14] sm:$0xf]
        %v1504 = vld [vmem:[#allocation5 + $0x18] sm:$0xf]
        %v1505 = vld [vmem:[#allocation5 + $0x1c] sm:$0xf]
        %v1506 = vld [vmem:[#allocation11] sm:$0xf]
        %v1507 = vld [vmem:[#allocation11 + $0x4] sm:$0xf]
        %v1508 = vld [vmem:[#allocation11 + $0x8] sm:$0xf]
        %v1509 = vld [vmem:[#allocation11 + $0xc] sm:$0xf]
        %v1510 = vld [vmem:[#allocation11 + $0x10] sm:$0xf]
        %v1511 = vld [vmem:[#allocation11 + $0x14] sm:$0xf]
        %v1512 = vld [vmem:[#allocation11 + $0x18] sm:$0xf]
        %v1513 = vld [vmem:[#allocation11 + $0x1c] sm:$0xf]
        %v1522 = vunpack.c.l.b16 %v1498
        %v1523 = vunpack.c.l.b16 %v1499
        %v1524 = vunpack.c.l.b16 %v1500
        %v1525 = vunpack.c.l.b16 %v1501
        %v1526 = vunpack.c.l.b16 %v1502
        %v1527 = vunpack.c.l.b16 %v1503
        %v1528 = vunpack.c.l.b16 %v1504
        %v1529 = vunpack.c.l.b16 %v1505
        %v1530 = vpack.c.b16 %v1523, %v1522
        %v1531 = vpack.c.b16 %v1525, %v1524
        %v1532 = vpack.c.b16 %v1527, %v1526
        %v1533 = vpack.c.b16 %v1529, %v1528
        %v1542 = vunpack.c.l.b16 %v1506
        %v1543 = vunpack.c.l.b16 %v1507
        %v1544 = vunpack.c.l.b16 %v1508
        %v1545 = vunpack.c.l.b16 %v1509
        %v1546 = vunpack.c.l.b16 %v1510
        %v1547 = vunpack.c.l.b16 %v1511
        %v1548 = vunpack.c.l.b16 %v1512
        %v1549 = vunpack.c.l.b16 %v1513
        %v1550 = vpack.c.b16 %v1543, %v1542
        %v1551 = vpack.c.b16 %v1545, %v1544
        %v1552 = vpack.c.b16 %v1547, %v1546
        %v1553 = vpack.c.b16 %v1549, %v1548
        %v1559 = vsel %vm960, %v1530, 0
        %v1562 = vsel %vm960, %v1531, 0
        %v1565 = vsel %vm960, %v1532, 0
        %v1568 = vsel %vm960, %v1533, 0
        %1570 = vmatpush.bf16.msra.mxu0 0
        %1571 = vmatpush.bf16.msra.mxu0 0
        %1572 = vmatpush.bf16.msra.mxu0 0
        %1573 = vmatpush.bf16.msra.mxu0 0
        %1574 = vmatpush.bf16.msra.mxu0 %v1553
        %1575 = vmatpush.bf16.msra.mxu0 %v1552
        %1576 = vmatpush.bf16.msra.mxu0 %v1551
        %1577 = vmatpush.bf16.msra.mxu0 %v1550
        %1578 = vmatmul.bf16.gmra.mxu0 %v1559
        %v1579 = vpop.f32.mrf.mxu0
        %v1580 = vadd.f32 0.0, %v1579
        %v1581 = vpop.f32.mrf.mxu0
        %v1582 = vadd.f32 0.0, %v1581
        %1583 = vmatmul.bf16.gmra.mxu0 %v1562
        %v1584 = vpop.f32.mrf.mxu0
        %v1585 = vadd.f32 0.0, %v1584
        %v1586 = vpop.f32.mrf.mxu0
        %v1587 = vadd.f32 0.0, %v1586
        %1588 = vmatmul.bf16.gmra.mxu0 %v1565
        %v1589 = vpop.f32.mrf.mxu0
        %v1590 = vadd.f32 0.0, %v1589
        %v1591 = vpop.f32.mrf.mxu0
        %v1592 = vadd.f32 0.0, %v1591
        %1593 = vmatmul.bf16.gmra.mxu0 %v1568
        %v1594 = vpop.f32.mrf.mxu0
        %v1595 = vadd.f32 0.0, %v1594
        %v1596 = vpop.f32.mrf.mxu0
        %v1597 = vadd.f32 0.0, %v1596
        %1598 = vdwg.mxu0
        %s1599 = smul.addr %s838, 4
        %s1600 = scalar_lea.vmem %s392, %s1599
        %v1601 = vld [vmem:[%s1600] sm:$0xf]
        %v1602 = vld [vmem:[%s1600 + $0x4] sm:$0xf]
        %v1603 = vld [vmem:[%s1600 + $0x8] sm:$0xf]
        %v1604 = vld [vmem:[%s1600 + $0xc] sm:$0xf]
        %v1605 = vld [vmem:[%s1600 + $0x10] sm:$0xf]
        %v1606 = vld [vmem:[%s1600 + $0x14] sm:$0xf]
        %v1607 = vld [vmem:[%s1600 + $0x18] sm:$0xf]
        %v1608 = vld [vmem:[%s1600 + $0x1c] sm:$0xf]
        %v1609 = vunpack.c.l.bf16 %v1601
        %v1610 = vunpack.c.l.bf16 %v1602
        %v1611 = vunpack.c.l.bf16 %v1603
        %v1612 = vunpack.c.l.bf16 %v1604
        %v1613 = vunpack.c.l.bf16 %v1605
        %v1614 = vunpack.c.l.bf16 %v1606
        %v1615 = vunpack.c.l.bf16 %v1607
        %v1616 = vunpack.c.l.bf16 %v1608
        %v1617 = vadd.f32 %v1609, %v1580
        %v1618 = vadd.f32 %v1610, %v1582
        %v1619 = vadd.f32 %v1611, %v1585
        %v1620 = vadd.f32 %v1612, %v1587
        %v1621 = vadd.f32 %v1613, %v1590
        %v1622 = vadd.f32 %v1614, %v1592
        %v1623 = vadd.f32 %v1615, %v1595
        %v1624 = vadd.f32 %v1616, %v1597
        %v1625 = vld [vmem:[%s8] sm:$0x1]
        %v1627 = vperm.slane %v1625, 0
        %v1629 = vadd.f32 %v1617, %v1627
        %v1630 = vadd.f32 %v1618, %v1627
        %v1631 = vadd.f32 %v1619, %v1627
        %v1632 = vadd.f32 %v1620, %v1627
        %v1633 = vadd.f32 %v1621, %v1627
        %v1634 = vadd.f32 %v1622, %v1627
        %v1635 = vadd.f32 %v1623, %v1627
        %v1636 = vadd.f32 %v1624, %v1627
        %1637 = vst.msk [vmem:[%s387] sm:$0xff] %vm960, %v1629
        %1638 = vst.msk [vmem:[%s387 + $0x8] sm:$0xff] %vm960, %v1630
        %1639 = vst.msk [vmem:[%s387 + $0x10] sm:$0xff] %vm960, %v1631
        %1640 = vst.msk [vmem:[%s387 + $0x18] sm:$0xff] %vm960, %v1632
        %1641 = vst.msk [vmem:[%s387 + $0x20] sm:$0xff] %vm960, %v1633
        %1642 = vst.msk [vmem:[%s387 + $0x28] sm:$0xff] %vm960, %v1634
        %1643 = vst.msk [vmem:[%s387 + $0x30] sm:$0xff] %vm960, %v1635
        %1644 = vst.msk [vmem:[%s387 + $0x38] sm:$0xff] %vm960, %v1636
        %s1645 = sand.u32 %s241, 1
        %s1646 = scalar_lea.sflag [#allocation8], %s1645
        %s1647 = sand.u32 %s241, 1
        %s1648 = smul.addr %s1647, 64
        %s1649 = scalar_lea.vmem [#allocation12], %s1648
        // Predicated region
        $region73: #{tpu_custom_call.1} parent=55 // pred_check
          %p1650 = pneg %p251
        $region74: #{tpu_custom_call.1} parent=55 // pred_check_branch
          %1652 = sbr.rel (%p1650) target = $region76
        $region75: #{tpu_custom_call.1} parent=55 // pred_region
          %s1653 = smul.u32 8, %s30
          %1655 = vsyncadd %s1646, 0
          %s1656 = smul.addr %s29, 8
          %s1657 = sadd.s32 %s1653, %s1656
          %s1658 = smul.addr %s1657, 8
          %s1659 = scalar_lea.hbm %s9, %s1658
          %s1660 = sshll.u32 %s1649, 4
          %s1661 = int_to_ptr.vmem [resolvable:$true] %s1660
          %s1662 = sshll.u32 %s1659, 4
          %s1663 = int_to_ptr.hbm [resolvable:$true] %s1662
          %1668 = dma.vmem_to_hbm [thread:$0]  %s1661, 1024, %s1663, %s1646, 128, 128, 8
        $region76: #{tpu_custom_call.1} parent=55 // pred_fallthru
          _
      $region56: #{tpu_custom_call.1} parent=5 // pred_fallthru
        _
      %p1669 = scmp.le.s32.totalorder 2, %s20
      // Predicated region
      $region77: #{tpu_custom_call.1} parent=5 // pred_check
        %p1670 = pneg %p1669
      $region78: #{tpu_custom_call.1} parent=5 // pred_check_branch
        %1672 = sbr.rel (%p1670) target = $region80
      $region79: #{tpu_custom_call.1} parent=5 // pred_region
        %s1673 = ssub.s32 %s20, 2
        // Predicated region
        $region81: #{tpu_custom_call.1} parent=79 // pred_check
          %p1674 = pneg %p257
        $region82: #{tpu_custom_call.1} parent=79 // pred_check_branch
          %1676 = sbr.rel (%p1674) target = $region84
        $region83: #{tpu_custom_call.1} parent=79 // pred_region
          %s1677 = sand.u32 %s242, 1
          %s1678 = scalar_lea.sflag [#allocation8], %s1677
          %s1679 = sand.u32 %s242, 1
          %s1680 = smul.addr %s1679, 64
          %s1681 = scalar_lea.vmem [#allocation12], %s1680
          %1683 = dma.done %s1678, 1024
        $region84: #{tpu_custom_call.1} parent=79 // pred_fallthru
          _
      $region80: #{tpu_custom_call.1} parent=5 // pred_fallthru
        _
    $region6: #{tpu_custom_call.1} parent=1 // loop_footer
      %s24 = sadd.s32 1, %s20
    $region7: #{tpu_custom_call.1} parent=1 // loop_footer_branch
      %19 = sbr.rel target = $region3
    $region8: #{tpu_custom_call.1} parent=1 // loop_exit
      _
    %1684 = vsyncpa [#allocation7], 1
    %s1685 = scalar_lea.sflag [#allocation7], 1
    %1686 = vsyncpa %s1685, 1
    %1687 = vsyncpa [#allocation10], 1
    %1688 = vsyncpa [#allocation8], 1
    %s1689 = scalar_lea.sflag [#allocation8], 1
    %1690 = vsyncpa %s1689, 1

</llo_original>
